<compile_context>
chip_gen: v7x
topology: tpu7x:2x2x1
jax: 0.10.0
libtpu: 0.0.40
codegen_flags: <defaults>
</compile_context>

<pallas_src>
import jax
import jax.numpy as jnp
from jax import lax
from jax.experimental import pallas as pl
from jax.experimental.pallas import tpu as pltpu


def egnn_go_kernel(feats_i_ref, coors_i_ref, sq_i_ref,
                   feats_jt_ref, coors_jt_ref, sq_j_ref, mask_j_ref,
                   pool_row_ref,
                   w_ei_ref, w_ejt_ref, w_ed_col_ref, b_e1_col_ref,
                   w_e2t_ref, b_e2_col_ref,
                   w_nf_ref, w_nm_ref, b_n1_ref,
                   w_n2_ref, b_n2_ref,
                   w_out_ref, b_out_ref,
                   out_ref,
                   m_i_ref):
    f32 = jnp.float32
    jb = pl.program_id(1)
    n_jb = pl.num_programs(1)

    N = feats_i_ref.shape[1]
    HE = w_ei_ref.shape[1]
    M = w_e2t_ref.shape[0]

    @pl.when(jb == 0)
    def _():
        m_i_ref[...] = jnp.zeros_like(m_i_ref)

    feats_i = feats_i_ref[0]          # (N, D)
    feats_jt = feats_jt_ref[0]        # (D, TJ)   host-transposed j tile
    coors_i = coors_i_ref[0]          # (N, 3)
    coors_jt = coors_jt_ref[0]        # (3, TJ)
    sq_i = sq_i_ref[0]                # (N, 1)    ||x_i||^2
    sq_j = sq_j_ref[0]                # (1, TJ)   ||x_j||^2
    mask_j = mask_j_ref[0]            # (1, TJ)   separable neighbour mask (mask_i not needed)

    # pairwise squared distances for this j tile via the Gram trick, clamped at 0
    gram = jnp.dot(coors_i, coors_jt, preferred_element_type=f32)        # (N, TJ)
    rel_dist = jnp.maximum(sq_i + sq_j - 2.0 * gram, 0.0)                # (N, TJ)

    # edge MLP layer 1 in (i, HE, j) layout: j is the lane (minor) dim -> lane-dense silu
    a_i = jnp.dot(feats_i, w_ei_ref[...], preferred_element_type=f32)    # (N, HE)
    a_jt = jnp.dot(w_ejt_ref[...], feats_jt, preferred_element_type=f32) # (HE, TJ)
    edge_pre = (a_i[:, :, None] + a_jt[None, :, :]
                + rel_dist[:, None, :] * w_ed_col_ref[...][None]
                + b_e1_col_ref[...][None])                                # (N, HE, TJ)
    h1 = jax.nn.silu(edge_pre)

    # edge MLP layer 2 as a batched-over-i MXU matmul (bf16 operands, f32 accumulate)
    w_e2_b = jnp.broadcast_to(w_e2t_ref[...][None], (N, M, HE))           # (N, M, HE)
    m2 = lax.dot_general(
        w_e2_b, h1.astype(w_e2t_ref.dtype),
        dimension_numbers=(((2,), (1,)), ((0,), (0,))),
        preferred_element_type=f32)                                       # (N, M, TJ)
    m_ij = jax.nn.silu(m2 + b_e2_col_ref[...][None])                      # (N, M, TJ)

    # mask out invalid neighbours and accumulate the message sum over this j tile
    m_i_ref[...] += jnp.sum(m_ij * mask_j[None], axis=2)                  # (N, M)

    @pl.when(jb == n_jb - 1)
    def _():
        m_i = m_i_ref[...]                                                # (N, M)
        # node MLP layer 1: two dots sharing an accumulator (no lane-offset concat)
        n_h = jax.nn.silu(
            jnp.dot(feats_i, w_nf_ref[...], preferred_element_type=f32)
            + jnp.dot(m_i, w_nm_ref[...], preferred_element_type=f32)
            + b_n1_ref[...])                                              # (N, HN)
        feats_out = (feats_i
                     + jnp.dot(n_h, w_n2_ref[...], preferred_element_type=f32)
                     + b_n2_ref[...])                                     # (N, D)
        # masked mean pooling: mask/count already folded into the (1, N) pooling row
        pooled = jnp.dot(pool_row_ref[0], feats_out,
                         preferred_element_type=f32)                      # (1, D)
        # GO classifier, padded to a lane-dense (multiple-of-128) output width
        out_ref[0] = (jnp.dot(pooled, w_out_ref[...], preferred_element_type=f32)
                      + b_out_ref[...])                                   # (1, OUT_PAD)


def egnn_go_forward(feats, coors, mask_f, params, *, tj=None,
                    edge_dtype=jnp.bfloat16):
    B, N, D = feats.shape
    OUT = params["w_out"].shape[1]
    OUT_PAD = ((OUT + 127) // 128) * 128        # 489 -> 512: lane-dense output stores
    M = params["w_e2"].shape[1]

    f32 = jnp.float32
    feats = feats.astype(f32)
    coors = coors.astype(f32)
    mask2 = mask_f.reshape(B, N).astype(f32)

    # neighbour (j) axis tiling: lane-dense 128-wide tiles for large N, single full tile else
    if tj is None:
        tj = N if N <= 128 else 128
    njp = ((N + tj - 1) // tj) * tj             # padded neighbour extent
    nj = njp // tj
    pad_j = njp - N

    # ---- host-side layout plumbing (no in-kernel transposes) ------------------------------
    sq = jnp.sum(coors * coors, axis=-1)                                  # (B, N)
    sq_i = sq.reshape(B, N, 1)
    counts = jnp.maximum(jnp.sum(mask2, axis=1, keepdims=True), 1.0)
    # NOTE: reference produces NaN for a fully-masked element; we return zeros instead.
    pool_row = (mask2 / counts).reshape(B, 1, N)                          # masked-mean weights

    feats_t = jnp.transpose(feats, (0, 2, 1))                             # (B, D, N)
    coors_t = jnp.transpose(coors, (0, 2, 1))                             # (B, 3, N)
    sq_j = sq.reshape(B, 1, N)
    mask_j = mask2.reshape(B, 1, N)
    if pad_j:
        feats_t = jnp.pad(feats_t, ((0, 0), (0, 0), (0, pad_j)))
        coors_t = jnp.pad(coors_t, ((0, 0), (0, 0), (0, pad_j)))          # finite padding
        sq_j = jnp.pad(sq_j, ((0, 0), (0, 0), (0, pad_j)))
        mask_j = jnp.pad(mask_j, ((0, 0), (0, 0), (0, pad_j)))            # padded j masked out

    # ---- host-side weight re-layouts (one-time) --------------------------------------------
    w = {
        "w_ei": params["w_ei"].astype(f32),                   # (D, HE)
        "w_ejt": params["w_ej"].T.astype(f32),                # (HE, D)
        "w_ed_col": params["w_ed"].T.astype(f32),             # (HE, 1)
        "b_e1_col": params["b_e1"].T.astype(f32),             # (HE, 1)
        "w_e2t": params["w_e2"].T.astype(edge_dtype),         # (M, HE)  bf16 for the MXU
        "b_e2_col": params["b_e2"].T.astype(f32),             # (M, 1)
        "w_nf": params["w_nf"].astype(f32),                   # (D, HN)
        "w_nm": params["w_nm"].astype(f32),                   # (M, HN)
        "b_n1": params["b_n1"].astype(f32),                   # (1, HN)
        "w_n2": params["w_n2"].astype(f32),                   # (HN, D)
        "b_n2": params["b_n2"].astype(f32),                   # (1, D)
        "w_out": jnp.pad(params["w_out"], ((0, 0), (0, OUT_PAD - OUT))).astype(f32),
        "b_out": jnp.pad(params["b_out"], ((0, 0), (0, OUT_PAD - OUT))).astype(f32),
    }
    w_order = ["w_ei", "w_ejt", "w_ed_col", "b_e1_col", "w_e2t", "b_e2_col",
               "w_nf", "w_nm", "b_n1", "w_n2", "b_n2", "w_out", "b_out"]

    def per_b(shape):            # batched over b only, full trailing dims
        nd = len(shape)
        return pl.BlockSpec((1,) + tuple(shape[1:]),
                            lambda b, j, _nd=nd: (b,) + (0,) * (_nd - 1))

    def per_bj(shape):           # (B, X, NJP) -> (1, X, tj) tile at (b, 0, j)
        return pl.BlockSpec((1, shape[1], tj), lambda b, j: (b, 0, j))

    def full2d(arr):             # weights: constant index map, no per-step re-DMA
        return pl.BlockSpec(arr.shape, lambda b, j: (0, 0))

    data = [feats, coors, sq_i, feats_t, coors_t, sq_j, mask_j, pool_row]
    data_specs = [per_b(feats.shape), per_b(coors.shape), per_b(sq_i.shape),
                  per_bj(feats_t.shape), per_bj(coors_t.shape),
                  per_bj(sq_j.shape), per_bj(mask_j.shape),
                  per_b(pool_row.shape)]
    w_specs = [full2d(w[k]) for k in w_order]

    # explicit VMEM budget with headroom below the physical per-core ceiling
    try:
        kind = jax.devices()[0].device_kind.lower()
    except Exception:
        kind = ""
    vmem_limit = (48 if "v7" in kind else 100) * 1024 * 1024

    out = pl.pallas_call(
        egnn_go_kernel,
        out_shape=jax.ShapeDtypeStruct((B, 1, OUT_PAD), f32),
        grid_spec=pltpu.PrefetchScalarGridSpec(
            num_scalar_prefetch=0,
            grid=(B, nj),                       # batch parallel, neighbour-tile reduction last
            in_specs=data_specs + w_specs,
            out_specs=pl.BlockSpec((1, 1, OUT_PAD), lambda b, j: (b, 0, 0)),
            scratch_shapes=[pltpu.VMEM((N, M), f32)],     # m_i accumulator across j tiles
        ),
        compiler_params=pltpu.CompilerParams(
            dimension_semantics=("parallel", "arbitrary"),
            vmem_limit_bytes=vmem_limit),
    )(*data, *[w[k] for k in w_order])

    return out.reshape(B, OUT_PAD)[:, :OUT]


def reference(feats, coors, mask_f, p):
    # plain-JAX mirror of the PyTorch semantics (EGNN layer -> masked mean pool -> Linear)
    m = mask_f[:, 0, :]                                                   # (B, N)
    rel = coors[:, :, None, :] - coors[:, None, :, :]
    rel_dist = jnp.sum(rel * rel, axis=-1)                                # (B, N, N)
    a_i = feats @ p["w_ei"]
    a_j = feats @ p["w_ej"]
    edge_pre = (a_i[:, :, None, :] + a_j[:, None, :, :]
                + rel_dist[..., None] * p["w_ed"][0]
                + p["b_e1"][0])
    h1 = jax.nn.silu(edge_pre)
    m_ij = jax.nn.silu(jnp.einsum("bijk,kl->bijl", h1, p["w_e2"]) + p["b_e2"][0])
    edge_mask = m[:, :, None] * m[:, None, :]
    m_ij = m_ij * edge_mask[..., None]
    m_i = jnp.sum(m_ij, axis=2)
    n_h = jax.nn.silu(feats @ p["w_nf"] + m_i @ p["w_nm"] + p["b_n1"][0])
    feats_out = feats + n_h @ p["w_n2"] + p["b_n2"][0]
    pooled = (jnp.sum(feats_out * m[..., None], axis=1)
              / jnp.sum(m, axis=1, keepdims=True))
    return pooled @ p["w_out"] + p["b_out"][0]


if __name__ == "__main__":
    B, N, D = 2, 8, 32          # batch, nodes (seq), feature dim
    HE, M, HN = 32, 16, 64      # edge-MLP hidden, message dim, node-MLP hidden
    OUT = 489                   # go_term == 'molecular_function'

    key = jax.random.PRNGKey(0)
    ks = jax.random.split(key, 12)

    feats = jax.random.normal(ks[0], (B, N, D), jnp.float32)
    coors = jax.random.normal(ks[1], (B, N, 3), jnp.float32)
    lengths = jnp.array([[N], [N - 3]], jnp.int32)                        # ragged valid lengths
    mask_f = (jnp.arange(N)[None, :] < lengths).astype(jnp.float32).reshape(B, 1, N)

    def lin(k, fan_in, shape):
        return jax.random.normal(k, shape, jnp.float32) / jnp.sqrt(float(fan_in))

    params = {
        "w_ei": lin(ks[2], 2 * D + 1, (D, HE)),
        "w_ej": lin(ks[3], 2 * D + 1, (D, HE)),
        "w_ed": lin(ks[4], 2 * D + 1, (1, HE)),
        "b_e1": jnp.zeros((1, HE), jnp.float32),
        "w_e2": lin(ks[5], HE, (HE, M)),
        "b_e2": jnp.full((1, M), 0.01, jnp.float32),
        "w_nf": lin(ks[6], D + M, (D, HN)),
        "w_nm": lin(ks[7], D + M, (M, HN)),
        "b_n1": jnp.zeros((1, HN), jnp.float32),
        "w_n2": lin(ks[8], HN, (HN, D)),
        "b_n2": jnp.zeros((1, D), jnp.float32),
        "w_out": lin(ks[9], D, (D, OUT)),
        "b_out": jnp.zeros((1, OUT), jnp.float32),
    }

    ref = jax.block_until_ready(reference(feats, coors, mask_f, params))

    # default path: bf16 MXU operands on the edge-MLP matmul (rounding error << 5e-2;
    # genuine layout / mask bugs would show up as O(0.1 - 1) errors)
    logits = jax.block_until_ready(egnn_go_forward(feats, coors, mask_f, params))
    assert logits.shape == (B, OUT), logits.shape
    err_bf16 = float(jnp.max(jnp.abs(logits - ref)))
    assert err_bf16 < 5e-2, f"bf16 path mismatch vs reference: max abs err = {err_bf16}"

    # strict f32 path: tight tolerance to validate the kernel logic itself
    logits_f32 = jax.block_until_ready(
        egnn_go_forward(feats, coors, mask_f, params, edge_dtype=jnp.float32))
    err_f32 = float(jnp.max(jnp.abs(logits_f32 - ref)))
    assert err_f32 < 2e-3, f"f32 path mismatch vs reference: max abs err = {err_f32}"

    print("KERNEL_OK")
</pallas_src>

<mosaic_0001>
module attributes {stable_mosaic.version = 11 : i64} {
  func.func @egnn_go_kernel(%arg0: i32, %arg1: i32, %arg2: memref<1x8x32xf32, #tpu.memory_space<vmem>>, %arg3: memref<1x8x3xf32, #tpu.memory_space<vmem>>, %arg4: memref<1x8x1xf32, #tpu.memory_space<vmem>>, %arg5: memref<1x32x8xf32, #tpu.memory_space<vmem>>, %arg6: memref<1x3x8xf32, #tpu.memory_space<vmem>>, %arg7: memref<1x1x8xf32, #tpu.memory_space<vmem>>, %arg8: memref<1x1x8xf32, #tpu.memory_space<vmem>>, %arg9: memref<1x1x8xf32, #tpu.memory_space<vmem>>, %arg10: memref<32x32xf32, #tpu.memory_space<vmem>>, %arg11: memref<32x32xf32, #tpu.memory_space<vmem>>, %arg12: memref<32x1xf32, #tpu.memory_space<vmem>>, %arg13: memref<32x1xf32, #tpu.memory_space<vmem>>, %arg14: memref<16x32xbf16, #tpu.memory_space<vmem>>, %arg15: memref<16x1xf32, #tpu.memory_space<vmem>>, %arg16: memref<32x64xf32, #tpu.memory_space<vmem>>, %arg17: memref<16x64xf32, #tpu.memory_space<vmem>>, %arg18: memref<1x64xf32, #tpu.memory_space<vmem>>, %arg19: memref<64x32xf32, #tpu.memory_space<vmem>>, %arg20: memref<1x32xf32, #tpu.memory_space<vmem>>, %arg21: memref<32x512xf32, #tpu.memory_space<vmem>>, %arg22: memref<1x512xf32, #tpu.memory_space<vmem>>, %arg23: memref<1x1x512xf32, #tpu.memory_space<vmem>>, %arg24: memref<8x16xf32, #tpu.memory_space<vmem>>) attributes {dimension_semantics = [#tpu.dimension_semantics<parallel>, #tpu.dimension_semantics<arbitrary>], iteration_bounds = array<i64: 2, 1>, scalar_prefetch = 0 : i64, scratch_operands = 1 : i64, tpu.core_type = #tpu.core_type<tc>, window_params = [{transform_indices = @transform_0, window_bounds = array<i64: 1, 8, 32>}, {transform_indices = @transform_1, window_bounds = array<i64: 1, 8, 3>}, {transform_indices = @transform_2, window_bounds = array<i64: 1, 8, 1>}, {transform_indices = @transform_3, window_bounds = array<i64: 1, 32, 8>}, {transform_indices = @transform_4, window_bounds = array<i64: 1, 3, 8>}, {transform_indices = @transform_5, window_bounds = array<i64: 1, 1, 8>}, {transform_indices = @transform_6, window_bounds = array<i64: 1, 1, 8>}, {transform_indices = @transform_7, window_bounds = array<i64: 1, 1, 8>}, {pipeline_mode = #tpu.pipeline_mode<synchronous>, transform_indices = @transform_8, window_bounds = array<i64: 32, 32>}, {pipeline_mode = #tpu.pipeline_mode<synchronous>, transform_indices = @transform_9, window_bounds = array<i64: 32, 32>}, {pipeline_mode = #tpu.pipeline_mode<synchronous>, transform_indices = @transform_10, window_bounds = array<i64: 32, 1>}, {pipeline_mode = #tpu.pipeline_mode<synchronous>, transform_indices = @transform_11, window_bounds = array<i64: 32, 1>}, {pipeline_mode = #tpu.pipeline_mode<synchronous>, transform_indices = @transform_12, window_bounds = array<i64: 16, 32>}, {pipeline_mode = #tpu.pipeline_mode<synchronous>, transform_indices = @transform_13, window_bounds = array<i64: 16, 1>}, {pipeline_mode = #tpu.pipeline_mode<synchronous>, transform_indices = @transform_14, window_bounds = array<i64: 32, 64>}, {pipeline_mode = #tpu.pipeline_mode<synchronous>, transform_indices = @transform_15, window_bounds = array<i64: 16, 64>}, {pipeline_mode = #tpu.pipeline_mode<synchronous>, transform_indices = @transform_16, window_bounds = array<i64: 1, 64>}, {pipeline_mode = #tpu.pipeline_mode<synchronous>, transform_indices = @transform_17, window_bounds = array<i64: 64, 32>}, {pipeline_mode = #tpu.pipeline_mode<synchronous>, transform_indices = @transform_18, window_bounds = array<i64: 1, 32>}, {pipeline_mode = #tpu.pipeline_mode<synchronous>, transform_indices = @transform_19, window_bounds = array<i64: 32, 512>}, {pipeline_mode = #tpu.pipeline_mode<synchronous>, transform_indices = @transform_20, window_bounds = array<i64: 1, 512>}, {transform_indices = @transform_21, window_bounds = array<i64: 1, 1, 512>}]} {
    %c0_i32 = arith.constant 0 : i32
    %0 = arith.cmpi eq, %arg1, %c0_i32 : i32
    %1 = arith.extui %0 : i1 to i32
    %c0_i32_0 = arith.constant 0 : i32
    %2 = arith.cmpi ne, %1, %c0_i32_0 : i32
    scf.if %2 {
      %cst_47 = arith.constant 0.000000e+00 : f32
      %78 = vector.broadcast %cst_47 : f32 to vector<8x16xf32>
      %c0_48 = arith.constant 0 : index
      %c0_49 = arith.constant 0 : index
      %79 = vector.load %arg24[%c0_48, %c0_49] : memref<8x16xf32, #tpu.memory_space<vmem>>, vector<8x16xf32>
      tpu.vector_store %arg24[%c0_48, %c0_49], %78 {strides = array<i32>} : memref<8x16xf32, #tpu.memory_space<vmem>>, vector<8x16xf32>,
    } else {
    }
    %c0 = arith.constant 0 : index
    %c0_1 = arith.constant 0 : index
    %c0_2 = arith.constant 0 : index
    %3 = vector.load %arg2[%c0, %c0_1, %c0_2] : memref<1x8x32xf32, #tpu.memory_space<vmem>>, vector<1x8x32xf32>
    %4 = vector.shape_cast %3 : vector<1x8x32xf32> to vector<8x32xf32>
    %c0_3 = arith.constant 0 : index
    %c0_4 = arith.constant 0 : index
    %c0_5 = arith.constant 0 : index
    %5 = vector.load %arg5[%c0_3, %c0_4, %c0_5] : memref<1x32x8xf32, #tpu.memory_space<vmem>>, vector<1x32x8xf32>
    %6 = vector.shape_cast %5 : vector<1x32x8xf32> to vector<32x8xf32>
    %c0_6 = arith.constant 0 : index
    %c0_7 = arith.constant 0 : index
    %c0_8 = arith.constant 0 : index
    %7 = vector.load %arg3[%c0_6, %c0_7, %c0_8] : memref<1x8x3xf32, #tpu.memory_space<vmem>>, vector<1x8x3xf32>
    %8 = vector.shape_cast %7 : vector<1x8x3xf32> to vector<8x3xf32>
    %c0_9 = arith.constant 0 : index
    %c0_10 = arith.constant 0 : index
    %c0_11 = arith.constant 0 : index
    %9 = vector.load %arg6[%c0_9, %c0_10, %c0_11] : memref<1x3x8xf32, #tpu.memory_space<vmem>>, vector<1x3x8xf32>
    %10 = vector.shape_cast %9 : vector<1x3x8xf32> to vector<3x8xf32>
    %c0_12 = arith.constant 0 : index
    %c0_13 = arith.constant 0 : index
    %c0_14 = arith.constant 0 : index
    %11 = vector.load %arg4[%c0_12, %c0_13, %c0_14] : memref<1x8x1xf32, #tpu.memory_space<vmem>>, vector<1x8x1xf32>
    %12 = vector.shape_cast %11 : vector<1x8x1xf32> to vector<8x1xf32>
    %c0_15 = arith.constant 0 : index
    %c0_16 = arith.constant 0 : index
    %c0_17 = arith.constant 0 : index
    %13 = vector.load %arg7[%c0_15, %c0_16, %c0_17] : memref<1x1x8xf32, #tpu.memory_space<vmem>>, vector<1x1x8xf32>
    %14 = vector.shape_cast %13 : vector<1x1x8xf32> to vector<1x8xf32>
    %c0_18 = arith.constant 0 : index
    %c0_19 = arith.constant 0 : index
    %c0_20 = arith.constant 0 : index
    %15 = vector.load %arg8[%c0_18, %c0_19, %c0_20] : memref<1x1x8xf32, #tpu.memory_space<vmem>>, vector<1x1x8xf32>
    %16 = vector.shape_cast %15 : vector<1x1x8xf32> to vector<1x8xf32>
    %cst = arith.constant dense<0.000000e+00> : vector<8x8xf32>
    %17 = tpu.matmul %8, %10, %cst {dimension_numbers = #tpu.dot_dimension_numbers<[1], [0], [0], [1], [0, 0, 1, 1], [], []>} : vector<8x3xf32>, vector<3x8xf32>, vector<8x8xf32> -> vector<8x8xf32>
    %18 = vector.broadcast %12 : vector<8x1xf32> to vector<8x8xf32>
    %19 = vector.broadcast %14 : vector<1x8xf32> to vector<8x8xf32>
    %20 = arith.addf %18, %19 : vector<8x8xf32>
    %cst_21 = arith.constant 2.000000e+00 : f32
    %21 = vector.broadcast %cst_21 : f32 to vector<8x8xf32>
    %22 = arith.mulf %21, %17 : vector<8x8xf32>
    %23 = arith.subf %20, %22 : vector<8x8xf32>
    %cst_22 = arith.constant 0.000000e+00 : f32
    %24 = vector.broadcast %cst_22 : f32 to vector<8x8xf32>
    %25 = arith.maximumf %23, %24 : vector<8x8xf32>
    %c0_23 = arith.constant 0 : index
    %c0_24 = arith.constant 0 : index
    %26 = vector.load %arg10[%c0_23, %c0_24] : memref<32x32xf32, #tpu.memory_space<vmem>>, vector<32x32xf32>
    %cst_25 = arith.constant dense<0.000000e+00> : vector<8x32xf32>
    %27 = tpu.matmul %4, %26, %cst_25 {dimension_numbers = #tpu.dot_dimension_numbers<[1], [0], [0], [1], [0, 0, 1, 1], [], []>} : vector<8x32xf32>, vector<32x32xf32>, vector<8x32xf32> -> vector<8x32xf32>
    %c0_26 = arith.constant 0 : index
    %c0_27 = arith.constant 0 : index
    %28 = vector.load %arg11[%c0_26, %c0_27] : memref<32x32xf32, #tpu.memory_space<vmem>>, vector<32x32xf32>
    %cst_28 = arith.constant dense<0.000000e+00> : vector<32x8xf32>
    %29 = tpu.matmul %28, %6, %cst_28 {dimension_numbers = #tpu.dot_dimension_numbers<[1], [0], [0], [1], [0, 0, 1, 1], [], []>} : vector<32x32xf32>, vector<32x8xf32>, vector<32x8xf32> -> vector<32x8xf32>
    %30 = vector.shape_cast %27 : vector<8x32xf32> to vector<8x32x1xf32>
    %31 = vector.shape_cast %29 : vector<32x8xf32> to vector<1x32x8xf32>
    %32 = vector.broadcast %30 : vector<8x32x1xf32> to vector<8x32x8xf32>
    %33 = vector.broadcast %31 : vector<1x32x8xf32> to vector<8x32x8xf32>
    %34 = arith.addf %32, %33 : vector<8x32x8xf32>
    %35 = vector.shape_cast %25 : vector<8x8xf32> to vector<8x1x8xf32>
    %c0_29 = arith.constant 0 : index
    %c0_30 = arith.constant 0 : index
    %36 = vector.load %arg12[%c0_29, %c0_30] : memref<32x1xf32, #tpu.memory_space<vmem>>, vector<32x1xf32>
    %37 = vector.shape_cast %36 : vector<32x1xf32> to vector<1x32x1xf32>
    %38 = vector.broadcast %35 : vector<8x1x8xf32> to vector<8x32x8xf32>
    %39 = vector.broadcast %37 : vector<1x32x1xf32> to vector<8x32x8xf32>
    %40 = arith.mulf %38, %39 : vector<8x32x8xf32>
    %41 = arith.addf %34, %40 : vector<8x32x8xf32>
    %c0_31 = arith.constant 0 : index
    %c0_32 = arith.constant 0 : index
    %42 = vector.load %arg13[%c0_31, %c0_32] : memref<32x1xf32, #tpu.memory_space<vmem>>, vector<32x1xf32>
    %43 = vector.shape_cast %42 : vector<32x1xf32> to vector<1x32x1xf32>
    %44 = vector.broadcast %43 : vector<1x32x1xf32> to vector<8x32x8xf32>
    %45 = arith.addf %41, %44 : vector<8x32x8xf32>
    %46 = arith.negf %45 : vector<8x32x8xf32>
    %47 = math.exp %46 : vector<8x32x8xf32>
    %cst_33 = arith.constant 1.000000e+00 : f32
    %48 = vector.broadcast %cst_33 : f32 to vector<8x32x8xf32>
    %49 = arith.addf %48, %47 : vector<8x32x8xf32>
    %50 = arith.divf %48, %49 : vector<8x32x8xf32>
    %51 = arith.mulf %45, %50 : vector<8x32x8xf32>
    %c0_34 = arith.constant 0 : index
    %c0_35 = arith.constant 0 : index
    %52 = vector.load %arg14[%c0_34, %c0_35] : memref<16x32xbf16, #tpu.memory_space<vmem>>, vector<16x32xbf16>
    %53 = vector.shape_cast %52 : vector<16x32xbf16> to vector<1x16x32xbf16>
    %54 = vector.shape_cast %53 : vector<1x16x32xbf16> to vector<1x16x32xbf16>
    %55 = vector.broadcast %54 : vector<1x16x32xbf16> to vector<8x16x32xbf16>
    %56 = arith.truncf %51 : vector<8x32x8xf32> to vector<8x32x8xbf16>
    %cst_36 = arith.constant dense<0.000000e+00> : vector<8x16x8xf32>
    %57 = tpu.matmul %55, %56, %cst_36 {dimension_numbers = #tpu.dot_dimension_numbers<[2], [1], [1], [2], [0, 0, 0, 1, 1, 2], [0], [0]>} : vector<8x16x32xbf16>, vector<8x32x8xbf16>, vector<8x16x8xf32> -> vector<8x16x8xf32>
    %c0_37 = arith.constant 0 : index
    %c0_38 = arith.constant 0 : index
    %58 = vector.load %arg15[%c0_37, %c0_38] : memref<16x1xf32, #tpu.memory_space<vmem>>, vector<16x1xf32>
    %59 = vector.shape_cast %58 : vector<16x1xf32> to vector<1x16x1xf32>
    %60 = vector.broadcast %59 : vector<1x16x1xf32> to vector<8x16x8xf32>
    %61 = arith.addf %57, %60 : vector<8x16x8xf32>
    %62 = arith.negf %61 : vector<8x16x8xf32>
    %63 = math.exp %62 : vector<8x16x8xf32>
    %cst_39 = arith.constant 1.000000e+00 : f32
    %64 = vector.broadcast %cst_39 : f32 to vector<8x16x8xf32>
    %65 = arith.addf %64, %63 : vector<8x16x8xf32>
    %66 = arith.divf %64, %65 : vector<8x16x8xf32>
    %67 = arith.mulf %61, %66 : vector<8x16x8xf32>
    %c0_40 = arith.constant 0 : index
    %c0_41 = arith.constant 0 : index
    %68 = vector.load %arg24[%c0_40, %c0_41] : memref<8x16xf32, #tpu.memory_space<vmem>>, vector<8x16xf32>
    %69 = vector.shape_cast %16 : vector<1x8xf32> to vector<1x1x8xf32>
    %70 = vector.broadcast %69 : vector<1x1x8xf32> to vector<8x16x8xf32>
    %71 = arith.mulf %67, %70 : vector<8x16x8xf32>
    %cst_42 = arith.constant dense<0.000000e+00> : vector<8x16xf32>
    %72 = vector.multi_reduction <add>, %71, %cst_42 [2] : vector<8x16x8xf32> to vector<8x16xf32>
    %73 = arith.addf %68, %72 : vector<8x16xf32>
    %c0_43 = arith.constant 0 : index
    %c0_44 = arith.constant 0 : index
    %74 = vector.load %arg24[%c0_43, %c0_44] : memref<8x16xf32, #tpu.memory_space<vmem>>, vector<8x16xf32>
    tpu.vector_store %arg24[%c0_43, %c0_44], %73 {strides = array<i32>} : memref<8x16xf32, #tpu.memory_space<vmem>>, vector<8x16xf32>,
    %c0_i32_45 = arith.constant 0 : i32
    %75 = arith.cmpi eq, %arg1, %c0_i32_45 : i32
    %76 = arith.extui %75 : i1 to i32
    %c0_i32_46 = arith.constant 0 : i32
    %77 = arith.cmpi ne, %76, %c0_i32_46 : i32
    scf.if %77 {
      %c0_47 = arith.constant 0 : index
      %c0_48 = arith.constant 0 : index
      %78 = vector.load %arg24[%c0_47, %c0_48] : memref<8x16xf32, #tpu.memory_space<vmem>>, vector<8x16xf32>
      %c0_49 = arith.constant 0 : index
      %c0_50 = arith.constant 0 : index
      %79 = vector.load %arg16[%c0_49, %c0_50] : memref<32x64xf32, #tpu.memory_space<vmem>>, vector<32x64xf32>
      %cst_51 = arith.constant dense<0.000000e+00> : vector<8x64xf32>
      %80 = tpu.matmul %4, %79, %cst_51 {dimension_numbers = #tpu.dot_dimension_numbers<[1], [0], [0], [1], [0, 0, 1, 1], [], []>} : vector<8x32xf32>, vector<32x64xf32>, vector<8x64xf32> -> vector<8x64xf32>
      %c0_52 = arith.constant 0 : index
      %c0_53 = arith.constant 0 : index
      %81 = vector.load %arg17[%c0_52, %c0_53] : memref<16x64xf32, #tpu.memory_space<vmem>>, vector<16x64xf32>
      %cst_54 = arith.constant dense<0.000000e+00> : vector<8x64xf32>
      %82 = tpu.matmul %78, %81, %cst_54 {dimension_numbers = #tpu.dot_dimension_numbers<[1], [0], [0], [1], [0, 0, 1, 1], [], []>} : vector<8x16xf32>, vector<16x64xf32>, vector<8x64xf32> -> vector<8x64xf32>
      %83 = arith.addf %80, %82 : vector<8x64xf32>
      %c0_55 = arith.constant 0 : index
      %c0_56 = arith.constant 0 : index
      %84 = vector.load %arg18[%c0_55, %c0_56] : memref<1x64xf32, #tpu.memory_space<vmem>>, vector<1x64xf32>
      %85 = vector.broadcast %84 : vector<1x64xf32> to vector<8x64xf32>
      %86 = arith.addf %83, %85 : vector<8x64xf32>
      %87 = arith.negf %86 : vector<8x64xf32>
      %88 = math.exp %87 : vector<8x64xf32>
      %cst_57 = arith.constant 1.000000e+00 : f32
      %89 = vector.broadcast %cst_57 : f32 to vector<8x64xf32>
      %90 = arith.addf %89, %88 : vector<8x64xf32>
      %91 = arith.divf %89, %90 : vector<8x64xf32>
      %92 = arith.mulf %86, %91 : vector<8x64xf32>
      %c0_58 = arith.constant 0 : index
      %c0_59 = arith.constant 0 : index
      %93 = vector.load %arg19[%c0_58, %c0_59] : memref<64x32xf32, #tpu.memory_space<vmem>>, vector<64x32xf32>
      %cst_60 = arith.constant dense<0.000000e+00> : vector<8x32xf32>
      %94 = tpu.matmul %92, %93, %cst_60 {dimension_numbers = #tpu.dot_dimension_numbers<[1], [0], [0], [1], [0, 0, 1, 1], [], []>} : vector<8x64xf32>, vector<64x32xf32>, vector<8x32xf32> -> vector<8x32xf32>
      %95 = arith.addf %4, %94 : vector<8x32xf32>
      %c0_61 = arith.constant 0 : index
      %c0_62 = arith.constant 0 : index
      %96 = vector.load %arg20[%c0_61, %c0_62] : memref<1x32xf32, #tpu.memory_space<vmem>>, vector<1x32xf32>
      %97 = vector.broadcast %96 : vector<1x32xf32> to vector<8x32xf32>
      %98 = arith.addf %95, %97 : vector<8x32xf32>
      %c0_63 = arith.constant 0 : index
      %c0_64 = arith.constant 0 : index
      %c0_65 = arith.constant 0 : index
      %99 = vector.load %arg9[%c0_63, %c0_64, %c0_65] : memref<1x1x8xf32, #tpu.memory_space<vmem>>, vector<1x1x8xf32>
      %100 = vector.shape_cast %99 : vector<1x1x8xf32> to vector<1x8xf32>
      %cst_66 = arith.constant dense<0.000000e+00> : vector<1x32xf32>
      %101 = tpu.matmul %100, %98, %cst_66 {dimension_numbers = #tpu.dot_dimension_numbers<[1], [0], [0], [1], [0, 0, 1, 1], [], []>} : vector<1x8xf32>, vector<8x32xf32>, vector<1x32xf32> -> vector<1x32xf32>
      %c0_67 = arith.constant 0 : index
      %c0_68 = arith.constant 0 : index
      %102 = vector.load %arg21[%c0_67, %c0_68] : memref<32x512xf32, #tpu.memory_space<vmem>>, vector<32x512xf32>
      %cst_69 = arith.constant dense<0.000000e+00> : vector<1x512xf32>
      %103 = tpu.matmul %101, %102, %cst_69 {dimension_numbers = #tpu.dot_dimension_numbers<[1], [0], [0], [1], [0, 0, 1, 1], [], []>} : vector<1x32xf32>, vector<32x512xf32>, vector<1x512xf32> -> vector<1x512xf32>
      %c0_70 = arith.constant 0 : index
      %c0_71 = arith.constant 0 : index
      %104 = vector.load %arg22[%c0_70, %c0_71] : memref<1x512xf32, #tpu.memory_space<vmem>>, vector<1x512xf32>
      %105 = arith.addf %103, %104 : vector<1x512xf32>
      %c0_72 = arith.constant 0 : index
      %c0_73 = arith.constant 0 : index
      %c0_74 = arith.constant 0 : index
      %106 = vector.load %arg23[%c0_72, %c0_73, %c0_74] : memref<1x1x512xf32, #tpu.memory_space<vmem>>, vector<1x1x512xf32>
      %107 = vector.shape_cast %106 : vector<1x1x512xf32> to vector<1x512xf32>
      %108 = vector.shape_cast %105 : vector<1x512xf32> to vector<1x1x512xf32>
      tpu.vector_store %arg23[%c0_72, %c0_73, %c0_74], %108 {strides = array<i32>} : memref<1x1x512xf32, #tpu.memory_space<vmem>>, vector<1x1x512xf32>,
    } else {
    }
    return
  }
  func.func @transform_0(%arg0: i32, %arg1: i32) -> (i32, i32, i32) {
    %c0_i32 = arith.constant 0 : i32
    %c0_i32_0 = arith.constant 0 : i32
    %c0_i32_1 = arith.constant 0 : i32
    return %arg0, %c0_i32, %c0_i32_0 : i32, i32, i32
  }
  func.func @transform_1(%arg0: i32, %arg1: i32) -> (i32, i32, i32) {
    %c0_i32 = arith.constant 0 : i32
    %c0_i32_0 = arith.constant 0 : i32
    %c0_i32_1 = arith.constant 0 : i32
    return %arg0, %c0_i32, %c0_i32_0 : i32, i32, i32
  }
  func.func @transform_2(%arg0: i32, %arg1: i32) -> (i32, i32, i32) {
    %c0_i32 = arith.constant 0 : i32
    %c0_i32_0 = arith.constant 0 : i32
    %c0_i32_1 = arith.constant 0 : i32
    return %arg0, %c0_i32, %c0_i32_0 : i32, i32, i32
  }
  func.func @transform_3(%arg0: i32, %arg1: i32) -> (i32, i32, i32) {
    %c0_i32 = arith.constant 0 : i32
    %c0_i32_0 = arith.constant 0 : i32
    return %arg0, %c0_i32, %arg1 : i32, i32, i32
  }
  func.func @transform_4(%arg0: i32, %arg1: i32) -> (i32, i32, i32) {
    %c0_i32 = arith.constant 0 : i32
    %c0_i32_0 = arith.constant 0 : i32
    return %arg0, %c0_i32, %arg1 : i32, i32, i32
  }
  func.func @transform_5(%arg0: i32, %arg1: i32) -> (i32, i32, i32) {
    %c0_i32 = arith.constant 0 : i32
    %c0_i32_0 = arith.constant 0 : i32
    return %arg0, %c0_i32, %arg1 : i32, i32, i32
  }
  func.func @transform_6(%arg0: i32, %arg1: i32) -> (i32, i32, i32) {
    %c0_i32 = arith.constant 0 : i32
    %c0_i32_0 = arith.constant 0 : i32
    return %arg0, %c0_i32, %arg1 : i32, i32, i32
  }
  func.func @transform_7(%arg0: i32, %arg1: i32) -> (i32, i32, i32) {
    %c0_i32 = arith.constant 0 : i32
    %c0_i32_0 = arith.constant 0 : i32
    %c0_i32_1 = arith.constant 0 : i32
    return %arg0, %c0_i32, %c0_i32_0 : i32, i32, i32
  }
  func.func @transform_8(%arg0: i32, %arg1: i32) -> (i32, i32) {
    %c0_i32 = arith.constant 0 : i32
    %c0_i32_0 = arith.constant 0 : i32
    %c0_i32_1 = arith.constant 0 : i32
    return %c0_i32, %c0_i32_0 : i32, i32
  }
  func.func @transform_9(%arg0: i32, %arg1: i32) -> (i32, i32) {
    %c0_i32 = arith.constant 0 : i32
    %c0_i32_0 = arith.constant 0 : i32
    %c0_i32_1 = arith.constant 0 : i32
    return %c0_i32, %c0_i32_0 : i32, i32
  }
  func.func @transform_10(%arg0: i32, %arg1: i32) -> (i32, i32) {
    %c0_i32 = arith.constant 0 : i32
    %c0_i32_0 = arith.constant 0 : i32
    %c0_i32_1 = arith.constant 0 : i32
    return %c0_i32, %c0_i32_0 : i32, i32
  }
  func.func @transform_11(%arg0: i32, %arg1: i32) -> (i32, i32) {
    %c0_i32 = arith.constant 0 : i32
    %c0_i32_0 = arith.constant 0 : i32
    %c0_i32_1 = arith.constant 0 : i32
    return %c0_i32, %c0_i32_0 : i32, i32
  }
  func.func @transform_12(%arg0: i32, %arg1: i32) -> (i32, i32) {
    %c0_i32 = arith.constant 0 : i32
    %c0_i32_0 = arith.constant 0 : i32
    %c0_i32_1 = arith.constant 0 : i32
    return %c0_i32, %c0_i32_0 : i32, i32
  }
  func.func @transform_13(%arg0: i32, %arg1: i32) -> (i32, i32) {
    %c0_i32 = arith.constant 0 : i32
    %c0_i32_0 = arith.constant 0 : i32
    %c0_i32_1 = arith.constant 0 : i32
    return %c0_i32, %c0_i32_0 : i32, i32
  }
  func.func @transform_14(%arg0: i32, %arg1: i32) -> (i32, i32) {
    %c0_i32 = arith.constant 0 : i32
    %c0_i32_0 = arith.constant 0 : i32
    %c0_i32_1 = arith.constant 0 : i32
    return %c0_i32, %c0_i32_0 : i32, i32
  }
  func.func @transform_15(%arg0: i32, %arg1: i32) -> (i32, i32) {
    %c0_i32 = arith.constant 0 : i32
    %c0_i32_0 = arith.constant 0 : i32
    %c0_i32_1 = arith.constant 0 : i32
    return %c0_i32, %c0_i32_0 : i32, i32
  }
  func.func @transform_16(%arg0: i32, %arg1: i32) -> (i32, i32) {
    %c0_i32 = arith.constant 0 : i32
    %c0_i32_0 = arith.constant 0 : i32
    %c0_i32_1 = arith.constant 0 : i32
    return %c0_i32, %c0_i32_0 : i32, i32
  }
  func.func @transform_17(%arg0: i32, %arg1: i32) -> (i32, i32) {
    %c0_i32 = arith.constant 0 : i32
    %c0_i32_0 = arith.constant 0 : i32
    %c0_i32_1 = arith.constant 0 : i32
    return %c0_i32, %c0_i32_0 : i32, i32
  }
  func.func @transform_18(%arg0: i32, %arg1: i32) -> (i32, i32) {
    %c0_i32 = arith.constant 0 : i32
    %c0_i32_0 = arith.constant 0 : i32
    %c0_i32_1 = arith.constant 0 : i32
    return %c0_i32, %c0_i32_0 : i32, i32
  }
  func.func @transform_19(%arg0: i32, %arg1: i32) -> (i32, i32) {
    %c0_i32 = arith.constant 0 : i32
    %c0_i32_0 = arith.constant 0 : i32
    %c0_i32_1 = arith.constant 0 : i32
    return %c0_i32, %c0_i32_0 : i32, i32
  }
  func.func @transform_20(%arg0: i32, %arg1: i32) -> (i32, i32) {
    %c0_i32 = arith.constant 0 : i32
    %c0_i32_0 = arith.constant 0 : i32
    %c0_i32_1 = arith.constant 0 : i32
    return %c0_i32, %c0_i32_0 : i32, i32
  }
  func.func @transform_21(%arg0: i32, %arg1: i32) -> (i32, i32, i32) {
    %c0_i32 = arith.constant 0 : i32
    %c0_i32_0 = arith.constant 0 : i32
    %c0_i32_1 = arith.constant 0 : i32
    return %arg0, %c0_i32, %c0_i32_0 : i32, i32, i32
  }
}

</mosaic_0001>

<llo_original>
// kernel: tpu_custom_call.1
$region0: #{tpu_custom_call.1}
  #allocation0 [shape = 'u32[]', space=smem, size = 0x4, offset = 0x4, fixed_abs, tag = 'smem constant byte address 0x4 - core index']
  #allocation1 [shape = 'u32[144,128]{1,0:T(1,128)}', space=vmem, size = 0x12000, scoped, tag = 'internal scratch']
  #allocation2 [shape = 'f32[8,16]{1,0:T(8,128)}', space=vmem, size = 0x1000, scoped, tag = 'scratch operand']
  %s0 = inlined_call_operand.hbm [shape: f32[2,8,32], index: 0, kind: input, shape index: {}]
  %s1 = inlined_call_operand.hbm [shape: f32[2,8,3], index: 1, kind: input, shape index: {}]
  %s2 = inlined_call_operand.hbm [shape: f32[2,8,1], index: 2, kind: input, shape index: {}]
  %s3 = inlined_call_operand.hbm [shape: f32[2,32,8], index: 3, kind: input, shape index: {}]
  %s4 = inlined_call_operand.hbm [shape: f32[2,3,8], index: 4, kind: input, shape index: {}]
  %s5 = inlined_call_operand.hbm [shape: f32[2,1,8], index: 5, kind: input, shape index: {}]
  %s6 = inlined_call_operand.hbm [shape: f32[2,1,8], index: 6, kind: input, shape index: {}]
  %s7 = inlined_call_operand.hbm [shape: f32[2,1,8], index: 7, kind: input, shape index: {}]
  %s8 = inlined_call_operand.hbm [shape: f32[32,32], index: 8, kind: input, shape index: {}]
  %s9 = inlined_call_operand.hbm [shape: f32[32,32], index: 9, kind: input, shape index: {}]
  %s10 = inlined_call_operand.hbm [shape: f32[32,1], index: 10, kind: input, shape index: {}]
  %s11 = inlined_call_operand.hbm [shape: f32[32,1], index: 11, kind: input, shape index: {}]
  %s12 = inlined_call_operand.hbm [shape: bf16[16,32], index: 12, kind: input, shape index: {}]
  %s13 = inlined_call_operand.hbm [shape: f32[16,1], index: 13, kind: input, shape index: {}]
  %s14 = inlined_call_operand.hbm [shape: f32[32,64], index: 14, kind: input, shape index: {}]
  %s15 = inlined_call_operand.hbm [shape: f32[16,64], index: 15, kind: input, shape index: {}]
  %s16 = inlined_call_operand.hbm [shape: f32[1,64], index: 16, kind: input, shape index: {}]
  %s17 = inlined_call_operand.hbm [shape: f32[64,32], index: 17, kind: input, shape index: {}]
  %s18 = inlined_call_operand.hbm [shape: f32[1,32], index: 18, kind: input, shape index: {}]
  %s19 = inlined_call_operand.hbm [shape: f32[32,512], index: 19, kind: input, shape index: {}]
  %s20 = inlined_call_operand.hbm [shape: f32[1,512], index: 20, kind: input, shape index: {}]
  %s21 = inlined_call_operand.hbm [shape: f32[2,1,512], index: 21, kind: output, shape index: {}]
  %s22 = sld [smem:[#allocation0]]
  $region209: #{tpu_custom_call.1} parent=0
    _
  %s24 = ssub.s32 1, %s22
  %s25 = scalar_select 0, %s24, %s22
  $region1: #{tpu_custom_call.1} parent=0
    #allocation3 [shape = 'u8[8192]{0}', space=vmem, size = 0x2000, scoped, tag = 'input window, operand 0']
    #allocation4 [shape = 's32[2]{0}', space=sflag, size = 0x8, scoped, tag = 'scoped memory for tpu_custom_call.1']
    #allocation5 [shape = 's32[2]{0}', space=sflag, size = 0x8, scoped, tag = 'scoped memory for tpu_custom_call.1']
    #allocation6 [shape = 'u8[8192]{0}', space=vmem, size = 0x2000, scoped, tag = 'input window, operand 1']
    #allocation7 [shape = 's32[2]{0}', space=sflag, size = 0x8, scoped, tag = 'scoped memory for tpu_custom_call.1']
    #allocation8 [shape = 'u8[8192]{0}', space=vmem, size = 0x2000, scoped, tag = 'input window, operand 2']
    #allocation9 [shape = 'u8[32768]{0}', space=vmem, size = 0x8000, scoped, tag = 'input window, operand 3']
    #allocation10 [shape = 's32[2]{0}', space=sflag, size = 0x8, scoped, tag = 'scoped memory for tpu_custom_call.1']
    #allocation11 [shape = 'u8[4096]{0}', space=vmem, size = 0x1000, scoped, tag = 'input window, operand 4']
    #allocation12 [shape = 'u8[1024]{0}', space=vmem, size = 0x400, scoped, tag = 'input window, operand 5']
    #allocation13 [shape = 's32[2]{0}', space=sflag, size = 0x8, scoped, tag = 'scoped memory for tpu_custom_call.1']
    #allocation14 [shape = 'u8[1024]{0}', space=vmem, size = 0x400, scoped, tag = 'input window, operand 6']
    #allocation15 [shape = 'u8[1024]{0}', space=vmem, size = 0x400, scoped, tag = 'input window, operand 7']
    #allocation16 [shape = 's32[2]{0}', space=sflag, size = 0x8, scoped, tag = 'scoped memory for tpu_custom_call.1']
    #allocation17 [shape = 'u8[16384]{0}', space=vmem, size = 0x4000, scoped, tag = 'input window, operand 8, single buffered']
    #allocation18 [shape = 'u8[16384]{0}', space=vmem, size = 0x4000, scoped, tag = 'input window, operand 9, single buffered']
    #allocation19 [shape = 's32[1]{0}', space=sflag, size = 0x4, scoped, tag = 'scoped memory for tpu_custom_call.1']
    #allocation20 [shape = 'u8[16384]{0}', space=vmem, size = 0x4000, scoped, tag = 'input window, operand 10, single buffered']
    #allocation21 [shape = 'u8[16384]{0}', space=vmem, size = 0x4000, scoped, tag = 'input window, operand 11, single buffered']
    #allocation22 [shape = 's32[1]{0}', space=sflag, size = 0x4, scoped, tag = 'scoped memory for tpu_custom_call.1']
    #allocation23 [shape = 'u8[4096]{0}', space=vmem, size = 0x1000, scoped, tag = 'input window, operand 12, single buffered']
    #allocation24 [shape = 'u8[8192]{0}', space=vmem, size = 0x2000, scoped, tag = 'input window, operand 13, single buffered']
    #allocation25 [shape = 's32[1]{0}', space=sflag, size = 0x4, scoped, tag = 'scoped memory for tpu_custom_call.1']
    #allocation26 [shape = 'u8[16384]{0}', space=vmem, size = 0x4000, scoped, tag = 'input window, operand 14, single buffered']
    #allocation27 [shape = 'u8[8192]{0}', space=vmem, size = 0x2000, scoped, tag = 'input window, operand 15, single buffered']
    #allocation28 [shape = 's32[1]{0}', space=sflag, size = 0x4, scoped, tag = 'scoped memory for tpu_custom_call.1']
    #allocation29 [shape = 'u8[512]{0}', space=vmem, size = 0x400, scoped, tag = 'input window, operand 16, single buffered']
    #allocation30 [shape = 'u8[32768]{0}', space=vmem, size = 0x8000, scoped, tag = 'input window, operand 17, single buffered']
    #allocation31 [shape = 's32[1]{0}', space=sflag, size = 0x4, scoped, tag = 'scoped memory for tpu_custom_call.1']
    #allocation32 [shape = 'u8[512]{0}', space=vmem, size = 0x400, scoped, tag = 'input window, operand 18, single buffered']
    #allocation33 [shape = 'u8[65536]{0}', space=vmem, size = 0x10000, scoped, tag = 'input window, operand 19, single buffered']
    #allocation34 [shape = 's32[1]{0}', space=sflag, size = 0x4, scoped, tag = 'scoped memory for tpu_custom_call.1']
    #allocation35 [shape = 'u8[2048]{0}', space=vmem, size = 0x800, scoped, tag = 'input window, operand 20, single buffered']
    #allocation36 [shape = 'u8[4096]{0}', space=vmem, size = 0x1000, scoped, tag = 'output window, operand 0']
    %26 = vsyncpa [#allocation4], 0
    %s27 = scalar_lea.sflag [#allocation4], 1
    %28 = vsyncpa %s27, 0
    %29 = vsyncpa [#allocation7], 0
    %s30 = scalar_lea.sflag [#allocation7], 1
    %31 = vsyncpa %s30, 0
    %32 = vsyncpa [#allocation10], 0
    %s33 = scalar_lea.sflag [#allocation10], 1
    %34 = vsyncpa %s33, 0
    %35 = vsyncpa [#allocation13], 0
    %s36 = scalar_lea.sflag [#allocation13], 1
    %37 = vsyncpa %s36, 0
    %38 = vsyncpa [#allocation16], 0
    %s39 = scalar_lea.sflag [#allocation16], 1
    %40 = vsyncpa %s39, 0
    %41 = vsyncpa [#allocation19], 0
    %42 = vsyncpa [#allocation22], 0
    %43 = vsyncpa [#allocation25], 0
    %44 = vsyncpa [#allocation28], 0
    %45 = vsyncpa [#allocation31], 0
    %46 = vsyncpa [#allocation34], 0
    %47 = vsyncpa [#allocation5], 0
    %s48 = scalar_lea.sflag [#allocation5], 1
    %49 = vsyncpa %s48, 0
    loop: start=0, step=1, limit=4
    $region2: #{tpu_custom_call.1} parent=1 // loop_pre_header
      _
    $region3: #{tpu_custom_call.1} parent=1 // loop_header
      %s51 = sphi 0, %s55
      %p52 = scmp.ge.s32.totalorder %s51, 4
      %s58 = sphi 0, %s70
      %s59 = sphi 0, %s66
      %s60 = sphi 0, %s58
      %s61 = sphi 0, %s59
      %s62 = sphi 0, %s60
      %s63 = sphi 0, %s61
      %s73 = sphi 0, %s75
      %s76 = sphi 0, %s73
      %s77 = sphi 0, %s76
      %s93 = sphi 0, %s77
      %s99 = sphi 0, %s101
      %s102 = sphi 0, %s99
      %s103 = sphi 0, %s102
      %s119 = sphi 0, %s103
      %s125 = sphi 0, %s127
      %s128 = sphi 0, %s125
      %s129 = sphi 0, %s128
      %s145 = sphi 0, %s129
      %s153 = sphi 0, %s155
      %s156 = sphi 0, %s153
      %s157 = sphi 0, %s156
      %s173 = sphi 0, %s157
      %s181 = sphi 0, %s183
      %s184 = sphi 0, %s181
      %s185 = sphi 0, %s184
      %s201 = sphi 0, %s185
      %s209 = sphi 0, %s211
      %s212 = sphi 0, %s209
      %s213 = sphi 0, %s212
      %s229 = sphi 0, %s213
      %s237 = sphi 0, %s239
      %s240 = sphi 0, %s237
      %s241 = sphi 0, %s240
      %s257 = sphi 0, %s241
      %s263 = sphi 0, %s265
      %s266 = sphi 0, %s263
      %s267 = sphi 0, %s266
      %s283 = sphi 0, %s267
      %s287 = sphi 0, %s287
      %s289 = sphi 0, %s287
      %s290 = sphi 0, %s289
      %s304 = sphi 0, %s290
      %s308 = sphi 0, %s308
      %s310 = sphi 0, %s308
      %s311 = sphi 0, %s310
      %s325 = sphi 0, %s311
      %s329 = sphi 0, %s329
      %s331 = sphi 0, %s329
      %s332 = sphi 0, %s331
      %s346 = sphi 0, %s332
      %s350 = sphi 0, %s350
      %s352 = sphi 0, %s350
      %s353 = sphi 0, %s352
      %s367 = sphi 0, %s353
      %s371 = sphi 0, %s371
      %s373 = sphi 0, %s371
      %s374 = sphi 0, %s373
      %s388 = sphi 0, %s374
      %s392 = sphi 0, %s392
      %s394 = sphi 0, %s392
      %s395 = sphi 0, %s394
      %s409 = sphi 0, %s395
      %s413 = sphi 0, %s413
      %s415 = sphi 0, %s413
      %s416 = sphi 0, %s415
      %s430 = sphi 0, %s416
      %s434 = sphi 0, %s434
      %s436 = sphi 0, %s434
      %s437 = sphi 0, %s436
      %s451 = sphi 0, %s437
      %s455 = sphi 0, %s455
      %s457 = sphi 0, %s455
      %s458 = sphi 0, %s457
      %s472 = sphi 0, %s458
      %s476 = sphi 0, %s476
      %s478 = sphi 0, %s476
      %s479 = sphi 0, %s478
      %s493 = sphi 0, %s479
      %s497 = sphi 0, %s497
      %s499 = sphi 0, %s497
      %s500 = sphi 0, %s499
      %s514 = sphi 0, %s500
      %s518 = sphi 0, %s518
      %s520 = sphi 0, %s518
      %s521 = sphi 0, %s520
      %s535 = sphi 0, %s521
      %s539 = sphi 0, %s539
      %s541 = sphi 0, %s539
      %s542 = sphi 0, %s541
      %s556 = sphi 0, %s542
      %s562 = sphi 0, %s564
      %s565 = sphi 0, %s562
      %s566 = sphi 0, %s565
      %s582 = sphi 0, %s566
    $region4: #{tpu_custom_call.1} parent=1 // loop_header_branch
      %54 = sbr.rel (%p52) target = $region8
    $region5: #{tpu_custom_call.1} parent=1 // loop_body
      %s56 = ssub.s32 %s51, 1
      %s57 = ssub.s32 %s51, 2
      %s64 = sadd.s32 1, %s59
      %p65 = scmp.ge.s32.totalorder %s64, 1
      %s66 = scalar_select %p65, 0, %s64
      %s67 = sadd.s32 1, %s58
      %s68 = scalar_select %p65, %s67, %s58
      %p69 = scmp.ge.s32.totalorder %s68, 2
      %s70 = scalar_select %p69, 0, %s68
      %s71 = ssub.s32 %s58, %s70
      %p72 = scmp.eq.s32.totalorder %s71, 0
      %s74 = sadd.s32 %s73, 1
      %s75 = scalar_select %p72, %s73, %s74
      %p78 = pneg %p72
      %p79 = scmp.eq.s32.totalorder %s51, 1
      %p80 = por %p78, %p79
      %p81 = scmp.ne.s32.totalorder %s73, %s76
      %p82 = scmp.eq.s32.totalorder %s51, 0
      %p83 = por %p81, %p82
      %p84 = scmp.ne.s32.totalorder %s73, %s76
      %p85 = scmp.eq.s32.totalorder %s56, 1
      %p86 = por %p84, %p85
      %p87 = scmp.ne.s32.totalorder %s76, %s77
      %p88 = scmp.eq.s32.totalorder %s56, 0
      %p89 = por %p87, %p88
      %p90 = scmp.ne.s32.totalorder %s76, %s77
      %p91 = scmp.eq.s32.totalorder %s57, 1
      %p92 = por %p90, %p91
      %p94 = scmp.ne.s32.totalorder %s77, %s93
      %p95 = scmp.eq.s32.totalorder %s57, 0
      %p96 = por %p94, %p95
      %s97 = ssub.s32 %s58, %s70
      %p98 = scmp.eq.s32.totalorder %s97, 0
      %s100 = sadd.s32 %s99, 1
      %s101 = scalar_select %p98, %s99, %s100
      %p104 = pneg %p98
      %p105 = scmp.eq.s32.totalorder %s51, 1
      %p106 = por %p104, %p105
      %p107 = scmp.ne.s32.totalorder %s99, %s102
      %p108 = scmp.eq.s32.totalorder %s51, 0
      %p109 = por %p107, %p108
      %p110 = scmp.ne.s32.totalorder %s99, %s102
      %p111 = scmp.eq.s32.totalorder %s56, 1
      %p112 = por %p110, %p111
      %p113 = scmp.ne.s32.totalorder %s102, %s103
      %p114 = scmp.eq.s32.totalorder %s56, 0
      %p115 = por %p113, %p114
      %p116 = scmp.ne.s32.totalorder %s102, %s103
      %p117 = scmp.eq.s32.totalorder %s57, 1
      %p118 = por %p116, %p117
      %p120 = scmp.ne.s32.totalorder %s103, %s119
      %p121 = scmp.eq.s32.totalorder %s57, 0
      %p122 = por %p120, %p121
      %s123 = ssub.s32 %s58, %s70
      %p124 = scmp.eq.s32.totalorder %s123, 0
      %s126 = sadd.s32 %s125, 1
      %s127 = scalar_select %p124, %s125, %s126
      %p130 = pneg %p124
      %p131 = scmp.eq.s32.totalorder %s51, 1
      %p132 = por %p130, %p131
      %p133 = scmp.ne.s32.totalorder %s125, %s128
      %p134 = scmp.eq.s32.totalorder %s51, 0
      %p135 = por %p133, %p134
      %p136 = scmp.ne.s32.totalorder %s125, %s128
      %p137 = scmp.eq.s32.totalorder %s56, 1
      %p138 = por %p136, %p137
      %p139 = scmp.ne.s32.totalorder %s128, %s129
      %p140 = scmp.eq.s32.totalorder %s56, 0
      %p141 = por %p139, %p140
      %p142 = scmp.ne.s32.totalorder %s128, %s129
      %p143 = scmp.eq.s32.totalorder %s57, 1
      %p144 = por %p142, %p143
      %p146 = scmp.ne.s32.totalorder %s129, %s145
      %p147 = scmp.eq.s32.totalorder %s57, 0
      %p148 = por %p146, %p147
      %s149 = ssub.s32 %s58, %s70
      %s150 = ssub.s32 %s59, %s66
      %s151 = sor.u32 %s149, %s150
      %p152 = scmp.eq.s32.totalorder %s151, 0
      %s154 = sadd.s32 %s153, 1
      %s155 = scalar_select %p152, %s153, %s154
      %p158 = pneg %p152
      %p159 = scmp.eq.s32.totalorder %s51, 1
      %p160 = por %p158, %p159
      %p161 = scmp.ne.s32.totalorder %s153, %s156
      %p162 = scmp.eq.s32.totalorder %s51, 0
      %p163 = por %p161, %p162
      %p164 = scmp.ne.s32.totalorder %s153, %s156
      %p165 = scmp.eq.s32.totalorder %s56, 1
      %p166 = por %p164, %p165
      %p167 = scmp.ne.s32.totalorder %s156, %s157
      %p168 = scmp.eq.s32.totalorder %s56, 0
      %p169 = por %p167, %p168
      %p170 = scmp.ne.s32.totalorder %s156, %s157
      %p171 = scmp.eq.s32.totalorder %s57, 1
      %p172 = por %p170, %p171
      %p174 = scmp.ne.s32.totalorder %s157, %s173
      %p175 = scmp.eq.s32.totalorder %s57, 0
      %p176 = por %p174, %p175
      %s177 = ssub.s32 %s58, %s70
      %s178 = ssub.s32 %s59, %s66
      %s179 = sor.u32 %s177, %s178
      %p180 = scmp.eq.s32.totalorder %s179, 0
      %s182 = sadd.s32 %s181, 1
      %s183 = scalar_select %p180, %s181, %s182
      %p186 = pneg %p180
      %p187 = scmp.eq.s32.totalorder %s51, 1
      %p188 = por %p186, %p187
      %p189 = scmp.ne.s32.totalorder %s181, %s184
      %p190 = scmp.eq.s32.totalorder %s51, 0
      %p191 = por %p189, %p190
      %p192 = scmp.ne.s32.totalorder %s181, %s184
      %p193 = scmp.eq.s32.totalorder %s56, 1
      %p194 = por %p192, %p193
      %p195 = scmp.ne.s32.totalorder %s184, %s185
      %p196 = scmp.eq.s32.totalorder %s56, 0
      %p197 = por %p195, %p196
      %p198 = scmp.ne.s32.totalorder %s184, %s185
      %p199 = scmp.eq.s32.totalorder %s57, 1
      %p200 = por %p198, %p199
      %p202 = scmp.ne.s32.totalorder %s185, %s201
      %p203 = scmp.eq.s32.totalorder %s57, 0
      %p204 = por %p202, %p203
      %s205 = ssub.s32 %s58, %s70
      %s206 = ssub.s32 %s59, %s66
      %s207 = sor.u32 %s205, %s206
      %p208 = scmp.eq.s32.totalorder %s207, 0
      %s210 = sadd.s32 %s209, 1
      %s211 = scalar_select %p208, %s209, %s210
      %p214 = pneg %p208
      %p215 = scmp.eq.s32.totalorder %s51, 1
      %p216 = por %p214, %p215
      %p217 = scmp.ne.s32.totalorder %s209, %s212
      %p218 = scmp.eq.s32.totalorder %s51, 0
      %p219 = por %p217, %p218
      %p220 = scmp.ne.s32.totalorder %s209, %s212
      %p221 = scmp.eq.s32.totalorder %s56, 1
      %p222 = por %p220, %p221
      %p223 = scmp.ne.s32.totalorder %s212, %s213
      %p224 = scmp.eq.s32.totalorder %s56, 0
      %p225 = por %p223, %p224
      %p226 = scmp.ne.s32.totalorder %s212, %s213
      %p227 = scmp.eq.s32.totalorder %s57, 1
      %p228 = por %p226, %p227
      %p230 = scmp.ne.s32.totalorder %s213, %s229
      %p231 = scmp.eq.s32.totalorder %s57, 0
      %p232 = por %p230, %p231
      %s233 = ssub.s32 %s58, %s70
      %s234 = ssub.s32 %s59, %s66
      %s235 = sor.u32 %s233, %s234
      %p236 = scmp.eq.s32.totalorder %s235, 0
      %s238 = sadd.s32 %s237, 1
      %s239 = scalar_select %p236, %s237, %s238
      %p242 = pneg %p236
      %p243 = scmp.eq.s32.totalorder %s51, 1
      %p244 = por %p242, %p243
      %p245 = scmp.ne.s32.totalorder %s237, %s240
      %p246 = scmp.eq.s32.totalorder %s51, 0
      %p247 = por %p245, %p246
      %p248 = scmp.ne.s32.totalorder %s237, %s240
      %p249 = scmp.eq.s32.totalorder %s56, 1
      %p250 = por %p248, %p249
      %p251 = scmp.ne.s32.totalorder %s240, %s241
      %p252 = scmp.eq.s32.totalorder %s56, 0
      %p253 = por %p251, %p252
      %p254 = scmp.ne.s32.totalorder %s240, %s241
      %p255 = scmp.eq.s32.totalorder %s57, 1
      %p256 = por %p254, %p255
      %p258 = scmp.ne.s32.totalorder %s241, %s257
      %p259 = scmp.eq.s32.totalorder %s57, 0
      %p260 = por %p258, %p259
      %s261 = ssub.s32 %s58, %s70
      %p262 = scmp.eq.s32.totalorder %s261, 0
      %s264 = sadd.s32 %s263, 1
      %s265 = scalar_select %p262, %s263, %s264
      %p268 = pneg %p262
      %p269 = scmp.eq.s32.totalorder %s51, 1
      %p270 = por %p268, %p269
      %p271 = scmp.ne.s32.totalorder %s263, %s266
      %p272 = scmp.eq.s32.totalorder %s51, 0
      %p273 = por %p271, %p272
      %p274 = scmp.ne.s32.totalorder %s263, %s266
      %p275 = scmp.eq.s32.totalorder %s56, 1
      %p276 = por %p274, %p275
      %p277 = scmp.ne.s32.totalorder %s266, %s267
      %p278 = scmp.eq.s32.totalorder %s56, 0
      %p279 = por %p277, %p278
      %p280 = scmp.ne.s32.totalorder %s266, %s267
      %p281 = scmp.eq.s32.totalorder %s57, 1
      %p282 = por %p280, %p281
      %p284 = scmp.ne.s32.totalorder %s267, %s283
      %p285 = scmp.eq.s32.totalorder %s57, 0
      %p286 = por %p284, %p285
      %s288 = sadd.s32 %s287, 1
      %p291 = scmp.eq.s32.totalorder %s51, 1
      %p292 = scmp.ne.s32.totalorder %s287, %s289
      %p293 = scmp.eq.s32.totalorder %s51, 0
      %p294 = por %p292, %p293
      %p295 = scmp.ne.s32.totalorder %s287, %s289
      %p296 = scmp.eq.s32.totalorder %s56, 1
      %p297 = por %p295, %p296
      %p298 = scmp.ne.s32.totalorder %s289, %s290
      %p299 = scmp.eq.s32.totalorder %s56, 0
      %p300 = por %p298, %p299
      %p301 = scmp.ne.s32.totalorder %s289, %s290
      %p302 = scmp.eq.s32.totalorder %s57, 1
      %p303 = por %p301, %p302
      %p305 = scmp.ne.s32.totalorder %s290, %s304
      %p306 = scmp.eq.s32.totalorder %s57, 0
      %p307 = por %p305, %p306
      %s309 = sadd.s32 %s308, 1
      %p312 = scmp.eq.s32.totalorder %s51, 1
      %p313 = scmp.ne.s32.totalorder %s308, %s310
      %p314 = scmp.eq.s32.totalorder %s51, 0
      %p315 = por %p313, %p314
      %p316 = scmp.ne.s32.totalorder %s308, %s310
      %p317 = scmp.eq.s32.totalorder %s56, 1
      %p318 = por %p316, %p317
      %p319 = scmp.ne.s32.totalorder %s310, %s311
      %p320 = scmp.eq.s32.totalorder %s56, 0
      %p321 = por %p319, %p320
      %p322 = scmp.ne.s32.totalorder %s310, %s311
      %p323 = scmp.eq.s32.totalorder %s57, 1
      %p324 = por %p322, %p323
      %p326 = scmp.ne.s32.totalorder %s311, %s325
      %p327 = scmp.eq.s32.totalorder %s57, 0
      %p328 = por %p326, %p327
      %s330 = sadd.s32 %s329, 1
      %p333 = scmp.eq.s32.totalorder %s51, 1
      %p334 = scmp.ne.s32.totalorder %s329, %s331
      %p335 = scmp.eq.s32.totalorder %s51, 0
      %p336 = por %p334, %p335
      %p337 = scmp.ne.s32.totalorder %s329, %s331
      %p338 = scmp.eq.s32.totalorder %s56, 1
      %p339 = por %p337, %p338
      %p340 = scmp.ne.s32.totalorder %s331, %s332
      %p341 = scmp.eq.s32.totalorder %s56, 0
      %p342 = por %p340, %p341
      %p343 = scmp.ne.s32.totalorder %s331, %s332
      %p344 = scmp.eq.s32.totalorder %s57, 1
      %p345 = por %p343, %p344
      %p347 = scmp.ne.s32.totalorder %s332, %s346
      %p348 = scmp.eq.s32.totalorder %s57, 0
      %p349 = por %p347, %p348
      %s351 = sadd.s32 %s350, 1
      %p354 = scmp.eq.s32.totalorder %s51, 1
      %p355 = scmp.ne.s32.totalorder %s350, %s352
      %p356 = scmp.eq.s32.totalorder %s51, 0
      %p357 = por %p355, %p356
      %p358 = scmp.ne.s32.totalorder %s350, %s352
      %p359 = scmp.eq.s32.totalorder %s56, 1
      %p360 = por %p358, %p359
      %p361 = scmp.ne.s32.totalorder %s352, %s353
      %p362 = scmp.eq.s32.totalorder %s56, 0
      %p363 = por %p361, %p362
      %p364 = scmp.ne.s32.totalorder %s352, %s353
      %p365 = scmp.eq.s32.totalorder %s57, 1
      %p366 = por %p364, %p365
      %p368 = scmp.ne.s32.totalorder %s353, %s367
      %p369 = scmp.eq.s32.totalorder %s57, 0
      %p370 = por %p368, %p369
      %s372 = sadd.s32 %s371, 1
      %p375 = scmp.eq.s32.totalorder %s51, 1
      %p376 = scmp.ne.s32.totalorder %s371, %s373
      %p377 = scmp.eq.s32.totalorder %s51, 0
      %p378 = por %p376, %p377
      %p379 = scmp.ne.s32.totalorder %s371, %s373
      %p380 = scmp.eq.s32.totalorder %s56, 1
      %p381 = por %p379, %p380
      %p382 = scmp.ne.s32.totalorder %s373, %s374
      %p383 = scmp.eq.s32.totalorder %s56, 0
      %p384 = por %p382, %p383
      %p385 = scmp.ne.s32.totalorder %s373, %s374
      %p386 = scmp.eq.s32.totalorder %s57, 1
      %p387 = por %p385, %p386
      %p389 = scmp.ne.s32.totalorder %s374, %s388
      %p390 = scmp.eq.s32.totalorder %s57, 0
      %p391 = por %p389, %p390
      %s393 = sadd.s32 %s392, 1
      %p396 = scmp.eq.s32.totalorder %s51, 1
      %p397 = scmp.ne.s32.totalorder %s392, %s394
      %p398 = scmp.eq.s32.totalorder %s51, 0
      %p399 = por %p397, %p398
      %p400 = scmp.ne.s32.totalorder %s392, %s394
      %p401 = scmp.eq.s32.totalorder %s56, 1
      %p402 = por %p400, %p401
      %p403 = scmp.ne.s32.totalorder %s394, %s395
      %p404 = scmp.eq.s32.totalorder %s56, 0
      %p405 = por %p403, %p404
      %p406 = scmp.ne.s32.totalorder %s394, %s395
      %p407 = scmp.eq.s32.totalorder %s57, 1
      %p408 = por %p406, %p407
      %p410 = scmp.ne.s32.totalorder %s395, %s409
      %p411 = scmp.eq.s32.totalorder %s57, 0
      %p412 = por %p410, %p411
      %s414 = sadd.s32 %s413, 1
      %p417 = scmp.eq.s32.totalorder %s51, 1
      %p418 = scmp.ne.s32.totalorder %s413, %s415
      %p419 = scmp.eq.s32.totalorder %s51, 0
      %p420 = por %p418, %p419
      %p421 = scmp.ne.s32.totalorder %s413, %s415
      %p422 = scmp.eq.s32.totalorder %s56, 1
      %p423 = por %p421, %p422
      %p424 = scmp.ne.s32.totalorder %s415, %s416
      %p425 = scmp.eq.s32.totalorder %s56, 0
      %p426 = por %p424, %p425
      %p427 = scmp.ne.s32.totalorder %s415, %s416
      %p428 = scmp.eq.s32.totalorder %s57, 1
      %p429 = por %p427, %p428
      %p431 = scmp.ne.s32.totalorder %s416, %s430
      %p432 = scmp.eq.s32.totalorder %s57, 0
      %p433 = por %p431, %p432
      %s435 = sadd.s32 %s434, 1
      %p438 = scmp.eq.s32.totalorder %s51, 1
      %p439 = scmp.ne.s32.totalorder %s434, %s436
      %p440 = scmp.eq.s32.totalorder %s51, 0
      %p441 = por %p439, %p440
      %p442 = scmp.ne.s32.totalorder %s434, %s436
      %p443 = scmp.eq.s32.totalorder %s56, 1
      %p444 = por %p442, %p443
      %p445 = scmp.ne.s32.totalorder %s436, %s437
      %p446 = scmp.eq.s32.totalorder %s56, 0
      %p447 = por %p445, %p446
      %p448 = scmp.ne.s32.totalorder %s436, %s437
      %p449 = scmp.eq.s32.totalorder %s57, 1
      %p450 = por %p448, %p449
      %p452 = scmp.ne.s32.totalorder %s437, %s451
      %p453 = scmp.eq.s32.totalorder %s57, 0
      %p454 = por %p452, %p453
      %s456 = sadd.s32 %s455, 1
      %p459 = scmp.eq.s32.totalorder %s51, 1
      %p460 = scmp.ne.s32.totalorder %s455, %s457
      %p461 = scmp.eq.s32.totalorder %s51, 0
      %p462 = por %p460, %p461
      %p463 = scmp.ne.s32.totalorder %s455, %s457
      %p464 = scmp.eq.s32.totalorder %s56, 1
      %p465 = por %p463, %p464
      %p466 = scmp.ne.s32.totalorder %s457, %s458
      %p467 = scmp.eq.s32.totalorder %s56, 0
      %p468 = por %p466, %p467
      %p469 = scmp.ne.s32.totalorder %s457, %s458
      %p470 = scmp.eq.s32.totalorder %s57, 1
      %p471 = por %p469, %p470
      %p473 = scmp.ne.s32.totalorder %s458, %s472
      %p474 = scmp.eq.s32.totalorder %s57, 0
      %p475 = por %p473, %p474
      %s477 = sadd.s32 %s476, 1
      %p480 = scmp.eq.s32.totalorder %s51, 1
      %p481 = scmp.ne.s32.totalorder %s476, %s478
      %p482 = scmp.eq.s32.totalorder %s51, 0
      %p483 = por %p481, %p482
      %p484 = scmp.ne.s32.totalorder %s476, %s478
      %p485 = scmp.eq.s32.totalorder %s56, 1
      %p486 = por %p484, %p485
      %p487 = scmp.ne.s32.totalorder %s478, %s479
      %p488 = scmp.eq.s32.totalorder %s56, 0
      %p489 = por %p487, %p488
      %p490 = scmp.ne.s32.totalorder %s478, %s479
      %p491 = scmp.eq.s32.totalorder %s57, 1
      %p492 = por %p490, %p491
      %p494 = scmp.ne.s32.totalorder %s479, %s493
      %p495 = scmp.eq.s32.totalorder %s57, 0
      %p496 = por %p494, %p495
      %s498 = sadd.s32 %s497, 1
      %p501 = scmp.eq.s32.totalorder %s51, 1
      %p502 = scmp.ne.s32.totalorder %s497, %s499
      %p503 = scmp.eq.s32.totalorder %s51, 0
      %p504 = por %p502, %p503
      %p505 = scmp.ne.s32.totalorder %s497, %s499
      %p506 = scmp.eq.s32.totalorder %s56, 1
      %p507 = por %p505, %p506
      %p508 = scmp.ne.s32.totalorder %s499, %s500
      %p509 = scmp.eq.s32.totalorder %s56, 0
      %p510 = por %p508, %p509
      %p511 = scmp.ne.s32.totalorder %s499, %s500
      %p512 = scmp.eq.s32.totalorder %s57, 1
      %p513 = por %p511, %p512
      %p515 = scmp.ne.s32.totalorder %s500, %s514
      %p516 = scmp.eq.s32.totalorder %s57, 0
      %p517 = por %p515, %p516
      %s519 = sadd.s32 %s518, 1
      %p522 = scmp.eq.s32.totalorder %s51, 1
      %p523 = scmp.ne.s32.totalorder %s518, %s520
      %p524 = scmp.eq.s32.totalorder %s51, 0
      %p525 = por %p523, %p524
      %p526 = scmp.ne.s32.totalorder %s518, %s520
      %p527 = scmp.eq.s32.totalorder %s56, 1
      %p528 = por %p526, %p527
      %p529 = scmp.ne.s32.totalorder %s520, %s521
      %p530 = scmp.eq.s32.totalorder %s56, 0
      %p531 = por %p529, %p530
      %p532 = scmp.ne.s32.totalorder %s520, %s521
      %p533 = scmp.eq.s32.totalorder %s57, 1
      %p534 = por %p532, %p533
      %p536 = scmp.ne.s32.totalorder %s521, %s535
      %p537 = scmp.eq.s32.totalorder %s57, 0
      %p538 = por %p536, %p537
      %s540 = sadd.s32 %s539, 1
      %p543 = scmp.eq.s32.totalorder %s51, 1
      %p544 = scmp.ne.s32.totalorder %s539, %s541
      %p545 = scmp.eq.s32.totalorder %s51, 0
      %p546 = por %p544, %p545
      %p547 = scmp.ne.s32.totalorder %s539, %s541
      %p548 = scmp.eq.s32.totalorder %s56, 1
      %p549 = por %p547, %p548
      %p550 = scmp.ne.s32.totalorder %s541, %s542
      %p551 = scmp.eq.s32.totalorder %s56, 0
      %p552 = por %p550, %p551
      %p553 = scmp.ne.s32.totalorder %s541, %s542
      %p554 = scmp.eq.s32.totalorder %s57, 1
      %p555 = por %p553, %p554
      %p557 = scmp.ne.s32.totalorder %s542, %s556
      %p558 = scmp.eq.s32.totalorder %s57, 0
      %p559 = por %p557, %p558
      %s560 = ssub.s32 %s58, %s70
      %p561 = scmp.eq.s32.totalorder %s560, 0
      %s563 = sadd.s32 %s562, 1
      %s564 = scalar_select %p561, %s562, %s563
      %p567 = pneg %p561
      %p568 = scmp.eq.s32.totalorder %s51, 1
      %p569 = por %p567, %p568
      %p570 = scmp.ne.s32.totalorder %s562, %s565
      %p571 = scmp.eq.s32.totalorder %s51, 0
      %p572 = por %p570, %p571
      %p573 = scmp.ne.s32.totalorder %s562, %s565
      %p574 = scmp.eq.s32.totalorder %s56, 1
      %p575 = por %p573, %p574
      %p576 = scmp.ne.s32.totalorder %s565, %s566
      %p577 = scmp.eq.s32.totalorder %s56, 0
      %p578 = por %p576, %p577
      %p579 = scmp.ne.s32.totalorder %s565, %s566
      %p580 = scmp.eq.s32.totalorder %s57, 1
      %p581 = por %p579, %p580
      %p583 = scmp.ne.s32.totalorder %s566, %s582
      %p584 = scmp.eq.s32.totalorder %s57, 0
      %p585 = por %p583, %p584
      %p586 = scmp.le.s32.totalorder 1, %s51
      %p587 = scmp.lt.s32.totalorder %s51, 3
      %p588 = pnand %p586, %p587
      %p589 = pneg %p588
      // Predicated region
      $region9: #{tpu_custom_call.1} parent=5 // pred_check
        _
      $region10: #{tpu_custom_call.1} parent=5 // pred_check_branch
        %591 = sbr.rel (%p588) target = $region12
      $region11: #{tpu_custom_call.1} parent=5 // pred_region
        %s592 = ssub.s32 %s51, 1
        // Predicated region
        $region13: #{tpu_custom_call.1} parent=11 // pred_check
          %p593 = pneg %p300
        $region14: #{tpu_custom_call.1} parent=11 // pred_check_branch
          %595 = sbr.rel (%p593) target = $region16
        $region15: #{tpu_custom_call.1} parent=11 // pred_region
          %s597 = ssub.s32 512, 512
          %598 = vsyncadd [#allocation16], %s597
          %s599 = sshll.u32 [#allocation17], 4
          %s600 = int_to_ptr.vmem [resolvable:$true] %s599
          %605 = dma.hbm_to_vmem [thread:$0]  %s8, 512, %s600, [#allocation16], 128, 128, 8
        $region16: #{tpu_custom_call.1} parent=11 // pred_fallthru
          _
        // Predicated region
        $region17: #{tpu_custom_call.1} parent=11 // pred_check
          %p606 = pneg %p321
        $region18: #{tpu_custom_call.1} parent=11 // pred_check_branch
          %608 = sbr.rel (%p606) target = $region20
        $region19: #{tpu_custom_call.1} parent=11 // pred_region
          %s610 = ssub.s32 512, 512
          %611 = vsyncadd [#allocation19], %s610
          %s612 = sshll.u32 [#allocation18], 4
          %s613 = int_to_ptr.vmem [resolvable:$true] %s612
          %618 = dma.hbm_to_vmem [thread:$0]  %s9, 512, %s613, [#allocation19], 128, 128, 8
        $region20: #{tpu_custom_call.1} parent=11 // pred_fallthru
          _
        // Predicated region
        $region21: #{tpu_custom_call.1} parent=11 // pred_check
          %p619 = pneg %p342
        $region22: #{tpu_custom_call.1} parent=11 // pred_check_branch
          %621 = sbr.rel (%p619) target = $region24
        $region23: #{tpu_custom_call.1} parent=11 // pred_region
          %s623 = ssub.s32 512, 512
          %624 = vsyncadd [#allocation19], %s623
          %s625 = sshll.u32 [#allocation20], 4
          %s626 = int_to_ptr.vmem [resolvable:$true] %s625
          %631 = dma.hbm_to_vmem [thread:$0]  %s10, 512, %s626, [#allocation19], 128, 128, 8
        $region24: #{tpu_custom_call.1} parent=11 // pred_fallthru
          _
        // Predicated region
        $region25: #{tpu_custom_call.1} parent=11 // pred_check
          %p632 = pneg %p363
        $region26: #{tpu_custom_call.1} parent=11 // pred_check_branch
          %634 = sbr.rel (%p632) target = $region28
        $region27: #{tpu_custom_call.1} parent=11 // pred_region
          %s636 = ssub.s32 512, 512
          %637 = vsyncadd [#allocation22], %s636
          %s638 = sshll.u32 [#allocation21], 4
          %s639 = int_to_ptr.vmem [resolvable:$true] %s638
          %644 = dma.hbm_to_vmem [thread:$0]  %s11, 512, %s639, [#allocation22], 128, 128, 8
        $region28: #{tpu_custom_call.1} parent=11 // pred_fallthru
          _
        // Predicated region
        $region29: #{tpu_custom_call.1} parent=11 // pred_check
          %p645 = pneg %p384
        $region30: #{tpu_custom_call.1} parent=11 // pred_check_branch
          %647 = sbr.rel (%p645) target = $region32
        $region31: #{tpu_custom_call.1} parent=11 // pred_region
          %s649 = ssub.s32 128, 128
          %650 = vsyncadd [#allocation22], %s649
          %s651 = sshll.u32 [#allocation23], 4
          %s652 = int_to_ptr.vmem [resolvable:$true] %s651
          %657 = dma.hbm_to_vmem [thread:$0]  %s12, 128, %s652, [#allocation22], 64, 64, 4
        $region32: #{tpu_custom_call.1} parent=11 // pred_fallthru
          _
        // Predicated region
        $region33: #{tpu_custom_call.1} parent=11 // pred_check
          %p658 = pneg %p405
        $region34: #{tpu_custom_call.1} parent=11 // pred_check_branch
          %660 = sbr.rel (%p658) target = $region36
        $region35: #{tpu_custom_call.1} parent=11 // pred_region
          %s662 = ssub.s32 256, 256
          %663 = vsyncadd [#allocation25], %s662
          %s664 = sshll.u32 [#allocation24], 4
          %s665 = int_to_ptr.vmem [resolvable:$true] %s664
          %670 = dma.hbm_to_vmem [thread:$0]  %s13, 256, %s665, [#allocation25], 128, 128, 8
        $region36: #{tpu_custom_call.1} parent=11 // pred_fallthru
          _
        // Predicated region
        $region37: #{tpu_custom_call.1} parent=11 // pred_check
          %p671 = pneg %p426
        $region38: #{tpu_custom_call.1} parent=11 // pred_check_branch
          %673 = sbr.rel (%p671) target = $region40
        $region39: #{tpu_custom_call.1} parent=11 // pred_region
          %s675 = ssub.s32 512, 512
          %676 = vsyncadd [#allocation25], %s675
          %s677 = sshll.u32 [#allocation26], 4
          %s678 = int_to_ptr.vmem [resolvable:$true] %s677
          %683 = dma.hbm_to_vmem [thread:$0]  %s14, 512, %s678, [#allocation25], 128, 128, 8
        $region40: #{tpu_custom_call.1} parent=11 // pred_fallthru
          _
        // Predicated region
        $region41: #{tpu_custom_call.1} parent=11 // pred_check
          %p684 = pneg %p447
        $region42: #{tpu_custom_call.1} parent=11 // pred_check_branch
          %686 = sbr.rel (%p684) target = $region44
        $region43: #{tpu_custom_call.1} parent=11 // pred_region
          %s688 = ssub.s32 256, 256
          %689 = vsyncadd [#allocation28], %s688
          %s690 = sshll.u32 [#allocation27], 4
          %s691 = int_to_ptr.vmem [resolvable:$true] %s690
          %696 = dma.hbm_to_vmem [thread:$0]  %s15, 256, %s691, [#allocation28], 128, 128, 8
        $region44: #{tpu_custom_call.1} parent=11 // pred_fallthru
          _
        // Predicated region
        $region45: #{tpu_custom_call.1} parent=11 // pred_check
          %p697 = pneg %p468
        $region46: #{tpu_custom_call.1} parent=11 // pred_check_branch
          %699 = sbr.rel (%p697) target = $region48
        $region47: #{tpu_custom_call.1} parent=11 // pred_region
          %s701 = ssub.s32 16, 16
          %702 = vsyncadd [#allocation28], %s701
          %s704 = sshll.u32 [#allocation29], 4
          %s705 = int_to_ptr.vmem [resolvable:$true] %s704
          %707 = dma.hbm_to_vmem [thread:$0]  %s16, 16, %s705, [#allocation28]
        $region48: #{tpu_custom_call.1} parent=11 // pred_fallthru
          _
        // Predicated region
        $region49: #{tpu_custom_call.1} parent=11 // pred_check
          %p708 = pneg %p489
        $region50: #{tpu_custom_call.1} parent=11 // pred_check_branch
          %710 = sbr.rel (%p708) target = $region52
        $region51: #{tpu_custom_call.1} parent=11 // pred_region
          %s712 = ssub.s32 1024, 1024
          %713 = vsyncadd [#allocation31], %s712
          %s714 = sshll.u32 [#allocation30], 4
          %s715 = int_to_ptr.vmem [resolvable:$true] %s714
          %720 = dma.hbm_to_vmem [thread:$0]  %s17, 1024, %s715, [#allocation31], 128, 128, 8
        $region52: #{tpu_custom_call.1} parent=11 // pred_fallthru
          _
        // Predicated region
        $region53: #{tpu_custom_call.1} parent=11 // pred_check
          %p721 = pneg %p510
        $region54: #{tpu_custom_call.1} parent=11 // pred_check_branch
          %723 = sbr.rel (%p721) target = $region56
        $region55: #{tpu_custom_call.1} parent=11 // pred_region
          %s725 = ssub.s32 16, 16
          %726 = vsyncadd [#allocation31], %s725
          %s728 = sshll.u32 [#allocation32], 4
          %s729 = int_to_ptr.vmem [resolvable:$true] %s728
          %731 = dma.hbm_to_vmem [thread:$0]  %s18, 16, %s729, [#allocation31]
        $region56: #{tpu_custom_call.1} parent=11 // pred_fallthru
          _
        // Predicated region
        $region57: #{tpu_custom_call.1} parent=11 // pred_check
          %p732 = pneg %p531
        $region58: #{tpu_custom_call.1} parent=11 // pred_check_branch
          %734 = sbr.rel (%p732) target = $region60
        $region59: #{tpu_custom_call.1} parent=11 // pred_region
          %s736 = ssub.s32 2048, 2048
          %737 = vsyncadd [#allocation34], %s736
          %s738 = sshll.u32 [#allocation33], 4
          %s739 = int_to_ptr.vmem [resolvable:$true] %s738
          %744 = dma.hbm_to_vmem [thread:$0]  %s19, 2048, %s739, [#allocation34], 512, 512, 32
        $region60: #{tpu_custom_call.1} parent=11 // pred_fallthru
          _
        // Predicated region
        $region61: #{tpu_custom_call.1} parent=11 // pred_check
          %p745 = pneg %p552
        $region62: #{tpu_custom_call.1} parent=11 // pred_check_branch
          %747 = sbr.rel (%p745) target = $region64
        $region63: #{tpu_custom_call.1} parent=11 // pred_region
          %s749 = ssub.s32 64, 64
          %750 = vsyncadd [#allocation34], %s749
          %s752 = sshll.u32 [#allocation35], 4
          %s753 = int_to_ptr.vmem [resolvable:$true] %s752
          %755 = dma.hbm_to_vmem [thread:$0]  %s20, 64, %s753, [#allocation34]
        $region64: #{tpu_custom_call.1} parent=11 // pred_fallthru
          _
      $region12: #{tpu_custom_call.1} parent=5 // pred_fallthru
        _
      %p756 = scmp.lt.s32.totalorder %s51, 2
      // Predicated region
      $region65: #{tpu_custom_call.1} parent=5 // pred_check
        %p757 = pneg %p756
      $region66: #{tpu_custom_call.1} parent=5 // pred_check_branch
        %759 = sbr.rel (%p757) target = $region68
      $region67: #{tpu_custom_call.1} parent=5 // pred_region
        // Predicated region
        $region69: #{tpu_custom_call.1} parent=67 // pred_check
          %p760 = pneg %p83
        $region70: #{tpu_custom_call.1} parent=67 // pred_check_branch
          %762 = sbr.rel (%p760) target = $region72
        $region71: #{tpu_custom_call.1} parent=67 // pred_region
          %s763 = sand.u32 %s73, 1
          %s764 = scalar_lea.sflag [#allocation4], %s763
          %s765 = sand.u32 %s73, 1
          %s766 = smul.addr %s765, 8
          %s767 = scalar_lea.vmem [#allocation3], %s766
          %s769 = ssub.s32 128, 128
          %770 = vsyncadd %s764, %s769
          %s771 = smul.addr %s58, 128
          %s772 = scalar_lea.hbm %s0, %s771
          %s774 = sshll.u32 %s767, 4
          %s775 = int_to_ptr.vmem [resolvable:$true] %s774
          %777 = dma.hbm_to_vmem [thread:$0]  %s772, 128, %s775, %s764
        $region72: #{tpu_custom_call.1} parent=67 // pred_fallthru
          _
        // Predicated region
        $region73: #{tpu_custom_call.1} parent=67 // pred_check
          %p778 = pneg %p109
        $region74: #{tpu_custom_call.1} parent=67 // pred_check_branch
          %780 = sbr.rel (%p778) target = $region76
        $region75: #{tpu_custom_call.1} parent=67 // pred_region
          %s781 = sand.u32 %s51, 1
          %s782 = scalar_lea.sflag [#allocation7], %s781
          %s783 = sand.u32 %s99, 1
          %s784 = smul.addr %s783, 8
          %s785 = scalar_lea.vmem [#allocation6], %s784
          %s787 = ssub.s32 128, 128
          %788 = vsyncadd %s782, %s787
          %s789 = smul.addr %s58, 128
          %s790 = scalar_lea.hbm %s1, %s789
          %s792 = sshll.u32 %s785, 4
          %s793 = int_to_ptr.vmem [resolvable:$true] %s792
          %795 = dma.hbm_to_vmem [thread:$0]  %s790, 128, %s793, %s782
        $region76: #{tpu_custom_call.1} parent=67 // pred_fallthru
          _
        // Predicated region
        $region77: #{tpu_custom_call.1} parent=67 // pred_check
          %p796 = pneg %p135
        $region78: #{tpu_custom_call.1} parent=67 // pred_check_branch
          %798 = sbr.rel (%p796) target = $region80
        $region79: #{tpu_custom_call.1} parent=67 // pred_region
          %s799 = sand.u32 %s51, 1
          %s800 = scalar_lea.sflag [#allocation7], %s799
          %s801 = sand.u32 %s125, 1
          %s802 = smul.addr %s801, 8
          %s803 = scalar_lea.vmem [#allocation8], %s802
          %s805 = ssub.s32 128, 128
          %806 = vsyncadd %s800, %s805
          %s807 = smul.addr %s58, 128
          %s808 = scalar_lea.hbm %s2, %s807
          %s810 = sshll.u32 %s803, 4
          %s811 = int_to_ptr.vmem [resolvable:$true] %s810
          %813 = dma.hbm_to_vmem [thread:$0]  %s808, 128, %s811, %s800
        $region80: #{tpu_custom_call.1} parent=67 // pred_fallthru
          _
        // Predicated region
        $region81: #{tpu_custom_call.1} parent=67 // pred_check
          %p814 = pneg %p163
        $region82: #{tpu_custom_call.1} parent=67 // pred_check_branch
          %816 = sbr.rel (%p814) target = $region84
        $region83: #{tpu_custom_call.1} parent=67 // pred_region
          %s817 = sand.u32 %s51, 1
          %s818 = scalar_lea.sflag [#allocation10], %s817
          %s819 = sand.u32 %s153, 1
          %s820 = smul.addr %s819, 32
          %s821 = scalar_lea.vmem [#allocation9], %s820
          %s823 = ssub.s32 512, 512
          %824 = vsyncadd %s818, %s823
          %s825 = smul.addr %s58, 4
          %s826 = sadd.s32 %s59, %s825
          %s827 = smul.addr %s826, 128
          %s828 = scalar_lea.hbm %s3, %s827
          %s829 = sshll.u32 %s821, 4
          %s830 = int_to_ptr.vmem [resolvable:$true] %s829
          %835 = dma.hbm_to_vmem [thread:$0]  %s828, 512, %s830, %s818, 128, 128, 8
        $region84: #{tpu_custom_call.1} parent=67 // pred_fallthru
          _
        // Predicated region
        $region85: #{tpu_custom_call.1} parent=67 // pred_check
          %p836 = pneg %p191
        $region86: #{tpu_custom_call.1} parent=67 // pred_check_branch
          %838 = sbr.rel (%p836) target = $region88
        $region87: #{tpu_custom_call.1} parent=67 // pred_region
          %s839 = sand.u32 %s51, 1
          %s840 = scalar_lea.sflag [#allocation10], %s839
          %s841 = sand.u32 %s181, 1
          %s842 = smul.addr %s841, 4
          %s843 = scalar_lea.vmem [#allocation11], %s842
          %s845 = ssub.s32 64, 64
          %846 = vsyncadd %s840, %s845
          %s847 = sadd.s32 %s59, %s58
          %s848 = smul.addr %s847, 64
          %s849 = scalar_lea.hbm %s4, %s848
          %s851 = sshll.u32 %s843, 4
          %s852 = int_to_ptr.vmem [resolvable:$true] %s851
          %854 = dma.hbm_to_vmem [thread:$0]  %s849, 64, %s852, %s840
        $region88: #{tpu_custom_call.1} parent=67 // pred_fallthru
          _
        // Predicated region
        $region89: #{tpu_custom_call.1} parent=67 // pred_check
          %p855 = pneg %p219
        $region90: #{tpu_custom_call.1} parent=67 // pred_check_branch
          %857 = sbr.rel (%p855) target = $region92
        $region91: #{tpu_custom_call.1} parent=67 // pred_region
          %s858 = sand.u32 %s51, 1
          %s859 = scalar_lea.sflag [#allocation13], %s858
          %s860 = sand.u32 %s209, 1
          %s861 = scalar_lea.vmem [#allocation12], %s860
          %s863 = ssub.s32 16, 16
          %864 = vsyncadd %s859, %s863
          %s865 = sadd.s32 %s59, %s58
          %s866 = smul.addr %s865, 16
          %s867 = scalar_lea.hbm %s5, %s866
          %s869 = sshll.u32 %s861, 4
          %s870 = int_to_ptr.vmem [resolvable:$true] %s869
          %872 = dma.hbm_to_vmem [thread:$0]  %s867, 16, %s870, %s859
        $region92: #{tpu_custom_call.1} parent=67 // pred_fallthru
          _
        // Predicated region
        $region93: #{tpu_custom_call.1} parent=67 // pred_check
          %p873 = pneg %p247
        $region94: #{tpu_custom_call.1} parent=67 // pred_check_branch
          %875 = sbr.rel (%p873) target = $region96
        $region95: #{tpu_custom_call.1} parent=67 // pred_region
          %s876 = sand.u32 %s51, 1
          %s877 = scalar_lea.sflag [#allocation13], %s876
          %s878 = sand.u32 %s237, 1
          %s879 = scalar_lea.vmem [#allocation14], %s878
          %s881 = ssub.s32 16, 16
          %882 = vsyncadd %s877, %s881
          %s883 = sadd.s32 %s59, %s58
          %s884 = smul.addr %s883, 16
          %s885 = scalar_lea.hbm %s6, %s884
          %s887 = sshll.u32 %s879, 4
          %s888 = int_to_ptr.vmem [resolvable:$true] %s887
          %890 = dma.hbm_to_vmem [thread:$0]  %s885, 16, %s888, %s877
        $region96: #{tpu_custom_call.1} parent=67 // pred_fallthru
          _
        // Predicated region
        $region97: #{tpu_custom_call.1} parent=67 // pred_check
          %p891 = pneg %p273
        $region98: #{tpu_custom_call.1} parent=67 // pred_check_branch
          %893 = sbr.rel (%p891) target = $region100
        $region99: #{tpu_custom_call.1} parent=67 // pred_region
          %s894 = sand.u32 %s51, 1
          %s895 = scalar_lea.sflag [#allocation16], %s894
          %s896 = sand.u32 %s263, 1
          %s897 = scalar_lea.vmem [#allocation15], %s896
          %s899 = ssub.s32 16, 16
          %900 = vsyncadd %s895, %s899
          %s901 = smul.addr %s58, 16
          %s902 = scalar_lea.hbm %s7, %s901
          %s904 = sshll.u32 %s897, 4
          %s905 = int_to_ptr.vmem [resolvable:$true] %s904
          %907 = dma.hbm_to_vmem [thread:$0]  %s902, 16, %s905, %s895
        $region100: #{tpu_custom_call.1} parent=67 // pred_fallthru
          _
      $region68: #{tpu_custom_call.1} parent=5 // pred_fallthru
        _
      %p908 = scmp.le.s32.totalorder 1, %s51
      %p909 = scmp.lt.s32.totalorder %s51, 3
      %p910 = pnand %p908, %p909
      %p911 = pneg %p910
      // Predicated region
      $region101: #{tpu_custom_call.1} parent=5 // pred_check
        _
      $region102: #{tpu_custom_call.1} parent=5 // pred_check_branch
        %913 = sbr.rel (%p910) target = $region104
      $region103: #{tpu_custom_call.1} parent=5 // pred_region
        %s914 = ssub.s32 %s51, 1
        %s915 = sand.u32 %s76, 1
        %s916 = scalar_lea.sflag [#allocation4], %s915
        %s917 = sand.u32 %s76, 1
        %s918 = smul.addr %s917, 8
        %s919 = scalar_lea.vmem [#allocation3], %s918
        // Predicated region
        $region105: #{tpu_custom_call.1} parent=103 // pred_check
          %p920 = pneg %p89
        $region106: #{tpu_custom_call.1} parent=103 // pred_check_branch
          %922 = sbr.rel (%p920) target = $region108
        $region107: #{tpu_custom_call.1} parent=103 // pred_region
          %923 = dma.done %s916, 128
        $region108: #{tpu_custom_call.1} parent=103 // pred_fallthru
          _
        %s924 = sand.u32 %s56, 1
        %s925 = scalar_lea.sflag [#allocation7], %s924
        %s926 = sand.u32 %s102, 1
        %s927 = smul.addr %s926, 8
        %s928 = scalar_lea.vmem [#allocation6], %s927
        // Predicated region
        $region109: #{tpu_custom_call.1} parent=103 // pred_check
          %p929 = pneg %p115
        $region110: #{tpu_custom_call.1} parent=103 // pred_check_branch
          %931 = sbr.rel (%p929) target = $region112
        $region111: #{tpu_custom_call.1} parent=103 // pred_region
          %932 = dma.done %s925, 128
        $region112: #{tpu_custom_call.1} parent=103 // pred_fallthru
          _
        %s933 = sand.u32 %s56, 1
        %s934 = scalar_lea.sflag [#allocation7], %s933
        %s935 = sand.u32 %s128, 1
        %s936 = smul.addr %s935, 8
        %s937 = scalar_lea.vmem [#allocation8], %s936
        // Predicated region
        $region113: #{tpu_custom_call.1} parent=103 // pred_check
          %p938 = pneg %p141
        $region114: #{tpu_custom_call.1} parent=103 // pred_check_branch
          %940 = sbr.rel (%p938) target = $region116
        $region115: #{tpu_custom_call.1} parent=103 // pred_region
          %941 = dma.done %s934, 128
        $region116: #{tpu_custom_call.1} parent=103 // pred_fallthru
          _
        %s942 = sand.u32 %s56, 1
        %s943 = scalar_lea.sflag [#allocation10], %s942
        %s944 = sand.u32 %s156, 1
        %s945 = smul.addr %s944, 32
        %s946 = scalar_lea.vmem [#allocation9], %s945
        // Predicated region
        $region117: #{tpu_custom_call.1} parent=103 // pred_check
          %p947 = pneg %p169
        $region118: #{tpu_custom_call.1} parent=103 // pred_check_branch
          %949 = sbr.rel (%p947) target = $region120
        $region119: #{tpu_custom_call.1} parent=103 // pred_region
          %950 = dma.done %s943, 512
        $region120: #{tpu_custom_call.1} parent=103 // pred_fallthru
          _
        %s951 = sand.u32 %s56, 1
        %s952 = scalar_lea.sflag [#allocation10], %s951
        %s953 = sand.u32 %s184, 1
        %s954 = smul.addr %s953, 4
        %s955 = scalar_lea.vmem [#allocation11], %s954
        // Predicated region
        $region121: #{tpu_custom_call.1} parent=103 // pred_check
          %p956 = pneg %p197
        $region122: #{tpu_custom_call.1} parent=103 // pred_check_branch
          %958 = sbr.rel (%p956) target = $region124
        $region123: #{tpu_custom_call.1} parent=103 // pred_region
          %959 = dma.done %s952, 64
        $region124: #{tpu_custom_call.1} parent=103 // pred_fallthru
          _
        %s960 = sand.u32 %s56, 1
        %s961 = scalar_lea.sflag [#allocation13], %s960
        %s962 = sand.u32 %s212, 1
        %s963 = scalar_lea.vmem [#allocation12], %s962
        // Predicated region
        $region125: #{tpu_custom_call.1} parent=103 // pred_check
          %p964 = pneg %p225
        $region126: #{tpu_custom_call.1} parent=103 // pred_check_branch
          %966 = sbr.rel (%p964) target = $region128
        $region127: #{tpu_custom_call.1} parent=103 // pred_region
          %967 = dma.done %s961, 16
        $region128: #{tpu_custom_call.1} parent=103 // pred_fallthru
          _
        %s968 = sand.u32 %s56, 1
        %s969 = scalar_lea.sflag [#allocation13], %s968
        %s970 = sand.u32 %s240, 1
        %s971 = scalar_lea.vmem [#allocation14], %s970
        // Predicated region
        $region129: #{tpu_custom_call.1} parent=103 // pred_check
          %p972 = pneg %p253
        $region130: #{tpu_custom_call.1} parent=103 // pred_check_branch
          %974 = sbr.rel (%p972) target = $region132
        $region131: #{tpu_custom_call.1} parent=103 // pred_region
          %975 = dma.done %s969, 16
        $region132: #{tpu_custom_call.1} parent=103 // pred_fallthru
          _
        %s976 = sand.u32 %s56, 1
        %s977 = scalar_lea.sflag [#allocation16], %s976
        %s978 = sand.u32 %s266, 1
        %s979 = scalar_lea.vmem [#allocation15], %s978
        // Predicated region
        $region133: #{tpu_custom_call.1} parent=103 // pred_check
          %p980 = pneg %p279
        $region134: #{tpu_custom_call.1} parent=103 // pred_check_branch
          %982 = sbr.rel (%p980) target = $region136
        $region135: #{tpu_custom_call.1} parent=103 // pred_region
          %983 = dma.done %s977, 16
        $region136: #{tpu_custom_call.1} parent=103 // pred_fallthru
          _
        // Predicated region
        $region137: #{tpu_custom_call.1} parent=103 // pred_check
          %p984 = pneg %p300
        $region138: #{tpu_custom_call.1} parent=103 // pred_check_branch
          %986 = sbr.rel (%p984) target = $region140
        $region139: #{tpu_custom_call.1} parent=103 // pred_region
          %987 = dma.done [#allocation16], 512
        $region140: #{tpu_custom_call.1} parent=103 // pred_fallthru
          _
        // Predicated region
        $region141: #{tpu_custom_call.1} parent=103 // pred_check
          %p988 = pneg %p321
        $region142: #{tpu_custom_call.1} parent=103 // pred_check_branch
          %990 = sbr.rel (%p988) target = $region144
        $region143: #{tpu_custom_call.1} parent=103 // pred_region
          %991 = dma.done [#allocation19], 512
        $region144: #{tpu_custom_call.1} parent=103 // pred_fallthru
          _
        // Predicated region
        $region145: #{tpu_custom_call.1} parent=103 // pred_check
          %p992 = pneg %p342
        $region146: #{tpu_custom_call.1} parent=103 // pred_check_branch
          %994 = sbr.rel (%p992) target = $region148
        $region147: #{tpu_custom_call.1} parent=103 // pred_region
          %995 = dma.done [#allocation19], 512
        $region148: #{tpu_custom_call.1} parent=103 // pred_fallthru
          _
        // Predicated region
        $region149: #{tpu_custom_call.1} parent=103 // pred_check
          %p996 = pneg %p363
        $region150: #{tpu_custom_call.1} parent=103 // pred_check_branch
          %998 = sbr.rel (%p996) target = $region152
        $region151: #{tpu_custom_call.1} parent=103 // pred_region
          %999 = dma.done [#allocation22], 512
        $region152: #{tpu_custom_call.1} parent=103 // pred_fallthru
          _
        // Predicated region
        $region153: #{tpu_custom_call.1} parent=103 // pred_check
          %p1000 = pneg %p384
        $region154: #{tpu_custom_call.1} parent=103 // pred_check_branch
          %1002 = sbr.rel (%p1000) target = $region156
        $region155: #{tpu_custom_call.1} parent=103 // pred_region
          %1003 = dma.done [#allocation22], 128
        $region156: #{tpu_custom_call.1} parent=103 // pred_fallthru
          _
        // Predicated region
        $region157: #{tpu_custom_call.1} parent=103 // pred_check
          %p1004 = pneg %p405
        $region158: #{tpu_custom_call.1} parent=103 // pred_check_branch
          %1006 = sbr.rel (%p1004) target = $region160
        $region159: #{tpu_custom_call.1} parent=103 // pred_region
          %1007 = dma.done [#allocation25], 256
        $region160: #{tpu_custom_call.1} parent=103 // pred_fallthru
          _
        // Predicated region
        $region161: #{tpu_custom_call.1} parent=103 // pred_check
          %p1008 = pneg %p426
        $region162: #{tpu_custom_call.1} parent=103 // pred_check_branch
          %1010 = sbr.rel (%p1008) target = $region164
        $region163: #{tpu_custom_call.1} parent=103 // pred_region
          %1011 = dma.done [#allocation25], 512
        $region164: #{tpu_custom_call.1} parent=103 // pred_fallthru
          _
        // Predicated region
        $region165: #{tpu_custom_call.1} parent=103 // pred_check
          %p1012 = pneg %p447
        $region166: #{tpu_custom_call.1} parent=103 // pred_check_branch
          %1014 = sbr.rel (%p1012) target = $region168
        $region167: #{tpu_custom_call.1} parent=103 // pred_region
          %1015 = dma.done [#allocation28], 256
        $region168: #{tpu_custom_call.1} parent=103 // pred_fallthru
          _
        // Predicated region
        $region169: #{tpu_custom_call.1} parent=103 // pred_check
          %p1016 = pneg %p468
        $region170: #{tpu_custom_call.1} parent=103 // pred_check_branch
          %1018 = sbr.rel (%p1016) target = $region172
        $region171: #{tpu_custom_call.1} parent=103 // pred_region
          %1019 = dma.done [#allocation28], 16
        $region172: #{tpu_custom_call.1} parent=103 // pred_fallthru
          _
        // Predicated region
        $region173: #{tpu_custom_call.1} parent=103 // pred_check
          %p1020 = pneg %p489
        $region174: #{tpu_custom_call.1} parent=103 // pred_check_branch
          %1022 = sbr.rel (%p1020) target = $region176
        $region175: #{tpu_custom_call.1} parent=103 // pred_region
          %1023 = dma.done [#allocation31], 1024
        $region176: #{tpu_custom_call.1} parent=103 // pred_fallthru
          _
        // Predicated region
        $region177: #{tpu_custom_call.1} parent=103 // pred_check
          %p1024 = pneg %p510
        $region178: #{tpu_custom_call.1} parent=103 // pred_check_branch
          %1026 = sbr.rel (%p1024) target = $region180
        $region179: #{tpu_custom_call.1} parent=103 // pred_region
          %1027 = dma.done [#allocation31], 16
        $region180: #{tpu_custom_call.1} parent=103 // pred_fallthru
          _
        // Predicated region
        $region181: #{tpu_custom_call.1} parent=103 // pred_check
          %p1028 = pneg %p531
        $region182: #{tpu_custom_call.1} parent=103 // pred_check_branch
          %1030 = sbr.rel (%p1028) target = $region184
        $region183: #{tpu_custom_call.1} parent=103 // pred_region
          %1031 = dma.done [#allocation34], 2048
        $region184: #{tpu_custom_call.1} parent=103 // pred_fallthru
          _
        // Predicated region
        $region185: #{tpu_custom_call.1} parent=103 // pred_check
          %p1032 = pneg %p552
        $region186: #{tpu_custom_call.1} parent=103 // pred_check_branch
          %1034 = sbr.rel (%p1032) target = $region188
        $region187: #{tpu_custom_call.1} parent=103 // pred_region
          %1035 = dma.done [#allocation34], 64
        $region188: #{tpu_custom_call.1} parent=103 // pred_fallthru
          _
        %s1036 = sand.u32 %s76, 1
        %s1037 = scalar_lea.sflag [#allocation4], %s1036
        %s1038 = sand.u32 %s76, 1
        %s1039 = smul.addr %s1038, 8
        %s1040 = scalar_lea.vmem [#allocation3], %s1039
        %p1041 = pneg %p89
        %p1042 = pneg %p86
        %s1043 = sand.u32 %s56, 1
        %s1044 = scalar_lea.sflag [#allocation7], %s1043
        %s1045 = sand.u32 %s102, 1
        %s1046 = smul.addr %s1045, 8
        %s1047 = scalar_lea.vmem [#allocation6], %s1046
        %p1048 = pneg %p115
        %p1049 = pneg %p112
        %s1050 = sand.u32 %s56, 1
        %s1051 = scalar_lea.sflag [#allocation7], %s1050
        %s1052 = sand.u32 %s128, 1
        %s1053 = smul.addr %s1052, 8
        %s1054 = scalar_lea.vmem [#allocation8], %s1053
        %p1055 = pneg %p141
        %p1056 = pneg %p138
        %s1057 = sand.u32 %s56, 1
        %s1058 = scalar_lea.sflag [#allocation10], %s1057
        %s1059 = sand.u32 %s156, 1
        %s1060 = smul.addr %s1059, 32
        %s1061 = scalar_lea.vmem [#allocation9], %s1060
        %p1062 = pneg %p169
        %p1063 = pneg %p166
        %s1064 = sand.u32 %s56, 1
        %s1065 = scalar_lea.sflag [#allocation10], %s1064
        %s1066 = sand.u32 %s184, 1
        %s1067 = smul.addr %s1066, 4
        %s1068 = scalar_lea.vmem [#allocation11], %s1067
        %p1069 = pneg %p197
        %p1070 = pneg %p194
        %s1071 = sand.u32 %s56, 1
        %s1072 = scalar_lea.sflag [#allocation13], %s1071
        %s1073 = sand.u32 %s212, 1
        %s1074 = scalar_lea.vmem [#allocation12], %s1073
        %p1075 = pneg %p225
        %p1076 = pneg %p222
        %s1077 = sand.u32 %s56, 1
        %s1078 = scalar_lea.sflag [#allocation13], %s1077
        %s1079 = sand.u32 %s240, 1
        %s1080 = scalar_lea.vmem [#allocation14], %s1079
        %p1081 = pneg %p253
        %p1082 = pneg %p250
        %s1083 = sand.u32 %s56, 1
        %s1084 = scalar_lea.sflag [#allocation16], %s1083
        %s1085 = sand.u32 %s266, 1
        %s1086 = scalar_lea.vmem [#allocation15], %s1085
        %p1087 = pneg %p279
        %p1088 = pneg %p276
        %p1089 = pneg %p300
        %p1090 = pneg %p297
        %p1091 = pneg %p321
        %p1092 = pneg %p318
        %p1093 = pneg %p342
        %p1094 = pneg %p339
        %p1095 = pneg %p363
        %p1096 = pneg %p360
        %p1097 = pneg %p384
        %p1098 = pneg %p381
        %p1099 = pneg %p405
        %p1100 = pneg %p402
        %p1101 = pneg %p426
        %p1102 = pneg %p423
        %p1103 = pneg %p447
        %p1104 = pneg %p444
        %p1105 = pneg %p468
        %p1106 = pneg %p465
        %p1107 = pneg %p489
        %p1108 = pneg %p486
        %p1109 = pneg %p510
        %p1110 = pneg %p507
        %p1111 = pneg %p531
        %p1112 = pneg %p528
        %p1113 = pneg %p552
        %p1114 = pneg %p549
        %p1115 = pneg %p578
        %p1116 = pneg %p575
        %s1117 = sand.u32 %s565, 1
        %s1118 = scalar_lea.sflag [#allocation5], %s1117
        %s1119 = sand.u32 %s565, 1
        %s1120 = smul.addr %s1119, 4
        %s1121 = scalar_lea.vmem [#allocation36], %s1120
        %p1123 = scmp.eq.s32.totalorder %s61, 0
        // Predicated region
        $region189: #{tpu_custom_call.1} parent=103 // pred_check
          %p1124 = pneg %p1123
        $region190: #{tpu_custom_call.1} parent=103 // pred_check_branch
          %1126 = sbr.rel (%p1124) target = $region192
        $region191: #{tpu_custom_call.1} parent=103 // pred_region
          %vm1127 = vcmask 130048
          %1128 = vst.msk [vmem:[#allocation2] sm:$0xff] %vm1127, 0.0
        $region192: #{tpu_custom_call.1} parent=103 // pred_fallthru
          _
        %v1129 = vld [vmem:[%s919] sm:$0xff]
        %v1130 = vld [vmem:[%s946] sm:$0xff]
        %v1131 = vld [vmem:[%s946 + $0x8] sm:$0xff]
        %v1132 = vld [vmem:[%s946 + $0x10] sm:$0xff]
        %v1133 = vld [vmem:[%s946 + $0x18] sm:$0xff]
        %v1134 = vld [vmem:[%s928] sm:$0xff]
        %v1135 = vld [vmem:[%s955] sm:$0x7]
        %v1136 = vld [vmem:[%s937] sm:$0xff]
        %v1137 = vld [vmem:[%s963] sm:$0x1]
        %v1138 = vld [vmem:[%s971] sm:$0x1]
        %vm1139 = vcmask 23552
        %v1141 = vsel %vm1139, %v1134, 0
        %vm1143 = vcmask 1042432
        %v1145 = vsel %vm1143, %v1135, 0
        %1147 = vmatprep.subr.mxu0 0.0
        %1148 = vmatpush1.msra.mxu0 %v1145
        %1149 = vmatprep.subr.mxu0 0.0
        %1150 = vmatpush1.msra.mxu0 0.0
        %1151 = vmatprep.subr.mxu0 0.0
        %1152 = vmatpush1.msra.mxu0 0.0
        %1153 = vmatprep.subr.mxu0 0.0
        %1154 = vmatpush1.msra.mxu0 0.0
        %1155 = vmatprep.subr.mxu0 0.0
        %1156 = vmatpush1.msra.mxu0 0.0
        %1157 = vmatprep.subr.mxu0 0.0
        %1158 = vmatpush1.msra.mxu0 0.0
        %1159 = vmatprep.subr.mxu0 0.0
        %1160 = vmatpush1.msra.mxu0 0.0
        %1161 = vmatprep.subr.mxu0 0.0
        %1162 = vmatpush1.msra.mxu0 0.0
        %1163 = vmatprep.subr.mxu0 0.0
        %1164 = vmatpush1.msra.mxu0 0.0
        %1165 = vmatprep.subr.mxu0 0.0
        %1166 = vmatpush1.msra.mxu0 0.0
        %1167 = vmatprep.subr.mxu0 0.0
        %1168 = vmatpush1.msra.mxu0 0.0
        %1169 = vmatprep.subr.mxu0 0.0
        %1170 = vmatpush1.msra.mxu0 0.0
        %1171 = vmatprep.subr.mxu0 0.0
        %1172 = vmatpush1.msra.mxu0 0.0
        %1173 = vmatprep.subr.mxu0 0.0
        %1174 = vmatpush1.msra.mxu0 0.0
        %1175 = vmatprep.subr.mxu0 0.0
        %1176 = vmatpush1.msra.mxu0 0.0
        %1177 = vmatprep.subr.mxu0 0.0
        %1178 = vmatpush1.msra.mxu0 0.0
        %1179 = vmatprep.subr.mxu0 0.0
        %1180 = vmatpush1.msra.mxu0 0.0
        %1181 = vmatprep.subr.mxu0 0.0
        %1182 = vmatpush1.msra.mxu0 0.0
        %1183 = vmatprep.subr.mxu0 0.0
        %1184 = vmatpush1.msra.mxu0 0.0
        %1185 = vmatprep.subr.mxu0 0.0
        %1186 = vmatpush1.msra.mxu0 0.0
        %1187 = vmatprep.subr.mxu0 0.0
        %1188 = vmatpush1.msra.mxu0 0.0
        %1189 = vmatprep.subr.mxu0 0.0
        %1190 = vmatpush1.msra.mxu0 0.0
        %1191 = vmatprep.subr.mxu0 0.0
        %1192 = vmatpush1.msra.mxu0 0.0
        %1193 = vmatprep.subr.mxu0 0.0
        %1194 = vmatpush1.msra.mxu0 0.0
        %1195 = vmatprep.subr.mxu0 0.0
        %1196 = vmatpush1.msra.mxu0 0.0
        %1197 = vmatprep.subr.mxu0 0.0
        %1198 = vmatpush1.msra.mxu0 0.0
        %1199 = vmatprep.subr.mxu0 0.0
        %1200 = vmatpush1.msra.mxu0 0.0
        %1201 = vmatprep.subr.mxu0 0.0
        %1202 = vmatpush1.msra.mxu0 0.0
        %1203 = vmatprep.subr.mxu0 0.0
        %1204 = vmatpush1.msra.mxu0 0.0
        %1205 = vmatprep.subr.mxu0 0.0
        %1206 = vmatpush1.msra.mxu0 0.0
        %1207 = vmatprep.subr.mxu0 0.0
        %1208 = vmatpush1.msra.mxu0 0.0
        %1209 = vmatprep.subr.mxu0 0.0
        %1210 = vmatpush1.msra.mxu0 0.0
        %1211 = vmatprep.mubr.f32.mxu0 0.0
        %1212 = vmatmul.mubr.f32.gmra.mrb[0].mxu0 %v1141
        %v1213 = vpop.f32.mrb[0].mxu0
        %v1214 = vadd.f32 0.0, %v1213
        %v1215 = vpop.f32.mrb[0].mxu0
        %1216 = vdwg.mxu0
        %1218 = vset.pattern.permute.xlu0 0
        %1219 = vperm.xlu0 %1218, %v1136
        %v1220 = vpop.permute.xlu0 %1219
        %v1223 = vlaneseq
        %v1224 = vshrl.u32 %v1223, 7
        %v1225 = vsub.s32 0, %v1224
        %v1226 = vrot.slane %v1137, %v1225
        %v1228 = vadd.f32 %v1220, %v1226
        %v1229 = vmul.f32 %v1214, 2.0
        %v1230 = vsub.f32 %v1228, %v1229
        %v1231 = vmax.f32 %v1230, 0.0
        %v1232 = vld [vmem:[#allocation17] sm:$0xff]
        %v1233 = vld [vmem:[#allocation17 + $0x8] sm:$0xff]
        %v1234 = vld [vmem:[#allocation17 + $0x10] sm:$0xff]
        %v1235 = vld [vmem:[#allocation17 + $0x18] sm:$0xff]
        %vm1236 = vcmask 261120
        %v1238 = vsel %vm1236, %v1129, 0
        %1240 = vmatprep.subr.mxu0 0.0
        %1241 = vmatpush1.msra.mxu0 %v1232
        %1242 = vmatprep.subr.mxu0 0.0
        %1243 = vmatpush1.msra.mxu0 %v1233
        %1244 = vmatprep.subr.mxu0 0.0
        %1245 = vmatpush1.msra.mxu0 %v1234
        %1246 = vmatprep.subr.mxu0 0.0
        %1247 = vmatpush1.msra.mxu0 %v1235
        %1248 = vmatprep.subr.mxu0 0.0
        %1249 = vmatpush1.msra.mxu0 0.0
        %1250 = vmatprep.subr.mxu0 0.0
        %1251 = vmatpush1.msra.mxu0 0.0
        %1252 = vmatprep.subr.mxu0 0.0
        %1253 = vmatpush1.msra.mxu0 0.0
        %1254 = vmatprep.subr.mxu0 0.0
        %1255 = vmatpush1.msra.mxu0 0.0
        %1256 = vmatprep.subr.mxu0 0.0
        %1257 = vmatpush1.msra.mxu0 0.0
        %1258 = vmatprep.subr.mxu0 0.0
        %1259 = vmatpush1.msra.mxu0 0.0
        %1260 = vmatprep.subr.mxu0 0.0
        %1261 = vmatpush1.msra.mxu0 0.0
        %1262 = vmatprep.subr.mxu0 0.0
        %1263 = vmatpush1.msra.mxu0 0.0
        %1264 = vmatprep.subr.mxu0 0.0
        %1265 = vmatpush1.msra.mxu0 0.0
        %1266 = vmatprep.subr.mxu0 0.0
        %1267 = vmatpush1.msra.mxu0 0.0
        %1268 = vmatprep.subr.mxu0 0.0
        %1269 = vmatpush1.msra.mxu0 0.0
        %1270 = vmatprep.subr.mxu0 0.0
        %1271 = vmatpush1.msra.mxu0 0.0
        %1272 = vmatprep.subr.mxu0 0.0
        %1273 = vmatpush1.msra.mxu0 0.0
        %1274 = vmatprep.subr.mxu0 0.0
        %1275 = vmatpush1.msra.mxu0 0.0
        %1276 = vmatprep.subr.mxu0 0.0
        %1277 = vmatpush1.msra.mxu0 0.0
        %1278 = vmatprep.subr.mxu0 0.0
        %1279 = vmatpush1.msra.mxu0 0.0
        %1280 = vmatprep.subr.mxu0 0.0
        %1281 = vmatpush1.msra.mxu0 0.0
        %1282 = vmatprep.subr.mxu0 0.0
        %1283 = vmatpush1.msra.mxu0 0.0
        %1284 = vmatprep.subr.mxu0 0.0
        %1285 = vmatpush1.msra.mxu0 0.0
        %1286 = vmatprep.subr.mxu0 0.0
        %1287 = vmatpush1.msra.mxu0 0.0
        %1288 = vmatprep.subr.mxu0 0.0
        %1289 = vmatpush1.msra.mxu0 0.0
        %1290 = vmatprep.subr.mxu0 0.0
        %1291 = vmatpush1.msra.mxu0 0.0
        %1292 = vmatprep.subr.mxu0 0.0
        %1293 = vmatpush1.msra.mxu0 0.0
        %1294 = vmatprep.subr.mxu0 0.0
        %1295 = vmatpush1.msra.mxu0 0.0
        %1296 = vmatprep.subr.mxu0 0.0
        %1297 = vmatpush1.msra.mxu0 0.0
        %1298 = vmatprep.subr.mxu0 0.0
        %1299 = vmatpush1.msra.mxu0 0.0
        %1300 = vmatprep.subr.mxu0 0.0
        %1301 = vmatpush1.msra.mxu0 0.0
        %1302 = vmatprep.subr.mxu0 0.0
        %1303 = vmatpush1.msra.mxu0 0.0
        %1304 = vmatprep.mubr.f32.mxu0 0.0
        %1305 = vmatmul.mubr.f32.gmra.mrb[0].mxu0 %v1238
        %v1306 = vpop.f32.mrb[0].mxu0
        %v1307 = vadd.f32 0.0, %v1306
        %v1308 = vpop.f32.mrb[0].mxu0
        %1309 = vdwg.mxu0
        %v1310 = vld [vmem:[#allocation18] sm:$0xff]
        %v1311 = vld [vmem:[#allocation18 + $0x8] sm:$0xff]
        %v1312 = vld [vmem:[#allocation18 + $0x10] sm:$0xff]
        %v1313 = vld [vmem:[#allocation18 + $0x18] sm:$0xff]
        %v1315 = vsel %vm1236, %v1310, 0
        %v1318 = vsel %vm1236, %v1311, 0
        %v1321 = vsel %vm1236, %v1312, 0
        %v1324 = vsel %vm1236, %v1313, 0
        %1326 = vmatprep.subr.mxu0 0.0
        %1327 = vmatpush1.msra.mxu0 %v1130
        %1328 = vmatprep.subr.mxu0 0.0
        %1329 = vmatpush1.msra.mxu0 %v1131
        %1330 = vmatprep.subr.mxu0 0.0
        %1331 = vmatpush1.msra.mxu0 %v1132
        %1332 = vmatprep.subr.mxu0 0.0
        %1333 = vmatpush1.msra.mxu0 %v1133
        %1334 = vmatprep.subr.mxu0 0.0
        %1335 = vmatpush1.msra.mxu0 0.0
        %1336 = vmatprep.subr.mxu0 0.0
        %1337 = vmatpush1.msra.mxu0 0.0
        %1338 = vmatprep.subr.mxu0 0.0
        %1339 = vmatpush1.msra.mxu0 0.0
        %1340 = vmatprep.subr.mxu0 0.0
        %1341 = vmatpush1.msra.mxu0 0.0
        %1342 = vmatprep.subr.mxu0 0.0
        %1343 = vmatpush1.msra.mxu0 0.0
        %1344 = vmatprep.subr.mxu0 0.0
        %1345 = vmatpush1.msra.mxu0 0.0
        %1346 = vmatprep.subr.mxu0 0.0
        %1347 = vmatpush1.msra.mxu0 0.0
        %1348 = vmatprep.subr.mxu0 0.0
        %1349 = vmatpush1.msra.mxu0 0.0
        %1350 = vmatprep.subr.mxu0 0.0
        %1351 = vmatpush1.msra.mxu0 0.0
        %1352 = vmatprep.subr.mxu0 0.0
        %1353 = vmatpush1.msra.mxu0 0.0
        %1354 = vmatprep.subr.mxu0 0.0
        %1355 = vmatpush1.msra.mxu0 0.0
        %1356 = vmatprep.subr.mxu0 0.0
        %1357 = vmatpush1.msra.mxu0 0.0
        %1358 = vmatprep.subr.mxu0 0.0
        %1359 = vmatpush1.msra.mxu0 0.0
        %1360 = vmatprep.subr.mxu0 0.0
        %1361 = vmatpush1.msra.mxu0 0.0
        %1362 = vmatprep.subr.mxu0 0.0
        %1363 = vmatpush1.msra.mxu0 0.0
        %1364 = vmatprep.subr.mxu0 0.0
        %1365 = vmatpush1.msra.mxu0 0.0
        %1366 = vmatprep.subr.mxu0 0.0
        %1367 = vmatpush1.msra.mxu0 0.0
        %1368 = vmatprep.subr.mxu0 0.0
        %1369 = vmatpush1.msra.mxu0 0.0
        %1370 = vmatprep.subr.mxu0 0.0
        %1371 = vmatpush1.msra.mxu0 0.0
        %1372 = vmatprep.subr.mxu0 0.0
        %1373 = vmatpush1.msra.mxu0 0.0
        %1374 = vmatprep.subr.mxu0 0.0
        %1375 = vmatpush1.msra.mxu0 0.0
        %1376 = vmatprep.subr.mxu0 0.0
        %1377 = vmatpush1.msra.mxu0 0.0
        %1378 = vmatprep.subr.mxu0 0.0
        %1379 = vmatpush1.msra.mxu0 0.0
        %1380 = vmatprep.subr.mxu0 0.0
        %1381 = vmatpush1.msra.mxu0 0.0
        %1382 = vmatprep.subr.mxu0 0.0
        %1383 = vmatpush1.msra.mxu0 0.0
        %1384 = vmatprep.subr.mxu0 0.0
        %1385 = vmatpush1.msra.mxu0 0.0
        %1386 = vmatprep.subr.mxu0 0.0
        %1387 = vmatpush1.msra.mxu0 0.0
        %1388 = vmatprep.subr.mxu0 0.0
        %1389 = vmatpush1.msra.mxu0 0.0
        %1390 = vmatprep.mubr.f32.mxu0 0.0
        %1391 = vmatmul.mubr.f32.gmra.mrb[0].mxu0 %v1315
        %v1392 = vpop.f32.mrb[0].mxu0
        %v1393 = vadd.f32 0.0, %v1392
        %v1394 = vpop.f32.mrb[0].mxu0
        %1395 = vmatprep.mubr.f32.mxu0 0.0
        %1396 = vmatmul.mubr.f32.gmra.mrb[0].mxu0 %v1318
        %v1397 = vpop.f32.mrb[0].mxu0
        %v1398 = vadd.f32 0.0, %v1397
        %v1399 = vpop.f32.mrb[0].mxu0
        %1400 = vmatprep.mubr.f32.mxu0 0.0
        %1401 = vmatmul.mubr.f32.gmra.mrb[0].mxu0 %v1321
        %v1402 = vpop.f32.mrb[0].mxu0
        %v1403 = vadd.f32 0.0, %v1402
        %v1404 = vpop.f32.mrb[0].mxu0
        %1405 = vmatprep.mubr.f32.mxu0 0.0
        %1406 = vmatmul.mubr.f32.gmra.mrb[0].mxu0 %v1324
        %v1407 = vpop.f32.mrb[0].mxu0
        %v1408 = vadd.f32 0.0, %v1407
        %v1409 = vpop.f32.mrb[0].mxu0
        %1410 = vdwg.mxu0
        %v1411 = vlaneseq
        %v1412 = vshrl.u32 %v1411, 7
        %v1413 = vsub.s32 0, %v1412
        %v1414 = vrot.slane %v1307, %v1413
        %1416 = vbcast.lane.b32.xlu0 %v1414, 256
        %v1417 = vpop.permute.xlu0 %1416
        %s1419 = sor.u32 256, 8
        %1420 = vbcast.lane.b32.xlu0 %v1414, %s1419
        %v1421 = vpop.permute.xlu0 %1420
        %s1423 = sor.u32 256, 16
        %1424 = vbcast.lane.b32.xlu0 %v1414, %s1423
        %v1425 = vpop.permute.xlu0 %1424
        %s1427 = sor.u32 256, 24
        %1428 = vbcast.lane.b32.xlu0 %v1414, %s1427
        %v1429 = vpop.permute.xlu0 %1428
        %v1430 = vlaneseq
        %v1431 = vshrl.u32 %v1430, 7
        %v1432 = vsub.s32 1, %v1431
        %v1433 = vrot.slane %v1307, %v1432
        %1435 = vbcast.lane.b32.xlu0 %v1433, 256
        %v1436 = vpop.permute.xlu0 %1435
        %s1438 = sor.u32 256, 8
        %1439 = vbcast.lane.b32.xlu0 %v1433, %s1438
        %v1440 = vpop.permute.xlu0 %1439
        %s1442 = sor.u32 256, 16
        %1443 = vbcast.lane.b32.xlu0 %v1433, %s1442
        %v1444 = vpop.permute.xlu0 %1443
        %s1446 = sor.u32 256, 24
        %1447 = vbcast.lane.b32.xlu0 %v1433, %s1446
        %v1448 = vpop.permute.xlu0 %1447
        %v1449 = vlaneseq
        %v1450 = vshrl.u32 %v1449, 7
        %v1451 = vsub.s32 2, %v1450
        %v1452 = vrot.slane %v1307, %v1451
        %1454 = vbcast.lane.b32.xlu0 %v1452, 256
        %v1455 = vpop.permute.xlu0 %1454
        %s1457 = sor.u32 256, 8
        %1458 = vbcast.lane.b32.xlu0 %v1452, %s1457
        %v1459 = vpop.permute.xlu0 %1458
        %s1461 = sor.u32 256, 16
        %1462 = vbcast.lane.b32.xlu0 %v1452, %s1461
        %v1463 = vpop.permute.xlu0 %1462
        %s1465 = sor.u32 256, 24
        %1466 = vbcast.lane.b32.xlu0 %v1452, %s1465
        %v1467 = vpop.permute.xlu0 %1466
        %v1468 = vlaneseq
        %v1469 = vshrl.u32 %v1468, 7
        %v1470 = vsub.s32 3, %v1469
        %v1471 = vrot.slane %v1307, %v1470
        %1473 = vbcast.lane.b32.xlu0 %v1471, 256
        %v1474 = vpop.permute.xlu0 %1473
        %s1476 = sor.u32 256, 8
        %1477 = vbcast.lane.b32.xlu0 %v1471, %s1476
        %v1478 = vpop.permute.xlu0 %1477
        %s1480 = sor.u32 256, 16
        %1481 = vbcast.lane.b32.xlu0 %v1471, %s1480
        %v1482 = vpop.permute.xlu0 %1481
        %s1484 = sor.u32 256, 24
        %1485 = vbcast.lane.b32.xlu0 %v1471, %s1484
        %v1486 = vpop.permute.xlu0 %1485
        %v1487 = vlaneseq
        %v1488 = vshrl.u32 %v1487, 7
        %v1489 = vsub.s32 4, %v1488
        %v1490 = vrot.slane %v1307, %v1489
        %1492 = vbcast.lane.b32.xlu0 %v1490, 256
        %v1493 = vpop.permute.xlu0 %1492
        %s1495 = sor.u32 256, 8
        %1496 = vbcast.lane.b32.xlu0 %v1490, %s1495
        %v1497 = vpop.permute.xlu0 %1496
        %s1499 = sor.u32 256, 16
        %1500 = vbcast.lane.b32.xlu0 %v1490, %s1499
        %v1501 = vpop.permute.xlu0 %1500
        %s1503 = sor.u32 256, 24
        %1504 = vbcast.lane.b32.xlu0 %v1490, %s1503
        %v1505 = vpop.permute.xlu0 %1504
        %v1506 = vlaneseq
        %v1507 = vshrl.u32 %v1506, 7
        %v1508 = vsub.s32 5, %v1507
        %v1509 = vrot.slane %v1307, %v1508
        %1511 = vbcast.lane.b32.xlu0 %v1509, 256
        %v1512 = vpop.permute.xlu0 %1511
        %s1514 = sor.u32 256, 8
        %1515 = vbcast.lane.b32.xlu0 %v1509, %s1514
        %v1516 = vpop.permute.xlu0 %1515
        %s1518 = sor.u32 256, 16
        %1519 = vbcast.lane.b32.xlu0 %v1509, %s1518
        %v1520 = vpop.permute.xlu0 %1519
        %s1522 = sor.u32 256, 24
        %1523 = vbcast.lane.b32.xlu0 %v1509, %s1522
        %v1524 = vpop.permute.xlu0 %1523
        %v1525 = vlaneseq
        %v1526 = vshrl.u32 %v1525, 7
        %v1527 = vsub.s32 6, %v1526
        %v1528 = vrot.slane %v1307, %v1527
        %1530 = vbcast.lane.b32.xlu0 %v1528, 256
        %v1531 = vpop.permute.xlu0 %1530
        %s1533 = sor.u32 256, 8
        %1534 = vbcast.lane.b32.xlu0 %v1528, %s1533
        %v1535 = vpop.permute.xlu0 %1534
        %s1537 = sor.u32 256, 16
        %1538 = vbcast.lane.b32.xlu0 %v1528, %s1537
        %v1539 = vpop.permute.xlu0 %1538
        %s1541 = sor.u32 256, 24
        %1542 = vbcast.lane.b32.xlu0 %v1528, %s1541
        %v1543 = vpop.permute.xlu0 %1542
        %v1544 = vlaneseq
        %v1545 = vshrl.u32 %v1544, 7
        %v1546 = vsub.s32 7, %v1545
        %v1547 = vrot.slane %v1307, %v1546
        %1549 = vbcast.lane.b32.xlu0 %v1547, 256
        %v1550 = vpop.permute.xlu0 %1549
        %s1552 = sor.u32 256, 8
        %1553 = vbcast.lane.b32.xlu0 %v1547, %s1552
        %v1554 = vpop.permute.xlu0 %1553
        %s1556 = sor.u32 256, 16
        %1557 = vbcast.lane.b32.xlu0 %v1547, %s1556
        %v1558 = vpop.permute.xlu0 %1557
        %s1560 = sor.u32 256, 24
        %1561 = vbcast.lane.b32.xlu0 %v1547, %s1560
        %v1562 = vpop.permute.xlu0 %1561
        %v1563 = vadd.f32 %v1417, %v1393
        %v1564 = vadd.f32 %v1421, %v1398
        %v1565 = vadd.f32 %v1425, %v1403
        %v1566 = vadd.f32 %v1429, %v1408
        %v1567 = vadd.f32 %v1436, %v1393
        %v1568 = vadd.f32 %v1440, %v1398
        %v1569 = vadd.f32 %v1444, %v1403
        %v1570 = vadd.f32 %v1448, %v1408
        %v1571 = vadd.f32 %v1455, %v1393
        %v1572 = vadd.f32 %v1459, %v1398
        %v1573 = vadd.f32 %v1463, %v1403
        %v1574 = vadd.f32 %v1467, %v1408
        %v1575 = vadd.f32 %v1474, %v1393
        %v1576 = vadd.f32 %v1478, %v1398
        %v1577 = vadd.f32 %v1482, %v1403
        %v1578 = vadd.f32 %v1486, %v1408
        %v1579 = vadd.f32 %v1493, %v1393
        %v1580 = vadd.f32 %v1497, %v1398
        %v1581 = vadd.f32 %v1501, %v1403
        %v1582 = vadd.f32 %v1505, %v1408
        %v1583 = vadd.f32 %v1512, %v1393
        %v1584 = vadd.f32 %v1516, %v1398
        %v1585 = vadd.f32 %v1520, %v1403
        %v1586 = vadd.f32 %v1524, %v1408
        %v1587 = vadd.f32 %v1531, %v1393
        %v1588 = vadd.f32 %v1535, %v1398
        %v1589 = vadd.f32 %v1539, %v1403
        %v1590 = vadd.f32 %v1543, %v1408
        %v1591 = vadd.f32 %v1550, %v1393
        %v1592 = vadd.f32 %v1554, %v1398
        %v1593 = vadd.f32 %v1558, %v1403
        %v1594 = vadd.f32 %v1562, %v1408
        %v1596 = vcombine.high %v1231, %v1231
        %v1598 = vunpack.c.l.s4 1966171168
        %v1599 = vunpack.c.0.s8 %v1598
        %v1600 = vlaneseq
        %v1601 = vshrl.u32 %v1600, 7
        %v1602 = vsub.s32 %v1599, %v1601
        %v1603 = vrot.slane %v1231, %v1602
        %v1605 = vunpack.c.l.s4 1966171168
        %v1606 = vunpack.c.0.s8 %v1605
        %v1607 = vlaneseq
        %v1608 = vshrl.u32 %v1607, 7
        %v1609 = vsub.s32 %v1606, %v1608
        %v1610 = vrot.slane %v1596, %v1609
        %v1611 = vcombine.high %v1603, %v1603
        %v1612 = vcombine.high %v1610, %v1610
        %v1614 = vunpack.c.l.s4 1966171168
        %v1615 = vunpack.c.0.s8 %v1614
        %v1616 = vlaneseq
        %v1617 = vshrl.u32 %v1616, 7
        %v1618 = vsub.s32 %v1615, %v1617
        %v1619 = vrot.slane %v1603, %v1618
        %v1621 = vunpack.c.l.s4 1966171168
        %v1622 = vunpack.c.0.s8 %v1621
        %v1623 = vlaneseq
        %v1624 = vshrl.u32 %v1623, 7
        %v1625 = vsub.s32 %v1622, %v1624
        %v1626 = vrot.slane %v1610, %v1625
        %v1628 = vunpack.c.l.s4 1966171168
        %v1629 = vunpack.c.0.s8 %v1628
        %v1630 = vlaneseq
        %v1631 = vshrl.u32 %v1630, 7
        %v1632 = vsub.s32 %v1629, %v1631
        %v1633 = vrot.slane %v1611, %v1632
        %v1635 = vunpack.c.l.s4 1966171168
        %v1636 = vunpack.c.0.s8 %v1635
        %v1637 = vlaneseq
        %v1638 = vshrl.u32 %v1637, 7
        %v1639 = vsub.s32 %v1636, %v1638
        %v1640 = vrot.slane %v1612, %v1639
        %v1641 = vcombine.high %v1619, %v1619
        %v1642 = vcombine.high %v1626, %v1626
        %v1643 = vcombine.high %v1633, %v1633
        %v1644 = vcombine.high %v1640, %v1640
        %v1645 = vld [vmem:[#allocation20] sm:$0xff]
        %v1646 = vld [vmem:[#allocation20 + $0x8] sm:$0xff]
        %v1647 = vld [vmem:[#allocation20 + $0x10] sm:$0xff]
        %v1648 = vld [vmem:[#allocation20 + $0x18] sm:$0xff]
        %v1649 = vlaneseq
        %v1650 = vshrl.u32 %v1649, 7
        %v1651 = vsub.s32 0, %v1650
        %v1652 = vrot.slane %v1619, %v1651
        %v1653 = vlaneseq
        %v1654 = vshrl.u32 %v1653, 7
        %v1655 = vsub.s32 0, %v1654
        %v1656 = vrot.slane %v1633, %v1655
        %v1657 = vlaneseq
        %v1658 = vshrl.u32 %v1657, 7
        %v1659 = vsub.s32 0, %v1658
        %v1660 = vrot.slane %v1641, %v1659
        %v1661 = vlaneseq
        %v1662 = vshrl.u32 %v1661, 7
        %v1663 = vsub.s32 0, %v1662
        %v1664 = vrot.slane %v1643, %v1663
        %v1665 = vlaneseq
        %v1666 = vshrl.u32 %v1665, 7
        %v1667 = vsub.s32 0, %v1666
        %v1668 = vrot.slane %v1626, %v1667
        %v1669 = vlaneseq
        %v1670 = vshrl.u32 %v1669, 7
        %v1671 = vsub.s32 0, %v1670
        %v1672 = vrot.slane %v1640, %v1671
        %v1673 = vlaneseq
        %v1674 = vshrl.u32 %v1673, 7
        %v1675 = vsub.s32 0, %v1674
        %v1676 = vrot.slane %v1642, %v1675
        %v1677 = vlaneseq
        %v1678 = vshrl.u32 %v1677, 7
        %v1679 = vsub.s32 0, %v1678
        %v1680 = vrot.slane %v1644, %v1679
        %1690 = vset.pattern.permute.xlu0 0
        %1691 = vperm.xlu0 %1690, %v1645
        %v1692 = vpop.permute.xlu0 %1691
        %1695 = vset.pattern.permute.xlu0 0
        %1696 = vperm.xlu0 %1695, %v1646
        %v1697 = vpop.permute.xlu0 %1696
        %1700 = vset.pattern.permute.xlu0 0
        %1701 = vperm.xlu0 %1700, %v1647
        %v1702 = vpop.permute.xlu0 %1701
        %1705 = vset.pattern.permute.xlu0 0
        %1706 = vperm.xlu0 %1705, %v1648
        %v1707 = vpop.permute.xlu0 %1706
        %v1709 = vmul.f32 %v1652, %v1692
        %v1710 = vmul.f32 %v1652, %v1697
        %v1711 = vmul.f32 %v1652, %v1702
        %v1712 = vmul.f32 %v1652, %v1707
        %v1713 = vmul.f32 %v1656, %v1692
        %v1714 = vmul.f32 %v1656, %v1697
        %v1715 = vmul.f32 %v1656, %v1702
        %v1716 = vmul.f32 %v1656, %v1707
        %v1717 = vmul.f32 %v1660, %v1692
        %v1718 = vmul.f32 %v1660, %v1697
        %v1719 = vmul.f32 %v1660, %v1702
        %v1720 = vmul.f32 %v1660, %v1707
        %v1721 = vmul.f32 %v1664, %v1692
        %v1722 = vmul.f32 %v1664, %v1697
        %v1723 = vmul.f32 %v1664, %v1702
        %v1724 = vmul.f32 %v1664, %v1707
        %v1725 = vmul.f32 %v1668, %v1692
        %v1726 = vmul.f32 %v1668, %v1697
        %v1727 = vmul.f32 %v1668, %v1702
        %v1728 = vmul.f32 %v1668, %v1707
        %v1729 = vmul.f32 %v1672, %v1692
        %v1730 = vmul.f32 %v1672, %v1697
        %v1731 = vmul.f32 %v1672, %v1702
        %v1732 = vmul.f32 %v1672, %v1707
        %v1733 = vmul.f32 %v1676, %v1692
        %v1734 = vmul.f32 %v1676, %v1697
        %v1735 = vmul.f32 %v1676, %v1702
        %v1736 = vmul.f32 %v1676, %v1707
        %v1737 = vmul.f32 %v1680, %v1692
        %v1738 = vmul.f32 %v1680, %v1697
        %v1739 = vmul.f32 %v1680, %v1702
        %v1740 = vmul.f32 %v1680, %v1707
        %v1741 = vadd.f32 %v1563, %v1709
        %v1742 = vadd.f32 %v1564, %v1710
        %v1743 = vadd.f32 %v1565, %v1711
        %v1744 = vadd.f32 %v1566, %v1712
        %v1745 = vadd.f32 %v1567, %v1713
        %v1746 = vadd.f32 %v1568, %v1714
        %v1747 = vadd.f32 %v1569, %v1715
        %v1748 = vadd.f32 %v1570, %v1716
        %v1749 = vadd.f32 %v1571, %v1717
        %v1750 = vadd.f32 %v1572, %v1718
        %v1751 = vadd.f32 %v1573, %v1719
        %v1752 = vadd.f32 %v1574, %v1720
        %v1753 = vadd.f32 %v1575, %v1721
        %v1754 = vadd.f32 %v1576, %v1722
        %v1755 = vadd.f32 %v1577, %v1723
        %v1756 = vadd.f32 %v1578, %v1724
        %v1757 = vadd.f32 %v1579, %v1725
        %v1758 = vadd.f32 %v1580, %v1726
        %v1759 = vadd.f32 %v1581, %v1727
        %v1760 = vadd.f32 %v1582, %v1728
        %v1761 = vadd.f32 %v1583, %v1729
        %v1762 = vadd.f32 %v1584, %v1730
        %v1763 = vadd.f32 %v1585, %v1731
        %v1764 = vadd.f32 %v1586, %v1732
        %v1765 = vadd.f32 %v1587, %v1733
        %v1766 = vadd.f32 %v1588, %v1734
        %v1767 = vadd.f32 %v1589, %v1735
        %v1768 = vadd.f32 %v1590, %v1736
        %v1769 = vadd.f32 %v1591, %v1737
        %v1770 = vadd.f32 %v1592, %v1738
        %v1771 = vadd.f32 %v1593, %v1739
        %v1772 = vadd.f32 %v1594, %v1740
        %v1773 = vld [vmem:[#allocation21] sm:$0xff]
        %v1774 = vld [vmem:[#allocation21 + $0x8] sm:$0xff]
        %v1775 = vld [vmem:[#allocation21 + $0x10] sm:$0xff]
        %v1776 = vld [vmem:[#allocation21 + $0x18] sm:$0xff]
        %1778 = vset.pattern.permute.xlu0 0
        %1779 = vperm.xlu0 %1778, %v1773
        %v1780 = vpop.permute.xlu0 %1779
        %1783 = vset.pattern.permute.xlu0 0
        %1784 = vperm.xlu0 %1783, %v1774
        %v1785 = vpop.permute.xlu0 %1784
        %1788 = vset.pattern.permute.xlu0 0
        %1789 = vperm.xlu0 %1788, %v1775
        %v1790 = vpop.permute.xlu0 %1789
        %1793 = vset.pattern.permute.xlu0 0
        %1794 = vperm.xlu0 %1793, %v1776
        %v1795 = vpop.permute.xlu0 %1794
        %v1797 = vadd.f32 %v1741, %v1780
        %v1798 = vadd.f32 %v1742, %v1785
        %v1799 = vadd.f32 %v1743, %v1790
        %v1800 = vadd.f32 %v1744, %v1795
        %v1801 = vadd.f32 %v1745, %v1780
        %v1802 = vadd.f32 %v1746, %v1785
        %v1803 = vadd.f32 %v1747, %v1790
        %v1804 = vadd.f32 %v1748, %v1795
        %v1805 = vadd.f32 %v1749, %v1780
        %v1806 = vadd.f32 %v1750, %v1785
        %v1807 = vadd.f32 %v1751, %v1790
        %v1808 = vadd.f32 %v1752, %v1795
        %v1809 = vadd.f32 %v1753, %v1780
        %v1810 = vadd.f32 %v1754, %v1785
        %v1811 = vadd.f32 %v1755, %v1790
        %v1812 = vadd.f32 %v1756, %v1795
        %v1813 = vadd.f32 %v1757, %v1780
        %v1814 = vadd.f32 %v1758, %v1785
        %v1815 = vadd.f32 %v1759, %v1790
        %v1816 = vadd.f32 %v1760, %v1795
        %v1817 = vadd.f32 %v1761, %v1780
        %v1818 = vadd.f32 %v1762, %v1785
        %v1819 = vadd.f32 %v1763, %v1790
        %v1820 = vadd.f32 %v1764, %v1795
        %v1821 = vadd.f32 %v1765, %v1780
        %v1822 = vadd.f32 %v1766, %v1785
        %v1823 = vadd.f32 %v1767, %v1790
        %v1824 = vadd.f32 %v1768, %v1795
        %v1825 = vadd.f32 %v1769, %v1780
        %v1826 = vadd.f32 %v1770, %v1785
        %v1827 = vadd.f32 %v1771, %v1790
        %v1828 = vadd.f32 %v1772, %v1795
        %v1829 = vxor.u32 %v1797, 2147483648
        %v1830 = vxor.u32 %v1798, 2147483648
        %v1831 = vxor.u32 %v1799, 2147483648
        %v1832 = vxor.u32 %v1800, 2147483648
        %v1833 = vxor.u32 %v1801, 2147483648
        %v1834 = vxor.u32 %v1802, 2147483648
        %v1835 = vxor.u32 %v1803, 2147483648
        %v1836 = vxor.u32 %v1804, 2147483648
        %v1837 = vxor.u32 %v1805, 2147483648
        %v1838 = vxor.u32 %v1806, 2147483648
        %v1839 = vxor.u32 %v1807, 2147483648
        %v1840 = vxor.u32 %v1808, 2147483648
        %v1841 = vxor.u32 %v1809, 2147483648
        %v1842 = vxor.u32 %v1810, 2147483648
        %v1843 = vxor.u32 %v1811, 2147483648
        %v1844 = vxor.u32 %v1812, 2147483648
        %v1845 = vxor.u32 %v1813, 2147483648
        %v1846 = vxor.u32 %v1814, 2147483648
        %v1847 = vxor.u32 %v1815, 2147483648
        %v1848 = vxor.u32 %v1816, 2147483648
        %v1849 = vxor.u32 %v1817, 2147483648
        %v1850 = vxor.u32 %v1818, 2147483648
        %v1851 = vxor.u32 %v1819, 2147483648
        %v1852 = vxor.u32 %v1820, 2147483648
        %v1853 = vxor.u32 %v1821, 2147483648
        %v1854 = vxor.u32 %v1822, 2147483648
        %v1855 = vxor.u32 %v1823, 2147483648
        %v1856 = vxor.u32 %v1824, 2147483648
        %v1857 = vxor.u32 %v1825, 2147483648
        %v1858 = vxor.u32 %v1826, 2147483648
        %v1859 = vxor.u32 %v1827, 2147483648
        %v1860 = vxor.u32 %v1828, 2147483648
        %v1861 = vmul.f32 %v1829, 1.442695
        %v1862 = vpow.pop %v1861
        %v1863 = vmul.f32 %v1830, 1.442695
        %v1864 = vpow.pop %v1863
        %v1865 = vmul.f32 %v1831, 1.442695
        %v1866 = vpow.pop %v1865
        %v1867 = vmul.f32 %v1832, 1.442695
        %v1868 = vpow.pop %v1867
        %v1869 = vmul.f32 %v1833, 1.442695
        %v1870 = vpow.pop %v1869
        %v1871 = vmul.f32 %v1834, 1.442695
        %v1872 = vpow.pop %v1871
        %v1873 = vmul.f32 %v1835, 1.442695
        %v1874 = vpow.pop %v1873
        %v1875 = vmul.f32 %v1836, 1.442695
        %v1876 = vpow.pop %v1875
        %v1877 = vmul.f32 %v1837, 1.442695
        %v1878 = vpow.pop %v1877
        %v1879 = vmul.f32 %v1838, 1.442695
        %v1880 = vpow.pop %v1879
        %v1881 = vmul.f32 %v1839, 1.442695
        %v1882 = vpow.pop %v1881
        %v1883 = vmul.f32 %v1840, 1.442695
        %v1884 = vpow.pop %v1883
        %v1885 = vmul.f32 %v1841, 1.442695
        %v1886 = vpow.pop %v1885
        %v1887 = vmul.f32 %v1842, 1.442695
        %v1888 = vpow.pop %v1887
        %v1889 = vmul.f32 %v1843, 1.442695
        %v1890 = vpow.pop %v1889
        %v1891 = vmul.f32 %v1844, 1.442695
        %v1892 = vpow.pop %v1891
        %v1893 = vmul.f32 %v1845, 1.442695
        %v1894 = vpow.pop %v1893
        %v1895 = vmul.f32 %v1846, 1.442695
        %v1896 = vpow.pop %v1895
        %v1897 = vmul.f32 %v1847, 1.442695
        %v1898 = vpow.pop %v1897
        %v1899 = vmul.f32 %v1848, 1.442695
        %v1900 = vpow.pop %v1899
        %v1901 = vmul.f32 %v1849, 1.442695
        %v1902 = vpow.pop %v1901
        %v1903 = vmul.f32 %v1850, 1.442695
        %v1904 = vpow.pop %v1903
        %v1905 = vmul.f32 %v1851, 1.442695
        %v1906 = vpow.pop %v1905
        %v1907 = vmul.f32 %v1852, 1.442695
        %v1908 = vpow.pop %v1907
        %v1909 = vmul.f32 %v1853, 1.442695
        %v1910 = vpow.pop %v1909
        %v1911 = vmul.f32 %v1854, 1.442695
        %v1912 = vpow.pop %v1911
        %v1913 = vmul.f32 %v1855, 1.442695
        %v1914 = vpow.pop %v1913
        %v1915 = vmul.f32 %v1856, 1.442695
        %v1916 = vpow.pop %v1915
        %v1917 = vmul.f32 %v1857, 1.442695
        %v1918 = vpow.pop %v1917
        %v1919 = vmul.f32 %v1858, 1.442695
        %v1920 = vpow.pop %v1919
        %v1921 = vmul.f32 %v1859, 1.442695
        %v1922 = vpow.pop %v1921
        %v1923 = vmul.f32 %v1860, 1.442695
        %v1924 = vpow.pop %v1923
        %v1925 = vadd.f32 %v1862, 1.0
        %v1926 = vadd.f32 %v1864, 1.0
        %v1927 = vadd.f32 %v1866, 1.0
        %v1928 = vadd.f32 %v1868, 1.0
        %v1929 = vadd.f32 %v1870, 1.0
        %v1930 = vadd.f32 %v1872, 1.0
        %v1931 = vadd.f32 %v1874, 1.0
        %v1932 = vadd.f32 %v1876, 1.0
        %v1933 = vadd.f32 %v1878, 1.0
        %v1934 = vadd.f32 %v1880, 1.0
        %v1935 = vadd.f32 %v1882, 1.0
        %v1936 = vadd.f32 %v1884, 1.0
        %v1937 = vadd.f32 %v1886, 1.0
        %v1938 = vadd.f32 %v1888, 1.0
        %v1939 = vadd.f32 %v1890, 1.0
        %v1940 = vadd.f32 %v1892, 1.0
        %v1941 = vadd.f32 %v1894, 1.0
        %v1942 = vadd.f32 %v1896, 1.0
        %v1943 = vadd.f32 %v1898, 1.0
        %v1944 = vadd.f32 %v1900, 1.0
        %v1945 = vadd.f32 %v1902, 1.0
        %v1946 = vadd.f32 %v1904, 1.0
        %v1947 = vadd.f32 %v1906, 1.0
        %v1948 = vadd.f32 %v1908, 1.0
        %v1949 = vadd.f32 %v1910, 1.0
        %v1950 = vadd.f32 %v1912, 1.0
        %v1951 = vadd.f32 %v1914, 1.0
        %v1952 = vadd.f32 %v1916, 1.0
        %v1953 = vadd.f32 %v1918, 1.0
        %v1954 = vadd.f32 %v1920, 1.0
        %v1955 = vadd.f32 %v1922, 1.0
        %v1956 = vadd.f32 %v1924, 1.0
        %v1957 = vrcp.pop %v1925
        %v1958 = vmul.f32 1.0, %v1957
        %v1959 = vrcp.pop %v1926
        %v1960 = vmul.f32 1.0, %v1959
        %v1961 = vrcp.pop %v1927
        %v1962 = vmul.f32 1.0, %v1961
        %v1963 = vrcp.pop %v1928
        %v1964 = vmul.f32 1.0, %v1963
        %v1965 = vrcp.pop %v1929
        %v1966 = vmul.f32 1.0, %v1965
        %v1967 = vrcp.pop %v1930
        %v1968 = vmul.f32 1.0, %v1967
        %v1969 = vrcp.pop %v1931
        %v1970 = vmul.f32 1.0, %v1969
        %v1971 = vrcp.pop %v1932
        %v1972 = vmul.f32 1.0, %v1971
        %v1973 = vrcp.pop %v1933
        %v1974 = vmul.f32 1.0, %v1973
        %v1975 = vrcp.pop %v1934
        %v1976 = vmul.f32 1.0, %v1975
        %v1977 = vrcp.pop %v1935
        %v1978 = vmul.f32 1.0, %v1977
        %v1979 = vrcp.pop %v1936
        %v1980 = vmul.f32 1.0, %v1979
        %v1981 = vrcp.pop %v1937
        %v1982 = vmul.f32 1.0, %v1981
        %v1983 = vrcp.pop %v1938
        %v1984 = vmul.f32 1.0, %v1983
        %v1985 = vrcp.pop %v1939
        %v1986 = vmul.f32 1.0, %v1985
        %v1987 = vrcp.pop %v1940
        %v1988 = vmul.f32 1.0, %v1987
        %v1989 = vrcp.pop %v1941
        %v1990 = vmul.f32 1.0, %v1989
        %v1991 = vrcp.pop %v1942
        %v1992 = vmul.f32 1.0, %v1991
        %v1993 = vrcp.pop %v1943
        %v1994 = vmul.f32 1.0, %v1993
        %v1995 = vrcp.pop %v1944
        %v1996 = vmul.f32 1.0, %v1995
        %v1997 = vrcp.pop %v1945
        %v1998 = vmul.f32 1.0, %v1997
        %v1999 = vrcp.pop %v1946
        %v2000 = vmul.f32 1.0, %v1999
        %v2001 = vrcp.pop %v1947
        %v2002 = vmul.f32 1.0, %v2001
        %v2003 = vrcp.pop %v1948
        %v2004 = vmul.f32 1.0, %v2003
        %v2005 = vrcp.pop %v1949
        %v2006 = vmul.f32 1.0, %v2005
        %v2007 = vrcp.pop %v1950
        %v2008 = vmul.f32 1.0, %v2007
        %v2009 = vrcp.pop %v1951
        %v2010 = vmul.f32 1.0, %v2009
        %v2011 = vrcp.pop %v1952
        %v2012 = vmul.f32 1.0, %v2011
        %v2013 = vrcp.pop %v1953
        %v2014 = vmul.f32 1.0, %v2013
        %v2015 = vrcp.pop %v1954
        %v2016 = vmul.f32 1.0, %v2015
        %v2017 = vrcp.pop %v1955
        %v2018 = vmul.f32 1.0, %v2017
        %v2019 = vrcp.pop %v1956
        %v2020 = vmul.f32 1.0, %v2019
        %v2021 = vmul.f32 %v1797, %v1958
        %v2022 = vmul.f32 %v1798, %v1960
        %v2023 = vmul.f32 %v1799, %v1962
        %v2024 = vmul.f32 %v1800, %v1964
        %v2025 = vmul.f32 %v1801, %v1966
        %v2026 = vmul.f32 %v1802, %v1968
        %v2027 = vmul.f32 %v1803, %v1970
        %v2028 = vmul.f32 %v1804, %v1972
        %v2029 = vmul.f32 %v1805, %v1974
        %v2030 = vmul.f32 %v1806, %v1976
        %v2031 = vmul.f32 %v1807, %v1978
        %v2032 = vmul.f32 %v1808, %v1980
        %v2033 = vmul.f32 %v1809, %v1982
        %v2034 = vmul.f32 %v1810, %v1984
        %v2035 = vmul.f32 %v1811, %v1986
        %v2036 = vmul.f32 %v1812, %v1988
        %v2037 = vmul.f32 %v1813, %v1990
        %v2038 = vmul.f32 %v1814, %v1992
        %v2039 = vmul.f32 %v1815, %v1994
        %v2040 = vmul.f32 %v1816, %v1996
        %v2041 = vmul.f32 %v1817, %v1998
        %v2042 = vmul.f32 %v1818, %v2000
        %v2043 = vmul.f32 %v1819, %v2002
        %v2044 = vmul.f32 %v1820, %v2004
        %v2045 = vmul.f32 %v1821, %v2006
        %v2046 = vmul.f32 %v1822, %v2008
        %v2047 = vmul.f32 %v1823, %v2010
        %v2048 = vmul.f32 %v1824, %v2012
        %v2049 = vmul.f32 %v1825, %v2014
        %v2050 = vmul.f32 %v1826, %v2016
        %v2051 = vmul.f32 %v1827, %v2018
        %v2052 = vmul.f32 %v1828, %v2020
        %v2053 = vld [vmem:[#allocation23] sm:$0xf]
        %v2054 = vld [vmem:[#allocation23 + $0x4] sm:$0xf]
        %v2055 = vpack.c.bf16 %v2022, %v2021
        %v2056 = vpack.c.bf16 %v2024, %v2023
        %v2057 = vpack.c.bf16 %v2026, %v2025
        %v2058 = vpack.c.bf16 %v2028, %v2027
        %v2059 = vpack.c.bf16 %v2030, %v2029
        %v2060 = vpack.c.bf16 %v2032, %v2031
        %v2061 = vpack.c.bf16 %v2034, %v2033
        %v2062 = vpack.c.bf16 %v2036, %v2035
        %v2063 = vpack.c.bf16 %v2038, %v2037
        %v2064 = vpack.c.bf16 %v2040, %v2039
        %v2065 = vpack.c.bf16 %v2042, %v2041
        %v2066 = vpack.c.bf16 %v2044, %v2043
        %v2067 = vpack.c.bf16 %v2046, %v2045
        %v2068 = vpack.c.bf16 %v2048, %v2047
        %v2069 = vpack.c.bf16 %v2050, %v2049
        %v2070 = vpack.c.bf16 %v2052, %v2051
        %v2071 = vld [vmem:[#allocation24] sm:$0xff]
        %v2072 = vld [vmem:[#allocation24 + $0x8] sm:$0xff]
        %2074 = vset.pattern.permute.xlu0 0
        %2075 = vperm.xlu0 %2074, %v2071
        %v2076 = vpop.permute.xlu0 %2075
        %2079 = vset.pattern.permute.xlu0 0
        %2080 = vperm.xlu0 %2079, %v2072
        %v2081 = vpop.permute.xlu0 %2080
        %v2085 = vunpack.c.l.b16 %v2053
        %v2086 = vunpack.c.l.b16 %v2054
        %v2087 = vpack.c.b16 %v2086, %v2085
        %v2089 = vsel %vm1236, %v2087, 0
        %2091 = vmatprep.subr.bf16.mxu0 0
        %2092 = vmatpush1.bf16.msra.mxu0 %v2055
        %2093 = vmatprep.subr.bf16.mxu0 0
        %2094 = vmatpush1.bf16.msra.mxu0 %v2056
        %2095 = vmatprep.subr.bf16.mxu0 0
        %2096 = vmatpush1.bf16.msra.mxu0 0
        %2097 = vmatprep.subr.bf16.mxu0 0
        %2098 = vmatpush1.bf16.msra.mxu0 0
        %2099 = vmatprep.subr.bf16.mxu0 0
        %2100 = vmatpush1.bf16.msra.mxu0 0
        %2101 = vmatprep.subr.bf16.mxu0 0
        %2102 = vmatpush1.bf16.msra.mxu0 0
        %2103 = vmatprep.subr.bf16.mxu0 0
        %2104 = vmatpush1.bf16.msra.mxu0 0
        %2105 = vmatprep.subr.bf16.mxu0 0
        %2106 = vmatpush1.bf16.msra.mxu0 0
        %2107 = vmatprep.subr.bf16.mxu0 0
        %2108 = vmatpush1.bf16.msra.mxu0 0
        %2109 = vmatprep.subr.bf16.mxu0 0
        %2110 = vmatpush1.bf16.msra.mxu0 0
        %2111 = vmatprep.subr.bf16.mxu0 0
        %2112 = vmatpush1.bf16.msra.mxu0 0
        %2113 = vmatprep.subr.bf16.mxu0 0
        %2114 = vmatpush1.bf16.msra.mxu0 0
        %2115 = vmatprep.subr.bf16.mxu0 0
        %2116 = vmatpush1.bf16.msra.mxu0 0
        %2117 = vmatprep.subr.bf16.mxu0 0
        %2118 = vmatpush1.bf16.msra.mxu0 0
        %2119 = vmatprep.subr.bf16.mxu0 0
        %2120 = vmatpush1.bf16.msra.mxu0 0
        %2121 = vmatprep.subr.bf16.mxu0 0
        %2122 = vmatpush1.bf16.msra.mxu0 0
        %2123 = vmatprep.mubr.bf16.mxu0 0
        %2124 = vmatmul.mubr.bf16.gmra.mrb[0].mxu0 %v2089
        %v2125 = vpop.f32.mrb[0].mxu0
        %v2126 = vadd.f32 %v2076, %v2125
        %v2127 = vpop.f32.mrb[0].mxu0
        %v2128 = vpop.f32.mrb[0].mxu0
        %v2129 = vadd.f32 %v2081, %v2128
        %v2130 = vpop.f32.mrb[0].mxu0
        %2131 = vdwg.mxu0
        %2132 = vmatprep.subr.bf16.mxu0 0
        %2133 = vmatpush1.bf16.msra.mxu0 %v2057
        %2134 = vmatprep.subr.bf16.mxu0 0
        %2135 = vmatpush1.bf16.msra.mxu0 %v2058
        %2136 = vmatprep.subr.bf16.mxu0 0
        %2137 = vmatpush1.bf16.msra.mxu0 0
        %2138 = vmatprep.subr.bf16.mxu0 0
        %2139 = vmatpush1.bf16.msra.mxu0 0
        %2140 = vmatprep.subr.bf16.mxu0 0
        %2141 = vmatpush1.bf16.msra.mxu0 0
        %2142 = vmatprep.subr.bf16.mxu0 0
        %2143 = vmatpush1.bf16.msra.mxu0 0
        %2144 = vmatprep.subr.bf16.mxu0 0
        %2145 = vmatpush1.bf16.msra.mxu0 0
        %2146 = vmatprep.subr.bf16.mxu0 0
        %2147 = vmatpush1.bf16.msra.mxu0 0
        %2148 = vmatprep.subr.bf16.mxu0 0
        %2149 = vmatpush1.bf16.msra.mxu0 0
        %2150 = vmatprep.subr.bf16.mxu0 0
        %2151 = vmatpush1.bf16.msra.mxu0 0
        %2152 = vmatprep.subr.bf16.mxu0 0
        %2153 = vmatpush1.bf16.msra.mxu0 0
        %2154 = vmatprep.subr.bf16.mxu0 0
        %2155 = vmatpush1.bf16.msra.mxu0 0
        %2156 = vmatprep.subr.bf16.mxu0 0
        %2157 = vmatpush1.bf16.msra.mxu0 0
        %2158 = vmatprep.subr.bf16.mxu0 0
        %2159 = vmatpush1.bf16.msra.mxu0 0
        %2160 = vmatprep.subr.bf16.mxu0 0
        %2161 = vmatpush1.bf16.msra.mxu0 0
        %2162 = vmatprep.subr.bf16.mxu0 0
        %2163 = vmatpush1.bf16.msra.mxu0 0
        %2164 = vmatprep.mubr.bf16.mxu0 0
        %2165 = vmatmul.mubr.bf16.gmra.mrb[0].mxu0 %v2089
        %v2166 = vpop.f32.mrb[0].mxu0
        %v2167 = vadd.f32 %v2076, %v2166
        %v2168 = vpop.f32.mrb[0].mxu0
        %v2169 = vpop.f32.mrb[0].mxu0
        %v2170 = vadd.f32 %v2081, %v2169
        %v2171 = vpop.f32.mrb[0].mxu0
        %2172 = vdwg.mxu0
        %2173 = vmatprep.subr.bf16.mxu0 0
        %2174 = vmatpush1.bf16.msra.mxu0 %v2059
        %2175 = vmatprep.subr.bf16.mxu0 0
        %2176 = vmatpush1.bf16.msra.mxu0 %v2060
        %2177 = vmatprep.subr.bf16.mxu0 0
        %2178 = vmatpush1.bf16.msra.mxu0 0
        %2179 = vmatprep.subr.bf16.mxu0 0
        %2180 = vmatpush1.bf16.msra.mxu0 0
        %2181 = vmatprep.subr.bf16.mxu0 0
        %2182 = vmatpush1.bf16.msra.mxu0 0
        %2183 = vmatprep.subr.bf16.mxu0 0
        %2184 = vmatpush1.bf16.msra.mxu0 0
        %2185 = vmatprep.subr.bf16.mxu0 0
        %2186 = vmatpush1.bf16.msra.mxu0 0
        %2187 = vmatprep.subr.bf16.mxu0 0
        %2188 = vmatpush1.bf16.msra.mxu0 0
        %2189 = vmatprep.subr.bf16.mxu0 0
        %2190 = vmatpush1.bf16.msra.mxu0 0
        %2191 = vmatprep.subr.bf16.mxu0 0
        %2192 = vmatpush1.bf16.msra.mxu0 0
        %2193 = vmatprep.subr.bf16.mxu0 0
        %2194 = vmatpush1.bf16.msra.mxu0 0
        %2195 = vmatprep.subr.bf16.mxu0 0
        %2196 = vmatpush1.bf16.msra.mxu0 0
        %2197 = vmatprep.subr.bf16.mxu0 0
        %2198 = vmatpush1.bf16.msra.mxu0 0
        %2199 = vmatprep.subr.bf16.mxu0 0
        %2200 = vmatpush1.bf16.msra.mxu0 0
        %2201 = vmatprep.subr.bf16.mxu0 0
        %2202 = vmatpush1.bf16.msra.mxu0 0
        %2203 = vmatprep.subr.bf16.mxu0 0
        %2204 = vmatpush1.bf16.msra.mxu0 0
        %2205 = vmatprep.mubr.bf16.mxu0 0
        %2206 = vmatmul.mubr.bf16.gmra.mrb[0].mxu0 %v2089
        %v2207 = vpop.f32.mrb[0].mxu0
        %v2208 = vadd.f32 %v2076, %v2207
        %v2209 = vpop.f32.mrb[0].mxu0
        %v2210 = vpop.f32.mrb[0].mxu0
        %v2211 = vadd.f32 %v2081, %v2210
        %v2212 = vpop.f32.mrb[0].mxu0
        %2213 = vdwg.mxu0
        %2214 = vmatprep.subr.bf16.mxu0 0
        %2215 = vmatpush1.bf16.msra.mxu0 %v2061
        %2216 = vmatprep.subr.bf16.mxu0 0
        %2217 = vmatpush1.bf16.msra.mxu0 %v2062
        %2218 = vmatprep.subr.bf16.mxu0 0
        %2219 = vmatpush1.bf16.msra.mxu0 0
        %2220 = vmatprep.subr.bf16.mxu0 0
        %2221 = vmatpush1.bf16.msra.mxu0 0
        %2222 = vmatprep.subr.bf16.mxu0 0
        %2223 = vmatpush1.bf16.msra.mxu0 0
        %2224 = vmatprep.subr.bf16.mxu0 0
        %2225 = vmatpush1.bf16.msra.mxu0 0
        %2226 = vmatprep.subr.bf16.mxu0 0
        %2227 = vmatpush1.bf16.msra.mxu0 0
        %2228 = vmatprep.subr.bf16.mxu0 0
        %2229 = vmatpush1.bf16.msra.mxu0 0
        %2230 = vmatprep.subr.bf16.mxu0 0
        %2231 = vmatpush1.bf16.msra.mxu0 0
        %2232 = vmatprep.subr.bf16.mxu0 0
        %2233 = vmatpush1.bf16.msra.mxu0 0
        %2234 = vmatprep.subr.bf16.mxu0 0
        %2235 = vmatpush1.bf16.msra.mxu0 0
        %2236 = vmatprep.subr.bf16.mxu0 0
        %2237 = vmatpush1.bf16.msra.mxu0 0
        %2238 = vmatprep.subr.bf16.mxu0 0
        %2239 = vmatpush1.bf16.msra.mxu0 0
        %2240 = vmatprep.subr.bf16.mxu0 0
        %2241 = vmatpush1.bf16.msra.mxu0 0
        %2242 = vmatprep.subr.bf16.mxu0 0
        %2243 = vmatpush1.bf16.msra.mxu0 0
        %2244 = vmatprep.subr.bf16.mxu0 0
        %2245 = vmatpush1.bf16.msra.mxu0 0
        %2246 = vmatprep.mubr.bf16.mxu0 0
        %2247 = vmatmul.mubr.bf16.gmra.mrb[0].mxu0 %v2089
        %v2248 = vpop.f32.mrb[0].mxu0
        %v2249 = vadd.f32 %v2076, %v2248
        %v2250 = vpop.f32.mrb[0].mxu0
        %v2251 = vpop.f32.mrb[0].mxu0
        %v2252 = vadd.f32 %v2081, %v2251
        %v2253 = vpop.f32.mrb[0].mxu0
        %2254 = vdwg.mxu0
        %2255 = vmatprep.subr.bf16.mxu0 0
        %2256 = vmatpush1.bf16.msra.mxu0 %v2063
        %2257 = vmatprep.subr.bf16.mxu0 0
        %2258 = vmatpush1.bf16.msra.mxu0 %v2064
        %2259 = vmatprep.subr.bf16.mxu0 0
        %2260 = vmatpush1.bf16.msra.mxu0 0
        %2261 = vmatprep.subr.bf16.mxu0 0
        %2262 = vmatpush1.bf16.msra.mxu0 0
        %2263 = vmatprep.subr.bf16.mxu0 0
        %2264 = vmatpush1.bf16.msra.mxu0 0
        %2265 = vmatprep.subr.bf16.mxu0 0
        %2266 = vmatpush1.bf16.msra.mxu0 0
        %2267 = vmatprep.subr.bf16.mxu0 0
        %2268 = vmatpush1.bf16.msra.mxu0 0
        %2269 = vmatprep.subr.bf16.mxu0 0
        %2270 = vmatpush1.bf16.msra.mxu0 0
        %2271 = vmatprep.subr.bf16.mxu0 0
        %2272 = vmatpush1.bf16.msra.mxu0 0
        %2273 = vmatprep.subr.bf16.mxu0 0
        %2274 = vmatpush1.bf16.msra.mxu0 0
        %2275 = vmatprep.subr.bf16.mxu0 0
        %2276 = vmatpush1.bf16.msra.mxu0 0
        %2277 = vmatprep.subr.bf16.mxu0 0
        %2278 = vmatpush1.bf16.msra.mxu0 0
        %2279 = vmatprep.subr.bf16.mxu0 0
        %2280 = vmatpush1.bf16.msra.mxu0 0
        %2281 = vmatprep.subr.bf16.mxu0 0
        %2282 = vmatpush1.bf16.msra.mxu0 0
        %2283 = vmatprep.subr.bf16.mxu0 0
        %2284 = vmatpush1.bf16.msra.mxu0 0
        %2285 = vmatprep.subr.bf16.mxu0 0
        %2286 = vmatpush1.bf16.msra.mxu0 0
        %2287 = vmatprep.mubr.bf16.mxu0 0
        %2288 = vmatmul.mubr.bf16.gmra.mrb[0].mxu0 %v2089
        %v2289 = vpop.f32.mrb[0].mxu0
        %v2290 = vadd.f32 %v2076, %v2289
        %v2291 = vpop.f32.mrb[0].mxu0
        %v2292 = vpop.f32.mrb[0].mxu0
        %v2293 = vadd.f32 %v2081, %v2292
        %v2294 = vpop.f32.mrb[0].mxu0
        %2295 = vdwg.mxu0
        %2296 = vmatprep.subr.bf16.mxu0 0
        %2297 = vmatpush1.bf16.msra.mxu0 %v2065
        %2298 = vmatprep.subr.bf16.mxu0 0
        %2299 = vmatpush1.bf16.msra.mxu0 %v2066
        %2300 = vmatprep.subr.bf16.mxu0 0
        %2301 = vmatpush1.bf16.msra.mxu0 0
        %2302 = vmatprep.subr.bf16.mxu0 0
        %2303 = vmatpush1.bf16.msra.mxu0 0
        %2304 = vmatprep.subr.bf16.mxu0 0
        %2305 = vmatpush1.bf16.msra.mxu0 0
        %2306 = vmatprep.subr.bf16.mxu0 0
        %2307 = vmatpush1.bf16.msra.mxu0 0
        %2308 = vmatprep.subr.bf16.mxu0 0
        %2309 = vmatpush1.bf16.msra.mxu0 0
        %2310 = vmatprep.subr.bf16.mxu0 0
        %2311 = vmatpush1.bf16.msra.mxu0 0
        %2312 = vmatprep.subr.bf16.mxu0 0
        %2313 = vmatpush1.bf16.msra.mxu0 0
        %2314 = vmatprep.subr.bf16.mxu0 0
        %2315 = vmatpush1.bf16.msra.mxu0 0
        %2316 = vmatprep.subr.bf16.mxu0 0
        %2317 = vmatpush1.bf16.msra.mxu0 0
        %2318 = vmatprep.subr.bf16.mxu0 0
        %2319 = vmatpush1.bf16.msra.mxu0 0
        %2320 = vmatprep.subr.bf16.mxu0 0
        %2321 = vmatpush1.bf16.msra.mxu0 0
        %2322 = vmatprep.subr.bf16.mxu0 0
        %2323 = vmatpush1.bf16.msra.mxu0 0
        %2324 = vmatprep.subr.bf16.mxu0 0
        %2325 = vmatpush1.bf16.msra.mxu0 0
        %2326 = vmatprep.subr.bf16.mxu0 0
        %2327 = vmatpush1.bf16.msra.mxu0 0
        %2328 = vmatprep.mubr.bf16.mxu0 0
        %2329 = vmatmul.mubr.bf16.gmra.mrb[0].mxu0 %v2089
        %v2330 = vpop.f32.mrb[0].mxu0
        %v2331 = vadd.f32 %v2076, %v2330
        %v2332 = vpop.f32.mrb[0].mxu0
        %v2333 = vpop.f32.mrb[0].mxu0
        %v2334 = vadd.f32 %v2081, %v2333
        %v2335 = vpop.f32.mrb[0].mxu0
        %2336 = vdwg.mxu0
        %2337 = vmatprep.subr.bf16.mxu0 0
        %2338 = vmatpush1.bf16.msra.mxu0 %v2067
        %2339 = vmatprep.subr.bf16.mxu0 0
        %2340 = vmatpush1.bf16.msra.mxu0 %v2068
        %2341 = vmatprep.subr.bf16.mxu0 0
        %2342 = vmatpush1.bf16.msra.mxu0 0
        %2343 = vmatprep.subr.bf16.mxu0 0
        %2344 = vmatpush1.bf16.msra.mxu0 0
        %2345 = vmatprep.subr.bf16.mxu0 0
        %2346 = vmatpush1.bf16.msra.mxu0 0
        %2347 = vmatprep.subr.bf16.mxu0 0
        %2348 = vmatpush1.bf16.msra.mxu0 0
        %2349 = vmatprep.subr.bf16.mxu0 0
        %2350 = vmatpush1.bf16.msra.mxu0 0
        %2351 = vmatprep.subr.bf16.mxu0 0
        %2352 = vmatpush1.bf16.msra.mxu0 0
        %2353 = vmatprep.subr.bf16.mxu0 0
        %2354 = vmatpush1.bf16.msra.mxu0 0
        %2355 = vmatprep.subr.bf16.mxu0 0
        %2356 = vmatpush1.bf16.msra.mxu0 0
        %2357 = vmatprep.subr.bf16.mxu0 0
        %2358 = vmatpush1.bf16.msra.mxu0 0
        %2359 = vmatprep.subr.bf16.mxu0 0
        %2360 = vmatpush1.bf16.msra.mxu0 0
        %2361 = vmatprep.subr.bf16.mxu0 0
        %2362 = vmatpush1.bf16.msra.mxu0 0
        %2363 = vmatprep.subr.bf16.mxu0 0
        %2364 = vmatpush1.bf16.msra.mxu0 0
        %2365 = vmatprep.subr.bf16.mxu0 0
        %2366 = vmatpush1.bf16.msra.mxu0 0
        %2367 = vmatprep.subr.bf16.mxu0 0
        %2368 = vmatpush1.bf16.msra.mxu0 0
        %2369 = vmatprep.mubr.bf16.mxu0 0
        %2370 = vmatmul.mubr.bf16.gmra.mrb[0].mxu0 %v2089
        %v2371 = vpop.f32.mrb[0].mxu0
        %v2372 = vadd.f32 %v2076, %v2371
        %v2373 = vpop.f32.mrb[0].mxu0
        %v2374 = vpop.f32.mrb[0].mxu0
        %v2375 = vadd.f32 %v2081, %v2374
        %v2376 = vpop.f32.mrb[0].mxu0
        %2377 = vdwg.mxu0
        %2378 = vmatprep.subr.bf16.mxu0 0
        %2379 = vmatpush1.bf16.msra.mxu0 %v2069
        %2380 = vmatprep.subr.bf16.mxu0 0
        %2381 = vmatpush1.bf16.msra.mxu0 %v2070
        %2382 = vmatprep.subr.bf16.mxu0 0
        %2383 = vmatpush1.bf16.msra.mxu0 0
        %2384 = vmatprep.subr.bf16.mxu0 0
        %2385 = vmatpush1.bf16.msra.mxu0 0
        %2386 = vmatprep.subr.bf16.mxu0 0
        %2387 = vmatpush1.bf16.msra.mxu0 0
        %2388 = vmatprep.subr.bf16.mxu0 0
        %2389 = vmatpush1.bf16.msra.mxu0 0
        %2390 = vmatprep.subr.bf16.mxu0 0
        %2391 = vmatpush1.bf16.msra.mxu0 0
        %2392 = vmatprep.subr.bf16.mxu0 0
        %2393 = vmatpush1.bf16.msra.mxu0 0
        %2394 = vmatprep.subr.bf16.mxu0 0
        %2395 = vmatpush1.bf16.msra.mxu0 0
        %2396 = vmatprep.subr.bf16.mxu0 0
        %2397 = vmatpush1.bf16.msra.mxu0 0
        %2398 = vmatprep.subr.bf16.mxu0 0
        %2399 = vmatpush1.bf16.msra.mxu0 0
        %2400 = vmatprep.subr.bf16.mxu0 0
        %2401 = vmatpush1.bf16.msra.mxu0 0
        %2402 = vmatprep.subr.bf16.mxu0 0
        %2403 = vmatpush1.bf16.msra.mxu0 0
        %2404 = vmatprep.subr.bf16.mxu0 0
        %2405 = vmatpush1.bf16.msra.mxu0 0
        %2406 = vmatprep.subr.bf16.mxu0 0
        %2407 = vmatpush1.bf16.msra.mxu0 0
        %2408 = vmatprep.subr.bf16.mxu0 0
        %2409 = vmatpush1.bf16.msra.mxu0 0
        %2410 = vmatprep.mubr.bf16.mxu0 0
        %2411 = vmatmul.mubr.bf16.gmra.mrb[0].mxu0 %v2089
        %v2412 = vpop.f32.mrb[0].mxu0
        %v2413 = vadd.f32 %v2076, %v2412
        %v2414 = vpop.f32.mrb[0].mxu0
        %v2415 = vpop.f32.mrb[0].mxu0
        %v2416 = vadd.f32 %v2081, %v2415
        %v2417 = vpop.f32.mrb[0].mxu0
        %2418 = vdwg.mxu0
        %v2419 = vxor.u32 %v2126, 2147483648
        %v2420 = vxor.u32 %v2129, 2147483648
        %v2421 = vxor.u32 %v2167, 2147483648
        %v2422 = vxor.u32 %v2170, 2147483648
        %v2423 = vxor.u32 %v2208, 2147483648
        %v2424 = vxor.u32 %v2211, 2147483648
        %v2425 = vxor.u32 %v2249, 2147483648
        %v2426 = vxor.u32 %v2252, 2147483648
        %v2427 = vxor.u32 %v2290, 2147483648
        %v2428 = vxor.u32 %v2293, 2147483648
        %v2429 = vxor.u32 %v2331, 2147483648
        %v2430 = vxor.u32 %v2334, 2147483648
        %v2431 = vxor.u32 %v2372, 2147483648
        %v2432 = vxor.u32 %v2375, 2147483648
        %v2433 = vxor.u32 %v2413, 2147483648
        %v2434 = vxor.u32 %v2416, 2147483648
        %v2435 = vmul.f32 %v2419, 1.442695
        %v2436 = vpow.pop %v2435
        %v2437 = vmul.f32 %v2420, 1.442695
        %v2438 = vpow.pop %v2437
        %v2439 = vmul.f32 %v2421, 1.442695
        %v2440 = vpow.pop %v2439
        %v2441 = vmul.f32 %v2422, 1.442695
        %v2442 = vpow.pop %v2441
        %v2443 = vmul.f32 %v2423, 1.442695
        %v2444 = vpow.pop %v2443
        %v2445 = vmul.f32 %v2424, 1.442695
        %v2446 = vpow.pop %v2445
        %v2447 = vmul.f32 %v2425, 1.442695
        %v2448 = vpow.pop %v2447
        %v2449 = vmul.f32 %v2426, 1.442695
        %v2450 = vpow.pop %v2449
        %v2451 = vmul.f32 %v2427, 1.442695
        %v2452 = vpow.pop %v2451
        %v2453 = vmul.f32 %v2428, 1.442695
        %v2454 = vpow.pop %v2453
        %v2455 = vmul.f32 %v2429, 1.442695
        %v2456 = vpow.pop %v2455
        %v2457 = vmul.f32 %v2430, 1.442695
        %v2458 = vpow.pop %v2457
        %v2459 = vmul.f32 %v2431, 1.442695
        %v2460 = vpow.pop %v2459
        %v2461 = vmul.f32 %v2432, 1.442695
        %v2462 = vpow.pop %v2461
        %v2463 = vmul.f32 %v2433, 1.442695
        %v2464 = vpow.pop %v2463
        %v2465 = vmul.f32 %v2434, 1.442695
        %v2466 = vpow.pop %v2465
        %v2467 = vadd.f32 %v2436, 1.0
        %v2468 = vadd.f32 %v2438, 1.0
        %v2469 = vadd.f32 %v2440, 1.0
        %v2470 = vadd.f32 %v2442, 1.0
        %v2471 = vadd.f32 %v2444, 1.0
        %v2472 = vadd.f32 %v2446, 1.0
        %v2473 = vadd.f32 %v2448, 1.0
        %v2474 = vadd.f32 %v2450, 1.0
        %v2475 = vadd.f32 %v2452, 1.0
        %v2476 = vadd.f32 %v2454, 1.0
        %v2477 = vadd.f32 %v2456, 1.0
        %v2478 = vadd.f32 %v2458, 1.0
        %v2479 = vadd.f32 %v2460, 1.0
        %v2480 = vadd.f32 %v2462, 1.0
        %v2481 = vadd.f32 %v2464, 1.0
        %v2482 = vadd.f32 %v2466, 1.0
        %v2483 = vrcp.pop %v2467
        %v2484 = vmul.f32 1.0, %v2483
        %v2485 = vrcp.pop %v2468
        %v2486 = vmul.f32 1.0, %v2485
        %v2487 = vrcp.pop %v2469
        %v2488 = vmul.f32 1.0, %v2487
        %v2489 = vrcp.pop %v2470
        %v2490 = vmul.f32 1.0, %v2489
        %v2491 = vrcp.pop %v2471
        %v2492 = vmul.f32 1.0, %v2491
        %v2493 = vrcp.pop %v2472
        %v2494 = vmul.f32 1.0, %v2493
        %v2495 = vrcp.pop %v2473
        %v2496 = vmul.f32 1.0, %v2495
        %v2497 = vrcp.pop %v2474
        %v2498 = vmul.f32 1.0, %v2497
        %v2499 = vrcp.pop %v2475
        %v2500 = vmul.f32 1.0, %v2499
        %v2501 = vrcp.pop %v2476
        %v2502 = vmul.f32 1.0, %v2501
        %v2503 = vrcp.pop %v2477
        %v2504 = vmul.f32 1.0, %v2503
        %v2505 = vrcp.pop %v2478
        %v2506 = vmul.f32 1.0, %v2505
        %v2507 = vrcp.pop %v2479
        %v2508 = vmul.f32 1.0, %v2507
        %v2509 = vrcp.pop %v2480
        %v2510 = vmul.f32 1.0, %v2509
        %v2511 = vrcp.pop %v2481
        %v2512 = vmul.f32 1.0, %v2511
        %v2513 = vrcp.pop %v2482
        %v2514 = vmul.f32 1.0, %v2513
        %v2515 = vmul.f32 %v2126, %v2484
        %v2516 = vmul.f32 %v2129, %v2486
        %v2517 = vmul.f32 %v2167, %v2488
        %v2518 = vmul.f32 %v2170, %v2490
        %v2519 = vmul.f32 %v2208, %v2492
        %v2520 = vmul.f32 %v2211, %v2494
        %v2521 = vmul.f32 %v2249, %v2496
        %v2522 = vmul.f32 %v2252, %v2498
        %v2523 = vmul.f32 %v2290, %v2500
        %v2524 = vmul.f32 %v2293, %v2502
        %v2525 = vmul.f32 %v2331, %v2504
        %v2526 = vmul.f32 %v2334, %v2506
        %v2527 = vmul.f32 %v2372, %v2508
        %v2528 = vmul.f32 %v2375, %v2510
        %v2529 = vmul.f32 %v2413, %v2512
        %v2530 = vmul.f32 %v2416, %v2514
        %v2531 = vld [vmem:[#allocation2] sm:$0xff]
        %v2533 = vlaneseq
        %v2534 = vshrl.u32 %v2533, 7
        %v2535 = vsub.s32 0, %v2534
        %v2536 = vrot.slane %v1138, %v2535
        %v2538 = vmul.f32 %v2515, %v2536
        %v2539 = vmul.f32 %v2516, %v2536
        %v2540 = vmul.f32 %v2517, %v2536
        %v2541 = vmul.f32 %v2518, %v2536
        %v2542 = vmul.f32 %v2519, %v2536
        %v2543 = vmul.f32 %v2520, %v2536
        %v2544 = vmul.f32 %v2521, %v2536
        %v2545 = vmul.f32 %v2522, %v2536
        %v2546 = vmul.f32 %v2523, %v2536
        %v2547 = vmul.f32 %v2524, %v2536
        %v2548 = vmul.f32 %v2525, %v2536
        %v2549 = vmul.f32 %v2526, %v2536
        %v2550 = vmul.f32 %v2527, %v2536
        %v2551 = vmul.f32 %v2528, %v2536
        %v2552 = vmul.f32 %v2529, %v2536
        %v2553 = vmul.f32 %v2530, %v2536
        %vm2554 = vcmask 64512
        %v2555 = vsel %vm2554, %v2538, 0.0
        %2556 = vadd.xlane.f32.xlu0 %v2555
        %v2557 = vpop.xlane.xlu0 %2556
        %v2558 = vsel %vm2554, %v2539, 0.0
        %2559 = vadd.xlane.f32.xlu0 %v2558
        %v2560 = vpop.xlane.xlu0 %2559
        %v2561 = vsel %vm2554, %v2540, 0.0
        %2562 = vadd.xlane.f32.xlu0 %v2561
        %v2563 = vpop.xlane.xlu0 %2562
        %v2564 = vsel %vm2554, %v2541, 0.0
        %2565 = vadd.xlane.f32.xlu0 %v2564
        %v2566 = vpop.xlane.xlu0 %2565
        %v2567 = vsel %vm2554, %v2542, 0.0
        %2568 = vadd.xlane.f32.xlu0 %v2567
        %v2569 = vpop.xlane.xlu0 %2568
        %v2570 = vsel %vm2554, %v2543, 0.0
        %2571 = vadd.xlane.f32.xlu0 %v2570
        %v2572 = vpop.xlane.xlu0 %2571
        %v2573 = vsel %vm2554, %v2544, 0.0
        %2574 = vadd.xlane.f32.xlu0 %v2573
        %v2575 = vpop.xlane.xlu0 %2574
        %v2576 = vsel %vm2554, %v2545, 0.0
        %2577 = vadd.xlane.f32.xlu0 %v2576
        %v2578 = vpop.xlane.xlu0 %2577
        %v2579 = vsel %vm2554, %v2546, 0.0
        %2580 = vadd.xlane.f32.xlu0 %v2579
        %v2581 = vpop.xlane.xlu0 %2580
        %v2582 = vsel %vm2554, %v2547, 0.0
        %2583 = vadd.xlane.f32.xlu0 %v2582
        %v2584 = vpop.xlane.xlu0 %2583
        %v2585 = vsel %vm2554, %v2548, 0.0
        %2586 = vadd.xlane.f32.xlu0 %v2585
        %v2587 = vpop.xlane.xlu0 %2586
        %v2588 = vsel %vm2554, %v2549, 0.0
        %2589 = vadd.xlane.f32.xlu0 %v2588
        %v2590 = vpop.xlane.xlu0 %2589
        %v2591 = vsel %vm2554, %v2550, 0.0
        %2592 = vadd.xlane.f32.xlu0 %v2591
        %v2593 = vpop.xlane.xlu0 %2592
        %v2594 = vsel %vm2554, %v2551, 0.0
        %2595 = vadd.xlane.f32.xlu0 %v2594
        %v2596 = vpop.xlane.xlu0 %2595
        %v2597 = vsel %vm2554, %v2552, 0.0
        %2598 = vadd.xlane.f32.xlu0 %v2597
        %v2599 = vpop.xlane.xlu0 %2598
        %v2600 = vsel %vm2554, %v2553, 0.0
        %2601 = vadd.xlane.f32.xlu0 %v2600
        %v2602 = vpop.xlane.xlu0 %2601
        %v2619 = vlaneseq
        %v2620 = vand.u32 %v2619, 127
        %v2621 = vlaneseq
        %v2622 = vshrl.u32 %v2621, 7
        %v2623 = vsub.s32 %v2620, %v2622
        %v2624 = vrot.slane %v2557, %v2623
        %v2625 = vadd.s32 %v2620, 4294967288
        %v2626 = vlaneseq
        %v2627 = vshrl.u32 %v2626, 7
        %v2628 = vsub.s32 %v2625, %v2627
        %v2629 = vrot.slane %v2560, %v2628
        %vm2630 = vcmask 130112
        %v2631 = vsel %vm2630, %v2629, %v2624
        %v2632 = vlaneseq
        %v2633 = vshrl.u32 %v2632, 7
        %v2634 = vsub.s32 %v2620, %v2633
        %v2635 = vrot.slane %v2563, %v2634
        %v2636 = vlaneseq
        %v2637 = vshrl.u32 %v2636, 7
        %v2638 = vsub.s32 %v2625, %v2637
        %v2639 = vrot.slane %v2566, %v2638
        %v2640 = vsel %vm2630, %v2639, %v2635
        %v2641 = vlaneseq
        %v2642 = vshrl.u32 %v2641, 7
        %v2643 = vsub.s32 %v2620, %v2642
        %v2644 = vrot.slane %v2569, %v2643
        %v2645 = vlaneseq
        %v2646 = vshrl.u32 %v2645, 7
        %v2647 = vsub.s32 %v2625, %v2646
        %v2648 = vrot.slane %v2572, %v2647
        %v2649 = vsel %vm2630, %v2648, %v2644
        %v2650 = vlaneseq
        %v2651 = vshrl.u32 %v2650, 7
        %v2652 = vsub.s32 %v2620, %v2651
        %v2653 = vrot.slane %v2575, %v2652
        %v2654 = vlaneseq
        %v2655 = vshrl.u32 %v2654, 7
        %v2656 = vsub.s32 %v2625, %v2655
        %v2657 = vrot.slane %v2578, %v2656
        %v2658 = vsel %vm2630, %v2657, %v2653
        %v2659 = vlaneseq
        %v2660 = vshrl.u32 %v2659, 7
        %v2661 = vsub.s32 %v2620, %v2660
        %v2662 = vrot.slane %v2581, %v2661
        %v2663 = vlaneseq
        %v2664 = vshrl.u32 %v2663, 7
        %v2665 = vsub.s32 %v2625, %v2664
        %v2666 = vrot.slane %v2584, %v2665
        %v2667 = vsel %vm2630, %v2666, %v2662
        %v2668 = vlaneseq
        %v2669 = vshrl.u32 %v2668, 7
        %v2670 = vsub.s32 %v2620, %v2669
        %v2671 = vrot.slane %v2587, %v2670
        %v2672 = vlaneseq
        %v2673 = vshrl.u32 %v2672, 7
        %v2674 = vsub.s32 %v2625, %v2673
        %v2675 = vrot.slane %v2590, %v2674
        %v2676 = vsel %vm2630, %v2675, %v2671
        %v2677 = vlaneseq
        %v2678 = vshrl.u32 %v2677, 7
        %v2679 = vsub.s32 %v2620, %v2678
        %v2680 = vrot.slane %v2593, %v2679
        %v2681 = vlaneseq
        %v2682 = vshrl.u32 %v2681, 7
        %v2683 = vsub.s32 %v2625, %v2682
        %v2684 = vrot.slane %v2596, %v2683
        %v2685 = vsel %vm2630, %v2684, %v2680
        %v2686 = vlaneseq
        %v2687 = vshrl.u32 %v2686, 7
        %v2688 = vsub.s32 %v2620, %v2687
        %v2689 = vrot.slane %v2599, %v2688
        %v2690 = vlaneseq
        %v2691 = vshrl.u32 %v2690, 7
        %v2692 = vsub.s32 %v2625, %v2691
        %v2693 = vrot.slane %v2602, %v2692
        %v2694 = vsel %vm2630, %v2693, %v2689
        %vm2695 = vcmask 1041409
        %v2696 = vsel %vm2695, %v2640, %v2631
        %vm2697 = vcmask 1042434
        %v2698 = vsel %vm2697, %v2649, %v2696
        %vm2699 = vcmask 1043459
        %v2700 = vsel %vm2699, %v2658, %v2698
        %vm2701 = vcmask 1044484
        %v2702 = vsel %vm2701, %v2667, %v2700
        %vm2703 = vcmask 1045509
        %v2704 = vsel %vm2703, %v2676, %v2702
        %vm2705 = vcmask 1046534
        %v2706 = vsel %vm2705, %v2685, %v2704
        %vm2707 = vcmask 1047559
        %v2708 = vsel %vm2707, %v2694, %v2706
        %v2710 = vadd.f32 %v2531, %v2708
        %vm2711 = vcmask 130048
        %2712 = vst.msk [vmem:[#allocation2] sm:$0xff] %vm2711, %v2710
        // Predicated region
        $region193: #{tpu_custom_call.1} parent=103 // pred_check
          %p2713 = pneg %p1123
        $region194: #{tpu_custom_call.1} parent=103 // pred_check_branch
          %2715 = sbr.rel (%p2713) target = $region196
        $region195: #{tpu_custom_call.1} parent=103 // pred_region
          %v2716 = vld [vmem:[#allocation2] sm:$0xff]
          %v2717 = vld [vmem:[#allocation26] sm:$0xff]
          %v2718 = vld [vmem:[#allocation26 + $0x8] sm:$0xff]
          %v2719 = vld [vmem:[#allocation26 + $0x10] sm:$0xff]
          %v2720 = vld [vmem:[#allocation26 + $0x18] sm:$0xff]
          %v2721 = vld [vmem:[#allocation27] sm:$0xff]
          %v2722 = vld [vmem:[#allocation27 + $0x8] sm:$0xff]
          %v2724 = vsel %vm2711, %v2716, 0
          %2726 = vmatprep.subr.mxu0 0.0
          %2727 = vmatpush1.msra.mxu0 %v2721
          %2728 = vmatprep.subr.mxu0 0.0
          %2729 = vmatpush1.msra.mxu0 %v2722
          %2730 = vmatprep.subr.mxu0 0.0
          %2731 = vmatpush1.msra.mxu0 0.0
          %2732 = vmatprep.subr.mxu0 0.0
          %2733 = vmatpush1.msra.mxu0 0.0
          %2734 = vmatprep.subr.mxu0 0.0
          %2735 = vmatpush1.msra.mxu0 0.0
          %2736 = vmatprep.subr.mxu0 0.0
          %2737 = vmatpush1.msra.mxu0 0.0
          %2738 = vmatprep.subr.mxu0 0.0
          %2739 = vmatpush1.msra.mxu0 0.0
          %2740 = vmatprep.subr.mxu0 0.0
          %2741 = vmatpush1.msra.mxu0 0.0
          %2742 = vmatprep.subr.mxu0 0.0
          %2743 = vmatpush1.msra.mxu0 0.0
          %2744 = vmatprep.subr.mxu0 0.0
          %2745 = vmatpush1.msra.mxu0 0.0
          %2746 = vmatprep.subr.mxu0 0.0
          %2747 = vmatpush1.msra.mxu0 0.0
          %2748 = vmatprep.subr.mxu0 0.0
          %2749 = vmatpush1.msra.mxu0 0.0
          %2750 = vmatprep.subr.mxu0 0.0
          %2751 = vmatpush1.msra.mxu0 0.0
          %2752 = vmatprep.subr.mxu0 0.0
          %2753 = vmatpush1.msra.mxu0 0.0
          %2754 = vmatprep.subr.mxu0 0.0
          %2755 = vmatpush1.msra.mxu0 0.0
          %2756 = vmatprep.subr.mxu0 0.0
          %2757 = vmatpush1.msra.mxu0 0.0
          %2758 = vmatprep.subr.mxu0 0.0
          %2759 = vmatpush1.msra.mxu0 0.0
          %2760 = vmatprep.subr.mxu0 0.0
          %2761 = vmatpush1.msra.mxu0 0.0
          %2762 = vmatprep.subr.mxu0 0.0
          %2763 = vmatpush1.msra.mxu0 0.0
          %2764 = vmatprep.subr.mxu0 0.0
          %2765 = vmatpush1.msra.mxu0 0.0
          %2766 = vmatprep.subr.mxu0 0.0
          %2767 = vmatpush1.msra.mxu0 0.0
          %2768 = vmatprep.subr.mxu0 0.0
          %2769 = vmatpush1.msra.mxu0 0.0
          %2770 = vmatprep.subr.mxu0 0.0
          %2771 = vmatpush1.msra.mxu0 0.0
          %2772 = vmatprep.subr.mxu0 0.0
          %2773 = vmatpush1.msra.mxu0 0.0
          %2774 = vmatprep.subr.mxu0 0.0
          %2775 = vmatpush1.msra.mxu0 0.0
          %2776 = vmatprep.subr.mxu0 0.0
          %2777 = vmatpush1.msra.mxu0 0.0
          %2778 = vmatprep.subr.mxu0 0.0
          %2779 = vmatpush1.msra.mxu0 0.0
          %2780 = vmatprep.subr.mxu0 0.0
          %2781 = vmatpush1.msra.mxu0 0.0
          %2782 = vmatprep.subr.mxu0 0.0
          %2783 = vmatpush1.msra.mxu0 0.0
          %2784 = vmatprep.subr.mxu0 0.0
          %2785 = vmatpush1.msra.mxu0 0.0
          %2786 = vmatprep.subr.mxu0 0.0
          %2787 = vmatpush1.msra.mxu0 0.0
          %2788 = vmatprep.subr.mxu0 0.0
          %2789 = vmatpush1.msra.mxu0 0.0
          %2790 = vmatprep.mubr.f32.mxu0 0.0
          %2791 = vmatmul.mubr.f32.gmra.mrb[0].mxu0 %v2724
          %v2792 = vpop.f32.mrb[0].mxu0
          %v2793 = vadd.f32 0.0, %v2792
          %v2794 = vpop.f32.mrb[0].mxu0
          %2795 = vdwg.mxu0
          %2796 = vmatprep.subr.mxu0 0.0
          %2797 = vmatpush1.msra.mxu0 %v2717
          %2798 = vmatprep.subr.mxu0 0.0
          %2799 = vmatpush1.msra.mxu0 %v2718
          %2800 = vmatprep.subr.mxu0 0.0
          %2801 = vmatpush1.msra.mxu0 %v2719
          %2802 = vmatprep.subr.mxu0 0.0
          %2803 = vmatpush1.msra.mxu0 %v2720
          %2804 = vmatprep.subr.mxu0 0.0
          %2805 = vmatpush1.msra.mxu0 0.0
          %2806 = vmatprep.subr.mxu0 0.0
          %2807 = vmatpush1.msra.mxu0 0.0
          %2808 = vmatprep.subr.mxu0 0.0
          %2809 = vmatpush1.msra.mxu0 0.0
          %2810 = vmatprep.subr.mxu0 0.0
          %2811 = vmatpush1.msra.mxu0 0.0
          %2812 = vmatprep.subr.mxu0 0.0
          %2813 = vmatpush1.msra.mxu0 0.0
          %2814 = vmatprep.subr.mxu0 0.0
          %2815 = vmatpush1.msra.mxu0 0.0
          %2816 = vmatprep.subr.mxu0 0.0
          %2817 = vmatpush1.msra.mxu0 0.0
          %2818 = vmatprep.subr.mxu0 0.0
          %2819 = vmatpush1.msra.mxu0 0.0
          %2820 = vmatprep.subr.mxu0 0.0
          %2821 = vmatpush1.msra.mxu0 0.0
          %2822 = vmatprep.subr.mxu0 0.0
          %2823 = vmatpush1.msra.mxu0 0.0
          %2824 = vmatprep.subr.mxu0 0.0
          %2825 = vmatpush1.msra.mxu0 0.0
          %2826 = vmatprep.subr.mxu0 0.0
          %2827 = vmatpush1.msra.mxu0 0.0
          %2828 = vmatprep.subr.mxu0 0.0
          %2829 = vmatpush1.msra.mxu0 0.0
          %2830 = vmatprep.subr.mxu0 0.0
          %2831 = vmatpush1.msra.mxu0 0.0
          %2832 = vmatprep.subr.mxu0 0.0
          %2833 = vmatpush1.msra.mxu0 0.0
          %2834 = vmatprep.subr.mxu0 0.0
          %2835 = vmatpush1.msra.mxu0 0.0
          %2836 = vmatprep.subr.mxu0 0.0
          %2837 = vmatpush1.msra.mxu0 0.0
          %2838 = vmatprep.subr.mxu0 0.0
          %2839 = vmatpush1.msra.mxu0 0.0
          %2840 = vmatprep.subr.mxu0 0.0
          %2841 = vmatpush1.msra.mxu0 0.0
          %2842 = vmatprep.subr.mxu0 0.0
          %2843 = vmatpush1.msra.mxu0 0.0
          %2844 = vmatprep.subr.mxu0 0.0
          %2845 = vmatpush1.msra.mxu0 0.0
          %2846 = vmatprep.subr.mxu0 0.0
          %2847 = vmatpush1.msra.mxu0 0.0
          %2848 = vmatprep.subr.mxu0 0.0
          %2849 = vmatpush1.msra.mxu0 0.0
          %2850 = vmatprep.subr.mxu0 0.0
          %2851 = vmatpush1.msra.mxu0 0.0
          %2852 = vmatprep.subr.mxu0 0.0
          %2853 = vmatpush1.msra.mxu0 0.0
          %2854 = vmatprep.subr.mxu0 0.0
          %2855 = vmatpush1.msra.mxu0 0.0
          %2856 = vmatprep.subr.mxu0 0.0
          %2857 = vmatpush1.msra.mxu0 0.0
          %2858 = vmatprep.subr.mxu0 0.0
          %2859 = vmatpush1.msra.mxu0 0.0
          %2860 = vmatprep.mubr.f32.mxu0 0.0
          %2861 = vmatmul.mubr.f32.gmra.mrb[0].mxu0 %v1238
          %v2862 = vpop.f32.mrb[0].mxu0
          %v2863 = vadd.f32 %v2793, %v2862
          %v2864 = vpop.f32.mrb[0].mxu0
          %2865 = vdwg.mxu0
          %v2866 = vld [vmem:[#allocation29] sm:$0x1]
          %v2868 = vlaneseq
          %v2869 = vshrl.u32 %v2868, 7
          %v2870 = vsub.s32 0, %v2869
          %v2871 = vrot.slane %v2866, %v2870
          %v2873 = vadd.f32 %v2863, %v2871
          %v2874 = vxor.u32 %v2873, 2147483648
          %v2875 = vmul.f32 %v2874, 1.442695
          %v2876 = vpow.pop %v2875
          %v2877 = vadd.f32 %v2876, 1.0
          %v2878 = vrcp.pop %v2877
          %v2879 = vmul.f32 1.0, %v2878
          %v2880 = vmul.f32 %v2873, %v2879
          %v2881 = vld [vmem:[#allocation30] sm:$0xff]
          %v2882 = vld [vmem:[#allocation30 + $0x8] sm:$0xff]
          %v2883 = vld [vmem:[#allocation30 + $0x10] sm:$0xff]
          %v2884 = vld [vmem:[#allocation30 + $0x18] sm:$0xff]
          %v2885 = vld [vmem:[#allocation30 + $0x20] sm:$0xff]
          %v2886 = vld [vmem:[#allocation30 + $0x28] sm:$0xff]
          %v2887 = vld [vmem:[#allocation30 + $0x30] sm:$0xff]
          %v2888 = vld [vmem:[#allocation30 + $0x38] sm:$0xff]
          %vm2889 = vcmask 523264
          %v2891 = vsel %vm2889, %v2880, 0
          %2893 = vmatprep.subr.mxu0 0.0
          %2894 = vmatpush1.msra.mxu0 %v2881
          %2895 = vmatprep.subr.mxu0 0.0
          %2896 = vmatpush1.msra.mxu0 %v2882
          %2897 = vmatprep.subr.mxu0 0.0
          %2898 = vmatpush1.msra.mxu0 %v2883
          %2899 = vmatprep.subr.mxu0 0.0
          %2900 = vmatpush1.msra.mxu0 %v2884
          %2901 = vmatprep.subr.mxu0 0.0
          %2902 = vmatpush1.msra.mxu0 %v2885
          %2903 = vmatprep.subr.mxu0 0.0
          %2904 = vmatpush1.msra.mxu0 %v2886
          %2905 = vmatprep.subr.mxu0 0.0
          %2906 = vmatpush1.msra.mxu0 %v2887
          %2907 = vmatprep.subr.mxu0 0.0
          %2908 = vmatpush1.msra.mxu0 %v2888
          %2909 = vmatprep.subr.mxu0 0.0
          %2910 = vmatpush1.msra.mxu0 0.0
          %2911 = vmatprep.subr.mxu0 0.0
          %2912 = vmatpush1.msra.mxu0 0.0
          %2913 = vmatprep.subr.mxu0 0.0
          %2914 = vmatpush1.msra.mxu0 0.0
          %2915 = vmatprep.subr.mxu0 0.0
          %2916 = vmatpush1.msra.mxu0 0.0
          %2917 = vmatprep.subr.mxu0 0.0
          %2918 = vmatpush1.msra.mxu0 0.0
          %2919 = vmatprep.subr.mxu0 0.0
          %2920 = vmatpush1.msra.mxu0 0.0
          %2921 = vmatprep.subr.mxu0 0.0
          %2922 = vmatpush1.msra.mxu0 0.0
          %2923 = vmatprep.subr.mxu0 0.0
          %2924 = vmatpush1.msra.mxu0 0.0
          %2925 = vmatprep.subr.mxu0 0.0
          %2926 = vmatpush1.msra.mxu0 0.0
          %2927 = vmatprep.subr.mxu0 0.0
          %2928 = vmatpush1.msra.mxu0 0.0
          %2929 = vmatprep.subr.mxu0 0.0
          %2930 = vmatpush1.msra.mxu0 0.0
          %2931 = vmatprep.subr.mxu0 0.0
          %2932 = vmatpush1.msra.mxu0 0.0
          %2933 = vmatprep.subr.mxu0 0.0
          %2934 = vmatpush1.msra.mxu0 0.0
          %2935 = vmatprep.subr.mxu0 0.0
          %2936 = vmatpush1.msra.mxu0 0.0
          %2937 = vmatprep.subr.mxu0 0.0
          %2938 = vmatpush1.msra.mxu0 0.0
          %2939 = vmatprep.subr.mxu0 0.0
          %2940 = vmatpush1.msra.mxu0 0.0
          %2941 = vmatprep.subr.mxu0 0.0
          %2942 = vmatpush1.msra.mxu0 0.0
          %2943 = vmatprep.subr.mxu0 0.0
          %2944 = vmatpush1.msra.mxu0 0.0
          %2945 = vmatprep.subr.mxu0 0.0
          %2946 = vmatpush1.msra.mxu0 0.0
          %2947 = vmatprep.subr.mxu0 0.0
          %2948 = vmatpush1.msra.mxu0 0.0
          %2949 = vmatprep.subr.mxu0 0.0
          %2950 = vmatpush1.msra.mxu0 0.0
          %2951 = vmatprep.subr.mxu0 0.0
          %2952 = vmatpush1.msra.mxu0 0.0
          %2953 = vmatprep.subr.mxu0 0.0
          %2954 = vmatpush1.msra.mxu0 0.0
          %2955 = vmatprep.subr.mxu0 0.0
          %2956 = vmatpush1.msra.mxu0 0.0
          %2957 = vmatprep.mubr.f32.mxu0 0.0
          %2958 = vmatmul.mubr.f32.gmra.mrb[0].mxu0 %v2891
          %v2959 = vpop.f32.mrb[0].mxu0
          %v2960 = vadd.f32 0.0, %v2959
          %v2961 = vpop.f32.mrb[0].mxu0
          %2962 = vdwg.mxu0
          %v2963 = vadd.f32 %v1129, %v2960
          %v2964 = vld [vmem:[#allocation32] sm:$0x1]
          %v2966 = vlaneseq
          %v2967 = vshrl.u32 %v2966, 7
          %v2968 = vsub.s32 0, %v2967
          %v2969 = vrot.slane %v2964, %v2968
          %v2971 = vadd.f32 %v2963, %v2969
          %v2972 = vld [vmem:[%s979] sm:$0x1]
          %v2974 = vsel %vm2554, %v2972, 0
          %2976 = vmatprep.subr.mxu0 0.0
          %2977 = vmatpush1.msra.mxu0 %v2971
          %2978 = vmatprep.subr.mxu0 0.0
          %2979 = vmatpush1.msra.mxu0 0.0
          %2980 = vmatprep.subr.mxu0 0.0
          %2981 = vmatpush1.msra.mxu0 0.0
          %2982 = vmatprep.subr.mxu0 0.0
          %2983 = vmatpush1.msra.mxu0 0.0
          %2984 = vmatprep.subr.mxu0 0.0
          %2985 = vmatpush1.msra.mxu0 0.0
          %2986 = vmatprep.subr.mxu0 0.0
          %2987 = vmatpush1.msra.mxu0 0.0
          %2988 = vmatprep.subr.mxu0 0.0
          %2989 = vmatpush1.msra.mxu0 0.0
          %2990 = vmatprep.subr.mxu0 0.0
          %2991 = vmatpush1.msra.mxu0 0.0
          %2992 = vmatprep.subr.mxu0 0.0
          %2993 = vmatpush1.msra.mxu0 0.0
          %2994 = vmatprep.subr.mxu0 0.0
          %2995 = vmatpush1.msra.mxu0 0.0
          %2996 = vmatprep.subr.mxu0 0.0
          %2997 = vmatpush1.msra.mxu0 0.0
          %2998 = vmatprep.subr.mxu0 0.0
          %2999 = vmatpush1.msra.mxu0 0.0
          %3000 = vmatprep.subr.mxu0 0.0
          %3001 = vmatpush1.msra.mxu0 0.0
          %3002 = vmatprep.subr.mxu0 0.0
          %3003 = vmatpush1.msra.mxu0 0.0
          %3004 = vmatprep.subr.mxu0 0.0
          %3005 = vmatpush1.msra.mxu0 0.0
          %3006 = vmatprep.subr.mxu0 0.0
          %3007 = vmatpush1.msra.mxu0 0.0
          %3008 = vmatprep.subr.mxu0 0.0
          %3009 = vmatpush1.msra.mxu0 0.0
          %3010 = vmatprep.subr.mxu0 0.0
          %3011 = vmatpush1.msra.mxu0 0.0
          %3012 = vmatprep.subr.mxu0 0.0
          %3013 = vmatpush1.msra.mxu0 0.0
          %3014 = vmatprep.subr.mxu0 0.0
          %3015 = vmatpush1.msra.mxu0 0.0
          %3016 = vmatprep.subr.mxu0 0.0
          %3017 = vmatpush1.msra.mxu0 0.0
          %3018 = vmatprep.subr.mxu0 0.0
          %3019 = vmatpush1.msra.mxu0 0.0
          %3020 = vmatprep.subr.mxu0 0.0
          %3021 = vmatpush1.msra.mxu0 0.0
          %3022 = vmatprep.subr.mxu0 0.0
          %3023 = vmatpush1.msra.mxu0 0.0
          %3024 = vmatprep.subr.mxu0 0.0
          %3025 = vmatpush1.msra.mxu0 0.0
          %3026 = vmatprep.subr.mxu0 0.0
          %3027 = vmatpush1.msra.mxu0 0.0
          %3028 = vmatprep.subr.mxu0 0.0
          %3029 = vmatpush1.msra.mxu0 0.0
          %3030 = vmatprep.subr.mxu0 0.0
          %3031 = vmatpush1.msra.mxu0 0.0
          %3032 = vmatprep.subr.mxu0 0.0
          %3033 = vmatpush1.msra.mxu0 0.0
          %3034 = vmatprep.subr.mxu0 0.0
          %3035 = vmatpush1.msra.mxu0 0.0
          %3036 = vmatprep.subr.mxu0 0.0
          %3037 = vmatpush1.msra.mxu0 0.0
          %3038 = vmatprep.subr.mxu0 0.0
          %3039 = vmatpush1.msra.mxu0 0.0
          %3040 = vmatprep.mubr.f32.mxu0 0.0
          %3041 = vmatmul.mubr.f32.gmra.mrb[0].mxu0 %v2974
          %v3042 = vpop.f32.mrb[0].mxu0
          %v3043 = vadd.f32 0.0, %v3042
          %v3044 = vpop.f32.mrb[0].mxu0
          %3045 = vdwg.mxu0
          %v3046 = vld [vmem:[#allocation33] sm:$0xff]
          %v3047 = vld [vmem:[#allocation33 + $0x8] sm:$0xff]
          %v3048 = vld [vmem:[#allocation33 + $0x10] sm:$0xff]
          %v3049 = vld [vmem:[#allocation33 + $0x18] sm:$0xff]
          %v3050 = vld [vmem:[#allocation33 + $0x20] sm:$0xff]
          %v3051 = vld [vmem:[#allocation33 + $0x28] sm:$0xff]
          %v3052 = vld [vmem:[#allocation33 + $0x30] sm:$0xff]
          %v3053 = vld [vmem:[#allocation33 + $0x38] sm:$0xff]
          %v3054 = vld [vmem:[#allocation33 + $0x40] sm:$0xff]
          %v3055 = vld [vmem:[#allocation33 + $0x48] sm:$0xff]
          %v3056 = vld [vmem:[#allocation33 + $0x50] sm:$0xff]
          %v3057 = vld [vmem:[#allocation33 + $0x58] sm:$0xff]
          %v3058 = vld [vmem:[#allocation33 + $0x60] sm:$0xff]
          %v3059 = vld [vmem:[#allocation33 + $0x68] sm:$0xff]
          %v3060 = vld [vmem:[#allocation33 + $0x70] sm:$0xff]
          %v3061 = vld [vmem:[#allocation33 + $0x78] sm:$0xff]
          %v3062 = vld [vmem:[#allocation35] sm:$0xf]
          %v3064 = vlaneseq
          %v3065 = vshrl.u32 %v3064, 7
          %v3066 = vsub.s32 0, %v3065
          %v3067 = vrot.slane %v3062, %v3066
          %v3068 = vlaneseq
          %v3069 = vshrl.u32 %v3068, 7
          %v3070 = vsub.s32 1, %v3069
          %v3071 = vrot.slane %v3062, %v3070
          %v3072 = vlaneseq
          %v3073 = vshrl.u32 %v3072, 7
          %v3074 = vsub.s32 2, %v3073
          %v3075 = vrot.slane %v3062, %v3074
          %v3076 = vlaneseq
          %v3077 = vshrl.u32 %v3076, 7
          %v3078 = vsub.s32 3, %v3077
          %v3079 = vrot.slane %v3062, %v3078
          %v3085 = vsel %vm1236, %v3043, 0
          %3087 = vmatprep.subr.mxu0 %v3047
          %3088 = vmatpush1.msra.mxu0 %v3046
          %3089 = vmatprep.subr.mxu0 %v3051
          %3090 = vmatpush1.msra.mxu0 %v3050
          %3091 = vmatprep.subr.mxu0 %v3055
          %3092 = vmatpush1.msra.mxu0 %v3054
          %3093 = vmatprep.subr.mxu0 %v3059
          %3094 = vmatpush1.msra.mxu0 %v3058
          %3095 = vmatprep.subr.mxu0 0.0
          %3096 = vmatpush1.msra.mxu0 0.0
          %3097 = vmatprep.subr.mxu0 0.0
          %3098 = vmatpush1.msra.mxu0 0.0
          %3099 = vmatprep.subr.mxu0 0.0
          %3100 = vmatpush1.msra.mxu0 0.0
          %3101 = vmatprep.subr.mxu0 0.0
          %3102 = vmatpush1.msra.mxu0 0.0
          %3103 = vmatprep.subr.mxu0 0.0
          %3104 = vmatpush1.msra.mxu0 0.0
          %3105 = vmatprep.subr.mxu0 0.0
          %3106 = vmatpush1.msra.mxu0 0.0
          %3107 = vmatprep.subr.mxu0 0.0
          %3108 = vmatpush1.msra.mxu0 0.0
          %3109 = vmatprep.subr.mxu0 0.0
          %3110 = vmatpush1.msra.mxu0 0.0
          %3111 = vmatprep.subr.mxu0 0.0
          %3112 = vmatpush1.msra.mxu0 0.0
          %3113 = vmatprep.subr.mxu0 0.0
          %3114 = vmatpush1.msra.mxu0 0.0
          %3115 = vmatprep.subr.mxu0 0.0
          %3116 = vmatpush1.msra.mxu0 0.0
          %3117 = vmatprep.subr.mxu0 0.0
          %3118 = vmatpush1.msra.mxu0 0.0
          %3119 = vmatprep.subr.mxu0 0.0
          %3120 = vmatpush1.msra.mxu0 0.0
          %3121 = vmatprep.subr.mxu0 0.0
          %3122 = vmatpush1.msra.mxu0 0.0
          %3123 = vmatprep.subr.mxu0 0.0
          %3124 = vmatpush1.msra.mxu0 0.0
          %3125 = vmatprep.subr.mxu0 0.0
          %3126 = vmatpush1.msra.mxu0 0.0
          %3127 = vmatprep.subr.mxu0 0.0
          %3128 = vmatpush1.msra.mxu0 0.0
          %3129 = vmatprep.subr.mxu0 0.0
          %3130 = vmatpush1.msra.mxu0 0.0
          %3131 = vmatprep.subr.mxu0 0.0
          %3132 = vmatpush1.msra.mxu0 0.0
          %3133 = vmatprep.subr.mxu0 0.0
          %3134 = vmatpush1.msra.mxu0 0.0
          %3135 = vmatprep.subr.mxu0 0.0
          %3136 = vmatpush1.msra.mxu0 0.0
          %3137 = vmatprep.subr.mxu0 0.0
          %3138 = vmatpush1.msra.mxu0 0.0
          %3139 = vmatprep.subr.mxu0 0.0
          %3140 = vmatpush1.msra.mxu0 0.0
          %3141 = vmatprep.subr.mxu0 0.0
          %3142 = vmatpush1.msra.mxu0 0.0
          %3143 = vmatprep.subr.mxu0 0.0
          %3144 = vmatpush1.msra.mxu0 0.0
          %3145 = vmatprep.subr.mxu0 0.0
          %3146 = vmatpush1.msra.mxu0 0.0
          %3147 = vmatprep.subr.mxu0 0.0
          %3148 = vmatpush1.msra.mxu0 0.0
          %3149 = vmatprep.subr.mxu0 0.0
          %3150 = vmatpush1.msra.mxu0 0.0
          %3151 = vmatprep.mubr.f32.mxu0 0.0
          %3152 = vmatmul.mubr.f32.gmra.mrb[0].mxu0 %v3085
          %v3153 = vpop.f32.mrb[0].mxu0
          %v3154 = vadd.f32 %v3067, %v3153
          %v3155 = vpop.f32.mrb[0].mxu0
          %v3156 = vadd.f32 %v3071, %v3155
          %3157 = vdwg.mxu0
          %3158 = vmatprep.subr.mxu0 %v3049
          %3159 = vmatpush1.msra.mxu0 %v3048
          %3160 = vmatprep.subr.mxu0 %v3053
          %3161 = vmatpush1.msra.mxu0 %v3052
          %3162 = vmatprep.subr.mxu0 %v3057
          %3163 = vmatpush1.msra.mxu0 %v3056
          %3164 = vmatprep.subr.mxu0 %v3061
          %3165 = vmatpush1.msra.mxu0 %v3060
          %3166 = vmatprep.subr.mxu0 0.0
          %3167 = vmatpush1.msra.mxu0 0.0
          %3168 = vmatprep.subr.mxu0 0.0
          %3169 = vmatpush1.msra.mxu0 0.0
          %3170 = vmatprep.subr.mxu0 0.0
          %3171 = vmatpush1.msra.mxu0 0.0
          %3172 = vmatprep.subr.mxu0 0.0
          %3173 = vmatpush1.msra.mxu0 0.0
          %3174 = vmatprep.subr.mxu0 0.0
          %3175 = vmatpush1.msra.mxu0 0.0
          %3176 = vmatprep.subr.mxu0 0.0
          %3177 = vmatpush1.msra.mxu0 0.0
          %3178 = vmatprep.subr.mxu0 0.0
          %3179 = vmatpush1.msra.mxu0 0.0
          %3180 = vmatprep.subr.mxu0 0.0
          %3181 = vmatpush1.msra.mxu0 0.0
          %3182 = vmatprep.subr.mxu0 0.0
          %3183 = vmatpush1.msra.mxu0 0.0
          %3184 = vmatprep.subr.mxu0 0.0
          %3185 = vmatpush1.msra.mxu0 0.0
          %3186 = vmatprep.subr.mxu0 0.0
          %3187 = vmatpush1.msra.mxu0 0.0
          %3188 = vmatprep.subr.mxu0 0.0
          %3189 = vmatpush1.msra.mxu0 0.0
          %3190 = vmatprep.subr.mxu0 0.0
          %3191 = vmatpush1.msra.mxu0 0.0
          %3192 = vmatprep.subr.mxu0 0.0
          %3193 = vmatpush1.msra.mxu0 0.0
          %3194 = vmatprep.subr.mxu0 0.0
          %3195 = vmatpush1.msra.mxu0 0.0
          %3196 = vmatprep.subr.mxu0 0.0
          %3197 = vmatpush1.msra.mxu0 0.0
          %3198 = vmatprep.subr.mxu0 0.0
          %3199 = vmatpush1.msra.mxu0 0.0
          %3200 = vmatprep.subr.mxu0 0.0
          %3201 = vmatpush1.msra.mxu0 0.0
          %3202 = vmatprep.subr.mxu0 0.0
          %3203 = vmatpush1.msra.mxu0 0.0
          %3204 = vmatprep.subr.mxu0 0.0
          %3205 = vmatpush1.msra.mxu0 0.0
          %3206 = vmatprep.subr.mxu0 0.0
          %3207 = vmatpush1.msra.mxu0 0.0
          %3208 = vmatprep.subr.mxu0 0.0
          %3209 = vmatpush1.msra.mxu0 0.0
          %3210 = vmatprep.subr.mxu0 0.0
          %3211 = vmatpush1.msra.mxu0 0.0
          %3212 = vmatprep.subr.mxu0 0.0
          %3213 = vmatpush1.msra.mxu0 0.0
          %3214 = vmatprep.subr.mxu0 0.0
          %3215 = vmatpush1.msra.mxu0 0.0
          %3216 = vmatprep.subr.mxu0 0.0
          %3217 = vmatpush1.msra.mxu0 0.0
          %3218 = vmatprep.subr.mxu0 0.0
          %3219 = vmatpush1.msra.mxu0 0.0
          %3220 = vmatprep.subr.mxu0 0.0
          %3221 = vmatpush1.msra.mxu0 0.0
          %3222 = vmatprep.mubr.f32.mxu0 0.0
          %3223 = vmatmul.mubr.f32.gmra.mrb[0].mxu0 %v3085
          %v3224 = vpop.f32.mrb[0].mxu0
          %v3225 = vadd.f32 %v3075, %v3224
          %v3226 = vpop.f32.mrb[0].mxu0
          %v3227 = vadd.f32 %v3079, %v3226
          %3228 = vdwg.mxu0
          %v3233 = vcombine.low %v3154, %v3156
          %v3234 = vcombine.low %v3225, %v3227
          %v3236 = vunpack.c.l.s4 1966171168
          %v3237 = vunpack.c.0.s8 %v3236
          %v3238 = vlaneseq
          %v3239 = vshrl.u32 %v3238, 7
          %v3240 = vsub.s32 %v3237, %v3239
          %v3241 = vrot.slane %v3233, %v3240
          %v3243 = vunpack.c.l.s4 1966171168
          %v3244 = vunpack.c.0.s8 %v3243
          %v3245 = vlaneseq
          %v3246 = vshrl.u32 %v3245, 7
          %v3247 = vsub.s32 %v3244, %v3246
          %v3248 = vrot.slane %v3234, %v3247
          %v3249 = vcombine.low %v3241, %v3248
          %v3251 = vunpack.c.l.s4 1966171168
          %v3252 = vunpack.c.0.s8 %v3251
          %v3253 = vlaneseq
          %v3254 = vshrl.u32 %v3253, 7
          %v3255 = vsub.s32 %v3252, %v3254
          %v3256 = vrot.slane %v3249, %v3255
          %v3258 = vlaneseq
          %vm3259 = vcmp.ge.s32.totalorder %v3258, 0
          %vm3260 = vcmp.lt.s32.totalorder %v3258, 512
          %vm3261 = vmand %vm3259, %vm3260
          %3262 = vst.msk [vmem:[%s1121] sm:$0xf] %vm3261, %v3256
        $region196: #{tpu_custom_call.1} parent=103 // pred_fallthru
          _
        %s3263 = sand.u32 %s565, 1
        %s3264 = scalar_lea.sflag [#allocation5], %s3263
        %s3265 = sand.u32 %s565, 1
        %s3266 = smul.addr %s3265, 4
        %s3267 = scalar_lea.vmem [#allocation36], %s3266
        // Predicated region
        $region197: #{tpu_custom_call.1} parent=103 // pred_check
          %p3268 = pneg %p575
        $region198: #{tpu_custom_call.1} parent=103 // pred_check_branch
          %3270 = sbr.rel (%p3268) target = $region200
        $region199: #{tpu_custom_call.1} parent=103 // pred_region
          %s3272 = ssub.s32 64, 64
          %3273 = vsyncadd %s3264, %s3272
          %s3274 = smul.addr %s60, 4
          %s3275 = smul.addr %s3274, 16
          %s3276 = scalar_lea.hbm %s21, %s3275
          %s3278 = sshll.u32 %s3267, 4
          %s3279 = int_to_ptr.vmem [resolvable:$true] %s3278
          %3281 = dma.vmem_to_hbm [thread:$0]  %s3279, 64, %s3276, %s3264
        $region200: #{tpu_custom_call.1} parent=103 // pred_fallthru
          _
      $region104: #{tpu_custom_call.1} parent=5 // pred_fallthru
        _
      %p3282 = scmp.le.s32.totalorder 2, %s51
      // Predicated region
      $region201: #{tpu_custom_call.1} parent=5 // pred_check
        %p3283 = pneg %p3282
      $region202: #{tpu_custom_call.1} parent=5 // pred_check_branch
        %3285 = sbr.rel (%p3283) target = $region204
      $region203: #{tpu_custom_call.1} parent=5 // pred_region
        %s3286 = ssub.s32 %s51, 2
        // Predicated region
        $region205: #{tpu_custom_call.1} parent=203 // pred_check
          %p3287 = pneg %p581
        $region206: #{tpu_custom_call.1} parent=203 // pred_check_branch
          %3289 = sbr.rel (%p3287) target = $region208
        $region207: #{tpu_custom_call.1} parent=203 // pred_region
          %s3290 = sand.u32 %s566, 1
          %s3291 = scalar_lea.sflag [#allocation5], %s3290
          %s3292 = sand.u32 %s566, 1
          %s3293 = smul.addr %s3292, 4
          %s3294 = scalar_lea.vmem [#allocation36], %s3293
          %3295 = dma.done %s3291, 64
        $region208: #{tpu_custom_call.1} parent=203 // pred_fallthru
          _
      $region204: #{tpu_custom_call.1} parent=5 // pred_fallthru
        _
    $region6: #{tpu_custom_call.1} parent=1 // loop_footer
      %s55 = sadd.s32 1, %s51
    $region7: #{tpu_custom_call.1} parent=1 // loop_footer_branch
      %50 = sbr.rel target = $region3
    $region8: #{tpu_custom_call.1} parent=1 // loop_exit
      _
    %3296 = vsyncpa [#allocation4], 1
    %s3297 = scalar_lea.sflag [#allocation4], 1
    %3298 = vsyncpa %s3297, 1
    %3299 = vsyncpa [#allocation7], 1
    %s3300 = scalar_lea.sflag [#allocation7], 1
    %3301 = vsyncpa %s3300, 1
    %3302 = vsyncpa [#allocation10], 1
    %s3303 = scalar_lea.sflag [#allocation10], 1
    %3304 = vsyncpa %s3303, 1
    %3305 = vsyncpa [#allocation13], 1
    %s3306 = scalar_lea.sflag [#allocation13], 1
    %3307 = vsyncpa %s3306, 1
    %3308 = vsyncpa [#allocation16], 1
    %s3309 = scalar_lea.sflag [#allocation16], 1
    %3310 = vsyncpa %s3309, 1
    %3311 = vsyncpa [#allocation19], 1
    %3312 = vsyncpa [#allocation22], 1
    %3313 = vsyncpa [#allocation25], 1
    %3314 = vsyncpa [#allocation28], 1
    %3315 = vsyncpa [#allocation31], 1
    %3316 = vsyncpa [#allocation34], 1
    %3317 = vsyncpa [#allocation5], 1
    %s3318 = scalar_lea.sflag [#allocation5], 1
    %3319 = vsyncpa %s3318, 1

</llo_original>
